<compile_context>
chip_gen: v7x
topology: tpu7x:2x2x1
jax: 0.10.0
libtpu: 0.0.40
codegen_flags: <defaults>
</compile_context>

<pallas_src>
import functools

import numpy as np
import jax
import jax.numpy as jnp
from jax.experimental import pallas as pl
from jax.experimental.pallas import tpu as pltpu


# ----------------------------------------------------------------------------
# Fused Pallas kernel: conv1->BN->ReLU -> conv2 -> conv3 -> conv4->BN -> VQ
# ----------------------------------------------------------------------------
def _fused_encoder_vq_kernel(
    p1_ref, w1_ref, g1_ref, b1_ref,
    sel2_ref, w2_ref, g2_ref, b2_ref,
    sel3_ref, w3_ref, g3_ref, b3_ref,
    w4_ref, g4_ref, b4_ref,
    emb_ref, esq_ref,
    out_ref):
  """Whole VQVAE_ENCODER forward on VMEM-resident data.

  p1_ref   : (M1, K1) bf16        im2col patches of the input for layer 1
  w1_ref   : (K1, C1) bf16        layer-1 weights in matmul form
  w2/w3    : (T, Cin, Cout) bf16  per-tap weights of the strided 4x4 convs
  sel2/3   : (T*Mout, Min) bf16   all per-tap 0/1 row-selection matrices,
                                  stacked row-wise (tap-major)
  w4_ref   : (C3, C4) bf16        1x1 conv weights
  g*/b*    : (1, C) f32           BatchNorm gamma / beta
  emb_ref  : (Kc, C) f32 codebook; esq_ref: (1, Kc) f32 = ||e||^2
  out_ref  : (M, 128) f32 packed  [ z_e | z_q | latent(broadcast) ]
  """
  f32 = jnp.float32
  bf16 = jnp.bfloat16

  def bn(y, g_ref, b_ref, relu):
    # BatchNorm2d training mode: stats over N*H*W rows, biased var, eps=1e-5.
    mean = jnp.mean(y, axis=0, keepdims=True)
    var = jnp.mean(jnp.square(y - mean), axis=0, keepdims=True)
    out = (y - mean) * jax.lax.rsqrt(var + 1e-5) * g_ref[...] + b_ref[...]
    return jnp.maximum(out, 0.0) if relu else out

  def tap_conv(x_f32, sel_ref, w_ref):
    taps, cin, _ = w_ref.shape
    m_out = sel_ref.shape[0] // taps
    # (1) ONE fused gather matmul over all taps: (T*Mout, Min) @ (Min, Cin).
    #     Selection rows are one-hot/zero, so f32 accumulation is exact.
    g = jnp.dot(sel_ref[...], x_f32.astype(bf16),
                preferred_element_type=f32)                  # (T*Mout, Cin)
    # (2) ONE batched tap/channel contraction on the MXU (+ VPU tap-sum).
    g = g.reshape(taps, m_out, cin).astype(bf16)             # leading-dim split
    per_tap = jax.lax.dot_general(
        g, w_ref[...],
        dimension_numbers=(((2,), (1,)), ((0,), (0,))),
        preferred_element_type=f32)                          # (T, Mout, Cout)
    return jnp.sum(per_tap, axis=0)                          # (Mout, Cout) f32

  # ---- encoder (activations never leave VMEM / vregs) ----
  a1 = bn(jnp.dot(p1_ref[...], w1_ref[...], preferred_element_type=f32),
          g1_ref, b1_ref, True)
  a2 = bn(tap_conv(a1, sel2_ref, w2_ref), g2_ref, b2_ref, True)
  a3 = bn(tap_conv(a2, sel3_ref, w3_ref), g3_ref, b3_ref, True)
  z = bn(jnp.dot(a3.astype(bf16), w4_ref[...], preferred_element_type=f32),
         g4_ref, b4_ref, False)                              # (M, C) f32

  # ---- vector quantization (f32):  dists = ||z||^2 - 2 z.E^T + ||e||^2 ----
  m, c = z.shape
  kc = emb_ref.shape[0]
  zz = jnp.sum(z * z, axis=-1, keepdims=True)                # (M, 1)
  cross = jax.lax.dot_general(                               # z @ emb^T on MXU
      z, emb_ref[...],
      dimension_numbers=(((1,), (1,)), ((), ())),
      preferred_element_type=f32)                            # (M, Kc)
  dists = zz - 2.0 * cross + esq_ref[...]
  dmin = jnp.min(dists, axis=-1, keepdims=True)
  iota = jax.lax.broadcasted_iota(jnp.int32, (m, kc), 1)
  idx = jnp.min(jnp.where(dists == dmin, iota, jnp.int32(kc)),
                axis=-1, keepdims=True)                      # (M, 1) int32, ties->lowest
  onehot = (iota == idx).astype(f32)                         # (M, Kc)
  zq = jnp.dot(onehot, emb_ref[...], preferred_element_type=f32)

  # ---- lane-dense packed output: [ z_e | z_q | latent broadcast ] ----
  out_ref[:, 0:c] = z
  out_ref[:, c:2 * c] = zq
  lat = idx.astype(f32)                                      # exact for Kc < 2^24
  out_ref[:, 2 * c:] = jnp.broadcast_to(lat, (m, out_ref.shape[1] - 2 * c))


# ----------------------------------------------------------------------------
# pallas_call wrapper (grid-less: whole problem is one VMEM-resident block)
# ----------------------------------------------------------------------------
def fused_encoder_vq(patches1, plan):
  inputs = (
      patches1, plan["w1"], plan["g1"], plan["b1"],
      plan["sel2"], plan["w2"], plan["g2"], plan["b2"],
      plan["sel3"], plan["w3"], plan["g3"], plan["b3"],
      plan["w4"], plan["g4"], plan["b4"],
      plan["emb"], plan["esq"],
  )
  m1, k1 = patches1.shape
  c1 = plan["w1"].shape[1]
  t2, cin2, c2 = plan["w2"].shape
  r2, min2 = plan["sel2"].shape
  t3, cin3, c3 = plan["w3"].shape
  r3, min3 = plan["sel3"].shape
  c4 = plan["w4"].shape[1]
  kc = plan["emb"].shape[0]
  m3 = r3 // t3
  out_width = plan["out_width"]

  # Honest advisory cost for the new op structure (gather + batched contraction).
  flops = (2 * m1 * k1 * c1
           + 2 * r2 * min2 * cin2 + 2 * r2 * cin2 * c2
           + 2 * r3 * min3 * cin3 + 2 * r3 * cin3 * c3
           + 2 * m3 * c3 * c4
           + 4 * m3 * c4 * kc)
  bytes_accessed = (sum(int(a.size) * a.dtype.itemsize for a in inputs)
                    + m3 * out_width * 4)

  vmem_spec = pl.BlockSpec(memory_space=pltpu.MemorySpace.VMEM)

  return pl.pallas_call(
      _fused_encoder_vq_kernel,
      out_shape=jax.ShapeDtypeStruct((m3, out_width), jnp.float32),
      in_specs=[vmem_spec] * len(inputs),
      out_specs=vmem_spec,
      compiler_params=pltpu.CompilerParams(
          vmem_limit_bytes=8 * 1024 * 1024),
      cost_estimate=pl.CostEstimate(
          flops=int(flops),
          transcendentals=int(c1 + c2 + c3 + c4),
          bytes_accessed=int(bytes_accessed)),
  )(*inputs)


# ----------------------------------------------------------------------------
# One-time (hoisted) parameter / plan preparation
# ----------------------------------------------------------------------------
def init_params(num_clusters=512, encoder_output_size=32, in_channels=1):
  key = jax.random.PRNGKey(0)
  keys = jax.random.split(key, 8)
  layer_defs = [
      # (Cin, Cout, k, s, p, relu)
      (in_channels, 16, 4, 2, 1, True),
      (16, 32, 4, 2, 1, True),
      (32, 64, 4, 2, 1, True),
      (64, encoder_output_size, 1, 1, 0, False),
  ]
  params = []
  for i, (cin, cout, k, s, p, relu) in enumerate(layer_defs):
    w = 0.1 * jax.random.normal(keys[i], (cout, cin, k, k), jnp.float32)
    # NOTE: conv bias omitted on purpose -- training-mode BatchNorm's mean
    # subtraction cancels a per-channel bias exactly.
    params.append(dict(w=w,
                       gamma=jnp.ones((cout,), jnp.float32),
                       beta=jnp.zeros((cout,), jnp.float32),
                       cin=cin, cout=cout, k=k, s=s, p=p, relu=relu))
  emb = (1.0 / num_clusters) * jax.random.normal(
      keys[len(layer_defs)], (num_clusters, encoder_output_size), jnp.float32)
  return params, emb


def _tap_selectors(n, h_in, w_in, k, s, p):
  """0/1 per-tap row-selection matrices, stacked tap-major: (k*k*Mout, Min)."""
  h_out = (h_in + 2 * p - k) // s + 1
  w_out = (w_in + 2 * p - k) // s + 1
  sel = np.zeros((k * k, n * h_out * w_out, n * h_in * w_in), np.float32)
  for dh in range(k):
    for dw in range(k):
      t = dh * k + dw
      for nn in range(n):
        for ho in range(h_out):
          hi = ho * s - p + dh
          if not 0 <= hi < h_in:
            continue
          for wo in range(w_out):
            wi = wo * s - p + dw
            if not 0 <= wi < w_in:
              continue
            sel[t, (nn * h_out + ho) * w_out + wo,
                (nn * h_in + hi) * w_in + wi] = 1.0
  return sel.reshape(k * k * n * h_out * w_out, n * h_in * w_in), h_out, w_out


def build_plan(params, emb, input_shape):
  """Hoisted one-time prep of all matmul-form operands (no per-forward work)."""
  n, _, h, w = input_shape
  l1, l2, l3, l4 = params
  bf16 = jnp.bfloat16

  def w_im2col(layer):   # (Cout,Cin,kh,kw) -> (kh*kw*Cin, Cout)
    return jnp.transpose(layer["w"], (2, 3, 1, 0)).reshape(
        -1, layer["cout"]).astype(bf16)

  def w_taps(layer):     # (Cout,Cin,kh,kw) -> (kh*kw, Cin, Cout)
    return jnp.transpose(layer["w"], (2, 3, 1, 0)).reshape(
        layer["k"] * layer["k"], layer["cin"], layer["cout"]).astype(bf16)

  h1o = (h + 2 * l1["p"] - l1["k"]) // l1["s"] + 1
  w1o = (w + 2 * l1["p"] - l1["k"]) // l1["s"] + 1
  sel2, h2o, w2o = _tap_selectors(n, h1o, w1o, l2["k"], l2["s"], l2["p"])
  sel3, h3o, w3o = _tap_selectors(n, h2o, w2o, l3["k"], l3["s"], l3["p"])
  # layer 4 is a 1x1 / stride-1 conv: spatial dims unchanged.

  c_lat = l4["cout"]
  out_width = ((2 * c_lat + 1 + 127) // 128) * 128   # lane-dense packed slab

  return dict(
      n=n, h_out=h3o, w_out=w3o, c=c_lat, out_width=out_width,
      k1=l1["k"], s1=l1["s"], p1=l1["p"],
      w1=w_im2col(l1), w2=w_taps(l2), w3=w_taps(l3),
      w4=jnp.transpose(l4["w"], (2, 3, 1, 0)).reshape(
          l4["cin"], l4["cout"]).astype(bf16),
      g1=l1["gamma"][None, :], b1=l1["beta"][None, :],
      g2=l2["gamma"][None, :], b2=l2["beta"][None, :],
      g3=l3["gamma"][None, :], b3=l3["beta"][None, :],
      g4=l4["gamma"][None, :], b4=l4["beta"][None, :],
      sel2=jnp.asarray(sel2, dtype=bf16),        # 0/1 exact in bf16
      sel3=jnp.asarray(sel3, dtype=bf16),
      emb=emb,                                   # f32 for argmin fidelity
      esq=jnp.sum(emb * emb, axis=1)[None, :],   # (1, Kc) f32
  )


# ----------------------------------------------------------------------------
# Forward (thin glue: layer-1 im2col on the raw input + NCHW packaging)
# ----------------------------------------------------------------------------
def _im2col(x_nhwc, k, s, p):
  x = jnp.pad(x_nhwc, ((0, 0), (p, p), (p, p), (0, 0))) if p > 0 else x_nhwc
  n, hp, wp, c = x.shape
  ho = (hp - k) // s + 1
  wo = (wp - k) // s + 1
  cols = []
  for dh in range(k):
    for dw in range(k):
      cols.append(x[:, dh:dh + (ho - 1) * s + 1:s,
                    dw:dw + (wo - 1) * s + 1:s, :])
  patches = jnp.concatenate(cols, axis=-1)          # (N, Ho, Wo, k*k*C)
  return patches.reshape(n * ho * wo, k * k * c)


def vqvae_encoder_forward(x_nchw, plan):
  """Mirrors VQVAE_ENCODER.forward: returns (z_e_x, z_q_x, latents) in NCHW."""
  n, h_out, w_out, c = plan["n"], plan["h_out"], plan["w_out"], plan["c"]
  x_nhwc = jnp.transpose(x_nchw, (0, 2, 3, 1))
  patches1 = _im2col(x_nhwc, plan["k1"], plan["s1"],
                     plan["p1"]).astype(jnp.bfloat16)
  packed = fused_encoder_vq(patches1, plan)         # (M, 128) f32 slab
  z_e = packed[:, :c]
  z_q = packed[:, c:2 * c]
  lat = packed[:, 2 * c].astype(jnp.int32)          # torch gives int64
  z_e_x = jnp.transpose(z_e.reshape(n, h_out, w_out, c), (0, 3, 1, 2))
  z_q_x = jnp.transpose(z_q.reshape(n, h_out, w_out, c), (0, 3, 1, 2))
  latents = lat.reshape(n, h_out, w_out)
  return z_e_x, z_q_x, latents


if __name__ == "__main__":
  params, embedding = init_params(num_clusters=512, encoder_output_size=32,
                                  in_channels=1)
  x = jax.random.normal(jax.random.PRNGKey(0), (2, 1, 16, 16), jnp.float32)

  plan = build_plan(params, embedding, x.shape)     # hoisted, built once
  fwd = jax.jit(functools.partial(vqvae_encoder_forward, plan=plan))

  z_e_x, z_q_x, latents = fwd(x)
  jax.block_until_ready((z_e_x, z_q_x, latents))

  assert z_e_x.shape == (2, 32, 2, 2)
  assert z_q_x.shape == (2, 32, 2, 2)
  assert latents.shape == (2, 2, 2)
  print("KERNEL_OK")
</pallas_src>

<mosaic_0001>
module attributes {stable_mosaic.version = 11 : i64} {
  func.func @_fused_encoder_vq_kernel(%arg0: memref<128x16xbf16, #tpu.memory_space<vmem>>, %arg1: memref<16x16xbf16, #tpu.memory_space<vmem>>, %arg2: memref<1x16xf32, #tpu.memory_space<vmem>>, %arg3: memref<1x16xf32, #tpu.memory_space<vmem>>, %arg4: memref<512x128xbf16, #tpu.memory_space<vmem>>, %arg5: memref<16x16x32xbf16, #tpu.memory_space<vmem>>, %arg6: memref<1x32xf32, #tpu.memory_space<vmem>>, %arg7: memref<1x32xf32, #tpu.memory_space<vmem>>, %arg8: memref<128x32xbf16, #tpu.memory_space<vmem>>, %arg9: memref<16x32x64xbf16, #tpu.memory_space<vmem>>, %arg10: memref<1x64xf32, #tpu.memory_space<vmem>>, %arg11: memref<1x64xf32, #tpu.memory_space<vmem>>, %arg12: memref<64x32xbf16, #tpu.memory_space<vmem>>, %arg13: memref<1x32xf32, #tpu.memory_space<vmem>>, %arg14: memref<1x32xf32, #tpu.memory_space<vmem>>, %arg15: memref<512x32xf32, #tpu.memory_space<vmem>>, %arg16: memref<1x512xf32, #tpu.memory_space<vmem>>, %arg17: memref<8x128xf32, #tpu.memory_space<vmem>>) attributes {dimension_semantics = [], scalar_prefetch = 0 : i64, scratch_operands = 0 : i64, tpu.core_type = #tpu.core_type<tc>} {
    %c0 = arith.constant 0 : index
    %c0_0 = arith.constant 0 : index
    %0 = vector.load %arg0[%c0, %c0_0] : memref<128x16xbf16, #tpu.memory_space<vmem>>, vector<128x16xbf16>
    %c0_1 = arith.constant 0 : index
    %c0_2 = arith.constant 0 : index
    %1 = vector.load %arg1[%c0_1, %c0_2] : memref<16x16xbf16, #tpu.memory_space<vmem>>, vector<16x16xbf16>
    %cst = arith.constant dense<0.000000e+00> : vector<128x16xf32>
    %2 = tpu.matmul %0, %1, %cst {dimension_numbers = #tpu.dot_dimension_numbers<[1], [0], [0], [1], [0, 0, 1, 1], [], []>} : vector<128x16xbf16>, vector<16x16xbf16>, vector<128x16xf32> -> vector<128x16xf32>
    %cst_3 = arith.constant dense<0.000000e+00> : vector<16xf32>
    %3 = vector.multi_reduction <add>, %2, %cst_3 [0] : vector<128x16xf32> to vector<16xf32>
    %4 = vector.shape_cast %3 : vector<16xf32> to vector<1x16xf32>
    %cst_4 = arith.constant 1.280000e+02 : f32
    %5 = vector.broadcast %cst_4 : f32 to vector<1x16xf32>
    %6 = arith.divf %4, %5 : vector<1x16xf32>
    %7 = vector.broadcast %6 : vector<1x16xf32> to vector<128x16xf32>
    %8 = arith.subf %2, %7 : vector<128x16xf32>
    %9 = arith.mulf %8, %8 : vector<128x16xf32>
    %cst_5 = arith.constant dense<0.000000e+00> : vector<16xf32>
    %10 = vector.multi_reduction <add>, %9, %cst_5 [0] : vector<128x16xf32> to vector<16xf32>
    %11 = vector.shape_cast %10 : vector<16xf32> to vector<1x16xf32>
    %cst_6 = arith.constant 1.280000e+02 : f32
    %12 = vector.broadcast %cst_6 : f32 to vector<1x16xf32>
    %13 = arith.divf %11, %12 : vector<1x16xf32>
    %14 = vector.broadcast %6 : vector<1x16xf32> to vector<128x16xf32>
    %15 = arith.subf %2, %14 : vector<128x16xf32>
    %cst_7 = arith.constant 9.99999974E-6 : f32
    %16 = vector.broadcast %cst_7 : f32 to vector<1x16xf32>
    %17 = arith.addf %13, %16 : vector<1x16xf32>
    %18 = math.rsqrt %17 : vector<1x16xf32>
    %19 = vector.broadcast %18 : vector<1x16xf32> to vector<128x16xf32>
    %20 = arith.mulf %15, %19 : vector<128x16xf32>
    %c0_8 = arith.constant 0 : index
    %c0_9 = arith.constant 0 : index
    %21 = vector.load %arg2[%c0_8, %c0_9] : memref<1x16xf32, #tpu.memory_space<vmem>>, vector<1x16xf32>
    %22 = vector.broadcast %21 : vector<1x16xf32> to vector<128x16xf32>
    %23 = arith.mulf %20, %22 : vector<128x16xf32>
    %c0_10 = arith.constant 0 : index
    %c0_11 = arith.constant 0 : index
    %24 = vector.load %arg3[%c0_10, %c0_11] : memref<1x16xf32, #tpu.memory_space<vmem>>, vector<1x16xf32>
    %25 = vector.broadcast %24 : vector<1x16xf32> to vector<128x16xf32>
    %26 = arith.addf %23, %25 : vector<128x16xf32>
    %cst_12 = arith.constant 0.000000e+00 : f32
    %27 = vector.broadcast %cst_12 : f32 to vector<128x16xf32>
    %28 = arith.maximumf %26, %27 : vector<128x16xf32>
    %c0_13 = arith.constant 0 : index
    %c0_14 = arith.constant 0 : index
    %29 = vector.load %arg4[%c0_13, %c0_14] : memref<512x128xbf16, #tpu.memory_space<vmem>>, vector<512x128xbf16>
    %30 = arith.truncf %28 : vector<128x16xf32> to vector<128x16xbf16>
    %cst_15 = arith.constant dense<0.000000e+00> : vector<512x16xf32>
    %31 = tpu.matmul %29, %30, %cst_15 {dimension_numbers = #tpu.dot_dimension_numbers<[1], [0], [0], [1], [0, 0, 1, 1], [], []>} : vector<512x128xbf16>, vector<128x16xbf16>, vector<512x16xf32> -> vector<512x16xf32>
    %32 = vector.shape_cast %31 : vector<512x16xf32> to vector<16x32x16xf32>
    %33 = arith.truncf %32 : vector<16x32x16xf32> to vector<16x32x16xbf16>
    %c0_16 = arith.constant 0 : index
    %c0_17 = arith.constant 0 : index
    %c0_18 = arith.constant 0 : index
    %34 = vector.load %arg5[%c0_16, %c0_17, %c0_18] : memref<16x16x32xbf16, #tpu.memory_space<vmem>>, vector<16x16x32xbf16>
    %cst_19 = arith.constant dense<0.000000e+00> : vector<16x32x32xf32>
    %35 = tpu.matmul %33, %34, %cst_19 {dimension_numbers = #tpu.dot_dimension_numbers<[2], [1], [1], [2], [0, 0, 0, 1, 1, 2], [0], [0]>} : vector<16x32x16xbf16>, vector<16x16x32xbf16>, vector<16x32x32xf32> -> vector<16x32x32xf32>
    %cst_20 = arith.constant dense<0.000000e+00> : vector<32x32xf32>
    %36 = vector.multi_reduction <add>, %35, %cst_20 [0] : vector<16x32x32xf32> to vector<32x32xf32>
    %cst_21 = arith.constant dense<0.000000e+00> : vector<32xf32>
    %37 = vector.multi_reduction <add>, %36, %cst_21 [0] : vector<32x32xf32> to vector<32xf32>
    %38 = vector.shape_cast %37 : vector<32xf32> to vector<1x32xf32>
    %cst_22 = arith.constant 3.200000e+01 : f32
    %39 = vector.broadcast %cst_22 : f32 to vector<1x32xf32>
    %40 = arith.divf %38, %39 : vector<1x32xf32>
    %41 = vector.broadcast %40 : vector<1x32xf32> to vector<32x32xf32>
    %42 = arith.subf %36, %41 : vector<32x32xf32>
    %43 = arith.mulf %42, %42 : vector<32x32xf32>
    %cst_23 = arith.constant dense<0.000000e+00> : vector<32xf32>
    %44 = vector.multi_reduction <add>, %43, %cst_23 [0] : vector<32x32xf32> to vector<32xf32>
    %45 = vector.shape_cast %44 : vector<32xf32> to vector<1x32xf32>
    %cst_24 = arith.constant 3.200000e+01 : f32
    %46 = vector.broadcast %cst_24 : f32 to vector<1x32xf32>
    %47 = arith.divf %45, %46 : vector<1x32xf32>
    %48 = vector.broadcast %40 : vector<1x32xf32> to vector<32x32xf32>
    %49 = arith.subf %36, %48 : vector<32x32xf32>
    %cst_25 = arith.constant 9.99999974E-6 : f32
    %50 = vector.broadcast %cst_25 : f32 to vector<1x32xf32>
    %51 = arith.addf %47, %50 : vector<1x32xf32>
    %52 = math.rsqrt %51 : vector<1x32xf32>
    %53 = vector.broadcast %52 : vector<1x32xf32> to vector<32x32xf32>
    %54 = arith.mulf %49, %53 : vector<32x32xf32>
    %c0_26 = arith.constant 0 : index
    %c0_27 = arith.constant 0 : index
    %55 = vector.load %arg6[%c0_26, %c0_27] : memref<1x32xf32, #tpu.memory_space<vmem>>, vector<1x32xf32>
    %56 = vector.broadcast %55 : vector<1x32xf32> to vector<32x32xf32>
    %57 = arith.mulf %54, %56 : vector<32x32xf32>
    %c0_28 = arith.constant 0 : index
    %c0_29 = arith.constant 0 : index
    %58 = vector.load %arg7[%c0_28, %c0_29] : memref<1x32xf32, #tpu.memory_space<vmem>>, vector<1x32xf32>
    %59 = vector.broadcast %58 : vector<1x32xf32> to vector<32x32xf32>
    %60 = arith.addf %57, %59 : vector<32x32xf32>
    %cst_30 = arith.constant 0.000000e+00 : f32
    %61 = vector.broadcast %cst_30 : f32 to vector<32x32xf32>
    %62 = arith.maximumf %60, %61 : vector<32x32xf32>
    %c0_31 = arith.constant 0 : index
    %c0_32 = arith.constant 0 : index
    %63 = vector.load %arg8[%c0_31, %c0_32] : memref<128x32xbf16, #tpu.memory_space<vmem>>, vector<128x32xbf16>
    %64 = arith.truncf %62 : vector<32x32xf32> to vector<32x32xbf16>
    %cst_33 = arith.constant dense<0.000000e+00> : vector<128x32xf32>
    %65 = tpu.matmul %63, %64, %cst_33 {dimension_numbers = #tpu.dot_dimension_numbers<[1], [0], [0], [1], [0, 0, 1, 1], [], []>} : vector<128x32xbf16>, vector<32x32xbf16>, vector<128x32xf32> -> vector<128x32xf32>
    %66 = vector.shape_cast %65 : vector<128x32xf32> to vector<16x8x32xf32>
    %67 = arith.truncf %66 : vector<16x8x32xf32> to vector<16x8x32xbf16>
    %c0_34 = arith.constant 0 : index
    %c0_35 = arith.constant 0 : index
    %c0_36 = arith.constant 0 : index
    %68 = vector.load %arg9[%c0_34, %c0_35, %c0_36] : memref<16x32x64xbf16, #tpu.memory_space<vmem>>, vector<16x32x64xbf16>
    %cst_37 = arith.constant dense<0.000000e+00> : vector<16x8x64xf32>
    %69 = tpu.matmul %67, %68, %cst_37 {dimension_numbers = #tpu.dot_dimension_numbers<[2], [1], [1], [2], [0, 0, 0, 1, 1, 2], [0], [0]>} : vector<16x8x32xbf16>, vector<16x32x64xbf16>, vector<16x8x64xf32> -> vector<16x8x64xf32>
    %cst_38 = arith.constant dense<0.000000e+00> : vector<8x64xf32>
    %70 = vector.multi_reduction <add>, %69, %cst_38 [0] : vector<16x8x64xf32> to vector<8x64xf32>
    %cst_39 = arith.constant dense<0.000000e+00> : vector<64xf32>
    %71 = vector.multi_reduction <add>, %70, %cst_39 [0] : vector<8x64xf32> to vector<64xf32>
    %72 = vector.shape_cast %71 : vector<64xf32> to vector<1x64xf32>
    %cst_40 = arith.constant 8.000000e+00 : f32
    %73 = vector.broadcast %cst_40 : f32 to vector<1x64xf32>
    %74 = arith.divf %72, %73 : vector<1x64xf32>
    %75 = vector.broadcast %74 : vector<1x64xf32> to vector<8x64xf32>
    %76 = arith.subf %70, %75 : vector<8x64xf32>
    %77 = arith.mulf %76, %76 : vector<8x64xf32>
    %cst_41 = arith.constant dense<0.000000e+00> : vector<64xf32>
    %78 = vector.multi_reduction <add>, %77, %cst_41 [0] : vector<8x64xf32> to vector<64xf32>
    %79 = vector.shape_cast %78 : vector<64xf32> to vector<1x64xf32>
    %cst_42 = arith.constant 8.000000e+00 : f32
    %80 = vector.broadcast %cst_42 : f32 to vector<1x64xf32>
    %81 = arith.divf %79, %80 : vector<1x64xf32>
    %82 = vector.broadcast %74 : vector<1x64xf32> to vector<8x64xf32>
    %83 = arith.subf %70, %82 : vector<8x64xf32>
    %cst_43 = arith.constant 9.99999974E-6 : f32
    %84 = vector.broadcast %cst_43 : f32 to vector<1x64xf32>
    %85 = arith.addf %81, %84 : vector<1x64xf32>
    %86 = math.rsqrt %85 : vector<1x64xf32>
    %87 = vector.broadcast %86 : vector<1x64xf32> to vector<8x64xf32>
    %88 = arith.mulf %83, %87 : vector<8x64xf32>
    %c0_44 = arith.constant 0 : index
    %c0_45 = arith.constant 0 : index
    %89 = vector.load %arg10[%c0_44, %c0_45] : memref<1x64xf32, #tpu.memory_space<vmem>>, vector<1x64xf32>
    %90 = vector.broadcast %89 : vector<1x64xf32> to vector<8x64xf32>
    %91 = arith.mulf %88, %90 : vector<8x64xf32>
    %c0_46 = arith.constant 0 : index
    %c0_47 = arith.constant 0 : index
    %92 = vector.load %arg11[%c0_46, %c0_47] : memref<1x64xf32, #tpu.memory_space<vmem>>, vector<1x64xf32>
    %93 = vector.broadcast %92 : vector<1x64xf32> to vector<8x64xf32>
    %94 = arith.addf %91, %93 : vector<8x64xf32>
    %cst_48 = arith.constant 0.000000e+00 : f32
    %95 = vector.broadcast %cst_48 : f32 to vector<8x64xf32>
    %96 = arith.maximumf %94, %95 : vector<8x64xf32>
    %97 = arith.truncf %96 : vector<8x64xf32> to vector<8x64xbf16>
    %c0_49 = arith.constant 0 : index
    %c0_50 = arith.constant 0 : index
    %98 = vector.load %arg12[%c0_49, %c0_50] : memref<64x32xbf16, #tpu.memory_space<vmem>>, vector<64x32xbf16>
    %cst_51 = arith.constant dense<0.000000e+00> : vector<8x32xf32>
    %99 = tpu.matmul %97, %98, %cst_51 {dimension_numbers = #tpu.dot_dimension_numbers<[1], [0], [0], [1], [0, 0, 1, 1], [], []>} : vector<8x64xbf16>, vector<64x32xbf16>, vector<8x32xf32> -> vector<8x32xf32>
    %cst_52 = arith.constant dense<0.000000e+00> : vector<32xf32>
    %100 = vector.multi_reduction <add>, %99, %cst_52 [0] : vector<8x32xf32> to vector<32xf32>
    %101 = vector.shape_cast %100 : vector<32xf32> to vector<1x32xf32>
    %cst_53 = arith.constant 8.000000e+00 : f32
    %102 = vector.broadcast %cst_53 : f32 to vector<1x32xf32>
    %103 = arith.divf %101, %102 : vector<1x32xf32>
    %104 = vector.broadcast %103 : vector<1x32xf32> to vector<8x32xf32>
    %105 = arith.subf %99, %104 : vector<8x32xf32>
    %106 = arith.mulf %105, %105 : vector<8x32xf32>
    %cst_54 = arith.constant dense<0.000000e+00> : vector<32xf32>
    %107 = vector.multi_reduction <add>, %106, %cst_54 [0] : vector<8x32xf32> to vector<32xf32>
    %108 = vector.shape_cast %107 : vector<32xf32> to vector<1x32xf32>
    %cst_55 = arith.constant 8.000000e+00 : f32
    %109 = vector.broadcast %cst_55 : f32 to vector<1x32xf32>
    %110 = arith.divf %108, %109 : vector<1x32xf32>
    %111 = vector.broadcast %103 : vector<1x32xf32> to vector<8x32xf32>
    %112 = arith.subf %99, %111 : vector<8x32xf32>
    %cst_56 = arith.constant 9.99999974E-6 : f32
    %113 = vector.broadcast %cst_56 : f32 to vector<1x32xf32>
    %114 = arith.addf %110, %113 : vector<1x32xf32>
    %115 = math.rsqrt %114 : vector<1x32xf32>
    %116 = vector.broadcast %115 : vector<1x32xf32> to vector<8x32xf32>
    %117 = arith.mulf %112, %116 : vector<8x32xf32>
    %c0_57 = arith.constant 0 : index
    %c0_58 = arith.constant 0 : index
    %118 = vector.load %arg13[%c0_57, %c0_58] : memref<1x32xf32, #tpu.memory_space<vmem>>, vector<1x32xf32>
    %119 = vector.broadcast %118 : vector<1x32xf32> to vector<8x32xf32>
    %120 = arith.mulf %117, %119 : vector<8x32xf32>
    %c0_59 = arith.constant 0 : index
    %c0_60 = arith.constant 0 : index
    %121 = vector.load %arg14[%c0_59, %c0_60] : memref<1x32xf32, #tpu.memory_space<vmem>>, vector<1x32xf32>
    %122 = vector.broadcast %121 : vector<1x32xf32> to vector<8x32xf32>
    %123 = arith.addf %120, %122 : vector<8x32xf32>
    %124 = arith.mulf %123, %123 : vector<8x32xf32>
    %cst_61 = arith.constant dense<0.000000e+00> : vector<8xf32>
    %125 = vector.multi_reduction <add>, %124, %cst_61 [1] : vector<8x32xf32> to vector<8xf32>
    %126 = vector.shape_cast %125 : vector<8xf32> to vector<8x1xf32>
    %c0_62 = arith.constant 0 : index
    %c0_63 = arith.constant 0 : index
    %127 = vector.load %arg15[%c0_62, %c0_63] : memref<512x32xf32, #tpu.memory_space<vmem>>, vector<512x32xf32>
    %cst_64 = arith.constant dense<0.000000e+00> : vector<8x512xf32>
    %128 = tpu.matmul %123, %127, %cst_64 {dimension_numbers = #tpu.dot_dimension_numbers<[1], [1], [0], [0], [0, 0, 1, 0], [], []>} : vector<8x32xf32>, vector<512x32xf32>, vector<8x512xf32> -> vector<8x512xf32>
    %cst_65 = arith.constant 2.000000e+00 : f32
    %129 = vector.broadcast %cst_65 : f32 to vector<8x512xf32>
    %130 = arith.mulf %129, %128 : vector<8x512xf32>
    %131 = vector.broadcast %126 : vector<8x1xf32> to vector<8x512xf32>
    %132 = arith.subf %131, %130 : vector<8x512xf32>
    %c0_66 = arith.constant 0 : index
    %c0_67 = arith.constant 0 : index
    %133 = vector.load %arg16[%c0_66, %c0_67] : memref<1x512xf32, #tpu.memory_space<vmem>>, vector<1x512xf32>
    %134 = vector.broadcast %133 : vector<1x512xf32> to vector<8x512xf32>
    %135 = arith.addf %132, %134 : vector<8x512xf32>
    %cst_68 = arith.constant dense<0x7F800000> : vector<8xf32>
    %136 = vector.multi_reduction <minimumf>, %135, %cst_68 [1] : vector<8x512xf32> to vector<8xf32>
    %137 = vector.shape_cast %136 : vector<8xf32> to vector<8x1xf32>
    %138 = tpu.iota {dimensions = array<i32: 1>} : vector<8x512xi32>
    %139 = vector.broadcast %137 : vector<8x1xf32> to vector<8x512xf32>
    %140 = arith.cmpf oeq, %135, %139 : vector<8x512xf32>
    %c512_i32 = arith.constant 512 : i32
    %141 = vector.broadcast %c512_i32 : i32 to vector<8x512xi32>
    %142 = arith.select %140, %138, %141 : vector<8x512xi1>, vector<8x512xi32>
    %cst_69 = arith.constant dense<2147483647> : vector<8xi32>
    %143 = vector.multi_reduction <minsi>, %142, %cst_69 [1] : vector<8x512xi32> to vector<8xi32>
    %144 = vector.shape_cast %143 : vector<8xi32> to vector<8x1xi32>
    %145 = vector.broadcast %144 : vector<8x1xi32> to vector<8x512xi32>
    %146 = arith.cmpi eq, %138, %145 : vector<8x512xi32>
    %147 = arith.extui %146 : vector<8x512xi1> to vector<8x512xi32>
    %148 = arith.sitofp %147 : vector<8x512xi32> to vector<8x512xf32>
    %c0_70 = arith.constant 0 : index
    %c0_71 = arith.constant 0 : index
    %149 = vector.load %arg15[%c0_70, %c0_71] : memref<512x32xf32, #tpu.memory_space<vmem>>, vector<512x32xf32>
    %cst_72 = arith.constant dense<0.000000e+00> : vector<8x32xf32>
    %150 = tpu.matmul %148, %149, %cst_72 {dimension_numbers = #tpu.dot_dimension_numbers<[1], [0], [0], [1], [0, 0, 1, 1], [], []>} : vector<8x512xf32>, vector<512x32xf32>, vector<8x32xf32> -> vector<8x32xf32>
    %c0_73 = arith.constant 0 : index
    %c0_74 = arith.constant 0 : index
    %151 = vector.load %arg17[%c0_73, %c0_74] : memref<8x128xf32, #tpu.memory_space<vmem>>, vector<8x32xf32>
    tpu.vector_store %arg17[%c0_73, %c0_74], %123 {strides = array<i32>} : memref<8x128xf32, #tpu.memory_space<vmem>>, vector<8x32xf32>,
    %c0_75 = arith.constant 0 : index
    %c32 = arith.constant 32 : index
    %152 = vector.load %arg17[%c0_75, %c32] : memref<8x128xf32, #tpu.memory_space<vmem>>, vector<8x32xf32>
    tpu.vector_store %arg17[%c0_75, %c32], %150 {strides = array<i32>} : memref<8x128xf32, #tpu.memory_space<vmem>>, vector<8x32xf32>,
    %153 = arith.sitofp %144 : vector<8x1xi32> to vector<8x1xf32>
    %154 = vector.shape_cast %153 : vector<8x1xf32> to vector<8x1xf32>
    %155 = vector.broadcast %154 : vector<8x1xf32> to vector<8x64xf32>
    %c0_76 = arith.constant 0 : index
    %c64 = arith.constant 64 : index
    %156 = vector.load %arg17[%c0_76, %c64] : memref<8x128xf32, #tpu.memory_space<vmem>>, vector<8x64xf32>
    tpu.vector_store %arg17[%c0_76, %c64], %155 {strides = array<i32>} : memref<8x128xf32, #tpu.memory_space<vmem>>, vector<8x64xf32>,
    return
  }
}

</mosaic_0001>

<llo_original>
// kernel: vqvae_encoder_forward.1
$region0: #{vqvae_encoder_forward.1}
  #allocation0 [shape = 'u32[]', space=smem, size = 0x4, offset = 0x4, fixed_abs, tag = 'smem constant byte address 0x4 - core index']
  #allocation1 [shape = 'u32[144,128]{1,0:T(1,128)}', space=vmem, size = 0x12000, scoped, tag = 'internal scratch']
  %s0 = inlined_call_operand.vmem [shape: bf16[128,16], index: 0, kind: input, shape index: {}]
  %s1 = inlined_call_operand.vmem [shape: bf16[16,16], index: 1, kind: input, shape index: {}]
  %s2 = inlined_call_operand.vmem [shape: f32[1,16], index: 2, kind: input, shape index: {}]
  %s3 = inlined_call_operand.vmem [shape: f32[1,16], index: 3, kind: input, shape index: {}]
  %s4 = inlined_call_operand.hbm [shape: bf16[512,128], index: 4, kind: input, shape index: {}]
  %s5 = inlined_call_operand.hbm [shape: bf16[16,16,32], index: 5, kind: input, shape index: {}]
  %s6 = inlined_call_operand.vmem [shape: f32[1,32], index: 6, kind: input, shape index: {}, may-alias: {6,13}]
  %s7 = inlined_call_operand.vmem [shape: f32[1,32], index: 7, kind: input, shape index: {}, may-alias: {7,14}]
  %s8 = inlined_call_operand.vmem [shape: bf16[128,32], index: 8, kind: input, shape index: {}]
  %s9 = inlined_call_operand.vmem [shape: bf16[16,32,64], index: 9, kind: input, shape index: {}]
  %s10 = inlined_call_operand.vmem [shape: f32[1,64], index: 10, kind: input, shape index: {}]
  %s11 = inlined_call_operand.vmem [shape: f32[1,64], index: 11, kind: input, shape index: {}]
  %s12 = inlined_call_operand.hbm [shape: bf16[64,32], index: 12, kind: input, shape index: {}]
  %s13 = inlined_call_operand.vmem [shape: f32[1,32], index: 13, kind: input, shape index: {}, may-alias: {6,13}]
  %s14 = inlined_call_operand.vmem [shape: f32[1,32], index: 14, kind: input, shape index: {}, may-alias: {7,14}]
  %s15 = inlined_call_operand.vmem [shape: f32[512,32], index: 15, kind: input, shape index: {}]
  %s16 = inlined_call_operand.hbm [shape: f32[1,512], index: 16, kind: input, shape index: {}]
  %s17 = inlined_call_operand.vmem [shape: f32[8,128], index: 17, kind: output, shape index: {}]
  %s18 = sld [smem:[#allocation0]]
  $region94: #{vqvae_encoder_forward.1} parent=0
    _
  %s20 = ssub.s32 1, %s18
  %s21 = scalar_select 0, %s20, %s18
  $region1: #{vqvae_encoder_forward.1} parent=0
    #allocation2 [shape = 'u8[131072]{0}', space=vmem, size = 0x20000, scoped, tag = 'input window, operand 4, single buffered']
    #allocation3 [shape = 's32[1]{0}', space=sflag, size = 0x4, scoped, tag = 'scoped memory for vqvae_encoder_forward.1']
    #allocation4 [shape = 'u8[65536]{0}', space=vmem, size = 0x10000, scoped, tag = 'input window, operand 5, single buffered']
    #allocation5 [shape = 's32[1]{0}', space=sflag, size = 0x4, scoped, tag = 'scoped memory for vqvae_encoder_forward.1']
    #allocation6 [shape = 'u8[16384]{0}', space=vmem, size = 0x4000, scoped, tag = 'input window, operand 12, single buffered']
    #allocation7 [shape = 'u8[2048]{0}', space=vmem, size = 0x800, scoped, tag = 'input window, operand 16, single buffered']
    #allocation8 [shape = 's32[1]{0}', space=sflag, size = 0x4, scoped, tag = 'scoped memory for vqvae_encoder_forward.1']
    %22 = vsyncpa [#allocation3], 0
    %23 = vsyncpa [#allocation5], 0
    %24 = vsyncpa [#allocation8], 0
    // Predicated region
    $region2: #{vqvae_encoder_forward.1} parent=1 // pred_check
      _
    $region3: #{vqvae_encoder_forward.1} parent=1 // pred_check_branch
      %26 = sbr.rel (0) target = $region5
    $region4: #{vqvae_encoder_forward.1} parent=1 // pred_region
      _
    $region5: #{vqvae_encoder_forward.1} parent=1 // pred_fallthru
      _
    // Predicated region
    $region6: #{vqvae_encoder_forward.1} parent=1 // pred_check
      _
    $region7: #{vqvae_encoder_forward.1} parent=1 // pred_check_branch
      %28 = sbr.rel (0) target = $region9
    $region8: #{vqvae_encoder_forward.1} parent=1 // pred_region
      _
    $region9: #{vqvae_encoder_forward.1} parent=1 // pred_fallthru
      _
    // Predicated region
    $region10: #{vqvae_encoder_forward.1} parent=1 // pred_check
      _
    $region11: #{vqvae_encoder_forward.1} parent=1 // pred_check_branch
      %30 = sbr.rel (0) target = $region13
    $region12: #{vqvae_encoder_forward.1} parent=1 // pred_region
      _
    $region13: #{vqvae_encoder_forward.1} parent=1 // pred_fallthru
      _
    // Predicated region
    $region14: #{vqvae_encoder_forward.1} parent=1 // pred_check
      _
    $region15: #{vqvae_encoder_forward.1} parent=1 // pred_check_branch
      %32 = sbr.rel (0) target = $region17
    $region16: #{vqvae_encoder_forward.1} parent=1 // pred_region
      _
    $region17: #{vqvae_encoder_forward.1} parent=1 // pred_fallthru
      _
    // Predicated region
    $region18: #{vqvae_encoder_forward.1} parent=1 // pred_check
      _
    $region19: #{vqvae_encoder_forward.1} parent=1 // pred_check_branch
      %34 = sbr.rel (0) target = $region21
    $region20: #{vqvae_encoder_forward.1} parent=1 // pred_region
      %s36 = ssub.s32 4096, 4096
      %37 = vsyncadd [#allocation3], %s36
      %s38 = sshll.u32 [#allocation2], 4
      %s39 = int_to_ptr.vmem [resolvable:$true] %s38
      %44 = dma.hbm_to_vmem [thread:$0]  %s4, 4096, %s39, [#allocation3], 64, 64, 4
    $region21: #{vqvae_encoder_forward.1} parent=1 // pred_fallthru
      _
    // Predicated region
    $region22: #{vqvae_encoder_forward.1} parent=1 // pred_check
      _
    $region23: #{vqvae_encoder_forward.1} parent=1 // pred_check_branch
      %46 = sbr.rel (0) target = $region25
    $region24: #{vqvae_encoder_forward.1} parent=1 // pred_region
      %s48 = ssub.s32 2048, 2048
      %49 = vsyncadd [#allocation5], %s48
      %s50 = sshll.u32 [#allocation4], 4
      %s51 = int_to_ptr.vmem [resolvable:$true] %s50
      %56 = dma.hbm_to_vmem [thread:$0]  %s5, 2048, %s51, [#allocation5], 64, 64, 4
    $region25: #{vqvae_encoder_forward.1} parent=1 // pred_fallthru
      _
    // Predicated region
    $region26: #{vqvae_encoder_forward.1} parent=1 // pred_check
      _
    $region27: #{vqvae_encoder_forward.1} parent=1 // pred_check_branch
      %58 = sbr.rel (0) target = $region29
    $region28: #{vqvae_encoder_forward.1} parent=1 // pred_region
      _
    $region29: #{vqvae_encoder_forward.1} parent=1 // pred_fallthru
      _
    // Predicated region
    $region30: #{vqvae_encoder_forward.1} parent=1 // pred_check
      _
    $region31: #{vqvae_encoder_forward.1} parent=1 // pred_check_branch
      %60 = sbr.rel (0) target = $region33
    $region32: #{vqvae_encoder_forward.1} parent=1 // pred_region
      _
    $region33: #{vqvae_encoder_forward.1} parent=1 // pred_fallthru
      _
    // Predicated region
    $region34: #{vqvae_encoder_forward.1} parent=1 // pred_check
      _
    $region35: #{vqvae_encoder_forward.1} parent=1 // pred_check_branch
      %62 = sbr.rel (0) target = $region37
    $region36: #{vqvae_encoder_forward.1} parent=1 // pred_region
      _
    $region37: #{vqvae_encoder_forward.1} parent=1 // pred_fallthru
      _
    // Predicated region
    $region38: #{vqvae_encoder_forward.1} parent=1 // pred_check
      _
    $region39: #{vqvae_encoder_forward.1} parent=1 // pred_check_branch
      %64 = sbr.rel (0) target = $region41
    $region40: #{vqvae_encoder_forward.1} parent=1 // pred_region
      _
    $region41: #{vqvae_encoder_forward.1} parent=1 // pred_fallthru
      _
    // Predicated region
    $region42: #{vqvae_encoder_forward.1} parent=1 // pred_check
      _
    $region43: #{vqvae_encoder_forward.1} parent=1 // pred_check_branch
      %66 = sbr.rel (0) target = $region45
    $region44: #{vqvae_encoder_forward.1} parent=1 // pred_region
      _
    $region45: #{vqvae_encoder_forward.1} parent=1 // pred_fallthru
      _
    // Predicated region
    $region46: #{vqvae_encoder_forward.1} parent=1 // pred_check
      _
    $region47: #{vqvae_encoder_forward.1} parent=1 // pred_check_branch
      %68 = sbr.rel (0) target = $region49
    $region48: #{vqvae_encoder_forward.1} parent=1 // pred_region
      _
    $region49: #{vqvae_encoder_forward.1} parent=1 // pred_fallthru
      _
    // Predicated region
    $region50: #{vqvae_encoder_forward.1} parent=1 // pred_check
      _
    $region51: #{vqvae_encoder_forward.1} parent=1 // pred_check_branch
      %70 = sbr.rel (0) target = $region53
    $region52: #{vqvae_encoder_forward.1} parent=1 // pred_region
      %s72 = ssub.s32 512, 512
      %73 = vsyncadd [#allocation5], %s72
      %s74 = sshll.u32 [#allocation6], 4
      %s75 = int_to_ptr.vmem [resolvable:$true] %s74
      %80 = dma.hbm_to_vmem [thread:$0]  %s12, 512, %s75, [#allocation5], 64, 64, 4
    $region53: #{vqvae_encoder_forward.1} parent=1 // pred_fallthru
      _
    // Predicated region
    $region54: #{vqvae_encoder_forward.1} parent=1 // pred_check
      _
    $region55: #{vqvae_encoder_forward.1} parent=1 // pred_check_branch
      %82 = sbr.rel (0) target = $region57
    $region56: #{vqvae_encoder_forward.1} parent=1 // pred_region
      _
    $region57: #{vqvae_encoder_forward.1} parent=1 // pred_fallthru
      _
    // Predicated region
    $region58: #{vqvae_encoder_forward.1} parent=1 // pred_check
      _
    $region59: #{vqvae_encoder_forward.1} parent=1 // pred_check_branch
      %84 = sbr.rel (0) target = $region61
    $region60: #{vqvae_encoder_forward.1} parent=1 // pred_region
      _
    $region61: #{vqvae_encoder_forward.1} parent=1 // pred_fallthru
      _
    // Predicated region
    $region62: #{vqvae_encoder_forward.1} parent=1 // pred_check
      _
    $region63: #{vqvae_encoder_forward.1} parent=1 // pred_check_branch
      %86 = sbr.rel (0) target = $region65
    $region64: #{vqvae_encoder_forward.1} parent=1 // pred_region
      _
    $region65: #{vqvae_encoder_forward.1} parent=1 // pred_fallthru
      _
    // Predicated region
    $region66: #{vqvae_encoder_forward.1} parent=1 // pred_check
      _
    $region67: #{vqvae_encoder_forward.1} parent=1 // pred_check_branch
      %88 = sbr.rel (0) target = $region69
    $region68: #{vqvae_encoder_forward.1} parent=1 // pred_region
      %s90 = ssub.s32 64, 64
      %91 = vsyncadd [#allocation8], %s90
      %s93 = sshll.u32 [#allocation7], 4
      %s94 = int_to_ptr.vmem [resolvable:$true] %s93
      %96 = dma.hbm_to_vmem [thread:$0]  %s16, 64, %s94, [#allocation8]
    $region69: #{vqvae_encoder_forward.1} parent=1 // pred_fallthru
      _
    // Predicated region
    $region70: #{vqvae_encoder_forward.1} parent=1 // pred_check
      _
    $region71: #{vqvae_encoder_forward.1} parent=1 // pred_check_branch
      %98 = sbr.rel (0) target = $region73
    $region72: #{vqvae_encoder_forward.1} parent=1 // pred_region
      %99 = dma.done [#allocation3], 4096
    $region73: #{vqvae_encoder_forward.1} parent=1 // pred_fallthru
      _
    // Predicated region
    $region74: #{vqvae_encoder_forward.1} parent=1 // pred_check
      _
    $region75: #{vqvae_encoder_forward.1} parent=1 // pred_check_branch
      %101 = sbr.rel (0) target = $region77
    $region76: #{vqvae_encoder_forward.1} parent=1 // pred_region
      %102 = dma.done [#allocation5], 2048
    $region77: #{vqvae_encoder_forward.1} parent=1 // pred_fallthru
      _
    // Predicated region
    $region78: #{vqvae_encoder_forward.1} parent=1 // pred_check
      _
    $region79: #{vqvae_encoder_forward.1} parent=1 // pred_check_branch
      %104 = sbr.rel (0) target = $region81
    $region80: #{vqvae_encoder_forward.1} parent=1 // pred_region
      %105 = dma.done [#allocation5], 512
    $region81: #{vqvae_encoder_forward.1} parent=1 // pred_fallthru
      _
    // Predicated region
    $region82: #{vqvae_encoder_forward.1} parent=1 // pred_check
      _
    $region83: #{vqvae_encoder_forward.1} parent=1 // pred_check_branch
      %107 = sbr.rel (0) target = $region85
    $region84: #{vqvae_encoder_forward.1} parent=1 // pred_region
      %108 = dma.done [#allocation8], 64
    $region85: #{vqvae_encoder_forward.1} parent=1 // pred_fallthru
      _
    %v110 = vld [vmem:[%s0] sm:$0xf]
    %v111 = vld [vmem:[%s0 + $0x4] sm:$0xf]
    %v112 = vld [vmem:[%s0 + $0x8] sm:$0xf]
    %v113 = vld [vmem:[%s0 + $0xc] sm:$0xf]
    %v114 = vld [vmem:[%s0 + $0x10] sm:$0xf]
    %v115 = vld [vmem:[%s0 + $0x14] sm:$0xf]
    %v116 = vld [vmem:[%s0 + $0x18] sm:$0xf]
    %v117 = vld [vmem:[%s0 + $0x1c] sm:$0xf]
    %v118 = vld [vmem:[%s0 + $0x20] sm:$0xf]
    %v119 = vld [vmem:[%s0 + $0x24] sm:$0xf]
    %v120 = vld [vmem:[%s0 + $0x28] sm:$0xf]
    %v121 = vld [vmem:[%s0 + $0x2c] sm:$0xf]
    %v122 = vld [vmem:[%s0 + $0x30] sm:$0xf]
    %v123 = vld [vmem:[%s0 + $0x34] sm:$0xf]
    %v124 = vld [vmem:[%s0 + $0x38] sm:$0xf]
    %v125 = vld [vmem:[%s0 + $0x3c] sm:$0xf]
    %v126 = vld [vmem:[%s1] sm:$0xf]
    %v127 = vld [vmem:[%s1 + $0x4] sm:$0xf]
    %v144 = vunpack.c.l.b16 %v110
    %v145 = vunpack.c.l.b16 %v111
    %v146 = vunpack.c.l.b16 %v112
    %v147 = vunpack.c.l.b16 %v113
    %v148 = vunpack.c.l.b16 %v114
    %v149 = vunpack.c.l.b16 %v115
    %v150 = vunpack.c.l.b16 %v116
    %v151 = vunpack.c.l.b16 %v117
    %v152 = vunpack.c.l.b16 %v118
    %v153 = vunpack.c.l.b16 %v119
    %v154 = vunpack.c.l.b16 %v120
    %v155 = vunpack.c.l.b16 %v121
    %v156 = vunpack.c.l.b16 %v122
    %v157 = vunpack.c.l.b16 %v123
    %v158 = vunpack.c.l.b16 %v124
    %v159 = vunpack.c.l.b16 %v125
    %v160 = vpack.c.b16 %v145, %v144
    %v161 = vpack.c.b16 %v147, %v146
    %v162 = vpack.c.b16 %v149, %v148
    %v163 = vpack.c.b16 %v151, %v150
    %v164 = vpack.c.b16 %v153, %v152
    %v165 = vpack.c.b16 %v155, %v154
    %v166 = vpack.c.b16 %v157, %v156
    %v167 = vpack.c.b16 %v159, %v158
    %v170 = vunpack.c.l.b16 %v126
    %v171 = vunpack.c.l.b16 %v127
    %v172 = vpack.c.b16 %v171, %v170
    %vm174 = vcmask 130048
    %v176 = vsel %vm174, %v160, 0
    %v179 = vsel %vm174, %v161, 0
    %v182 = vsel %vm174, %v162, 0
    %v185 = vsel %vm174, %v163, 0
    %v188 = vsel %vm174, %v164, 0
    %v191 = vsel %vm174, %v165, 0
    %v194 = vsel %vm174, %v166, 0
    %v197 = vsel %vm174, %v167, 0
    %199 = vmatprep.subr.bf16.mxu0 0
    %200 = vmatpush1.bf16.msra.mxu0 %v172
    %201 = vmatprep.subr.bf16.mxu0 0
    %202 = vmatpush1.bf16.msra.mxu0 0
    %203 = vmatprep.subr.bf16.mxu0 0
    %204 = vmatpush1.bf16.msra.mxu0 0
    %205 = vmatprep.subr.bf16.mxu0 0
    %206 = vmatpush1.bf16.msra.mxu0 0
    %207 = vmatprep.subr.bf16.mxu0 0
    %208 = vmatpush1.bf16.msra.mxu0 0
    %209 = vmatprep.subr.bf16.mxu0 0
    %210 = vmatpush1.bf16.msra.mxu0 0
    %211 = vmatprep.subr.bf16.mxu0 0
    %212 = vmatpush1.bf16.msra.mxu0 0
    %213 = vmatprep.subr.bf16.mxu0 0
    %214 = vmatpush1.bf16.msra.mxu0 0
    %215 = vmatprep.subr.bf16.mxu0 0
    %216 = vmatpush1.bf16.msra.mxu0 0
    %217 = vmatprep.subr.bf16.mxu0 0
    %218 = vmatpush1.bf16.msra.mxu0 0
    %219 = vmatprep.subr.bf16.mxu0 0
    %220 = vmatpush1.bf16.msra.mxu0 0
    %221 = vmatprep.subr.bf16.mxu0 0
    %222 = vmatpush1.bf16.msra.mxu0 0
    %223 = vmatprep.subr.bf16.mxu0 0
    %224 = vmatpush1.bf16.msra.mxu0 0
    %225 = vmatprep.subr.bf16.mxu0 0
    %226 = vmatpush1.bf16.msra.mxu0 0
    %227 = vmatprep.subr.bf16.mxu0 0
    %228 = vmatpush1.bf16.msra.mxu0 0
    %229 = vmatprep.subr.bf16.mxu0 0
    %230 = vmatpush1.bf16.msra.mxu0 0
    %231 = vmatprep.mubr.bf16.mxu0 0
    %232 = vmatmul.mubr.bf16.gmra.mrb[0].mxu0 %v176
    %v233 = vpop.f32.mrb[0].mxu0
    %v234 = vadd.f32 0.0, %v233
    %v235 = vpop.f32.mrb[0].mxu0
    %v236 = vpop.f32.mrb[0].mxu0
    %v237 = vadd.f32 0.0, %v236
    %v238 = vpop.f32.mrb[0].mxu0
    %239 = vmatprep.mubr.bf16.mxu0 0
    %240 = vmatmul.mubr.bf16.gmra.mrb[0].mxu0 %v179
    %v241 = vpop.f32.mrb[0].mxu0
    %v242 = vadd.f32 0.0, %v241
    %v243 = vpop.f32.mrb[0].mxu0
    %v244 = vpop.f32.mrb[0].mxu0
    %v245 = vadd.f32 0.0, %v244
    %v246 = vpop.f32.mrb[0].mxu0
    %247 = vmatprep.mubr.bf16.mxu0 0
    %248 = vmatmul.mubr.bf16.gmra.mrb[0].mxu0 %v182
    %v249 = vpop.f32.mrb[0].mxu0
    %v250 = vadd.f32 0.0, %v249
    %v251 = vpop.f32.mrb[0].mxu0
    %v252 = vpop.f32.mrb[0].mxu0
    %v253 = vadd.f32 0.0, %v252
    %v254 = vpop.f32.mrb[0].mxu0
    %255 = vmatprep.mubr.bf16.mxu0 0
    %256 = vmatmul.mubr.bf16.gmra.mrb[0].mxu0 %v185
    %v257 = vpop.f32.mrb[0].mxu0
    %v258 = vadd.f32 0.0, %v257
    %v259 = vpop.f32.mrb[0].mxu0
    %v260 = vpop.f32.mrb[0].mxu0
    %v261 = vadd.f32 0.0, %v260
    %v262 = vpop.f32.mrb[0].mxu0
    %263 = vmatprep.mubr.bf16.mxu0 0
    %264 = vmatmul.mubr.bf16.gmra.mrb[0].mxu0 %v188
    %v265 = vpop.f32.mrb[0].mxu0
    %v266 = vadd.f32 0.0, %v265
    %v267 = vpop.f32.mrb[0].mxu0
    %v268 = vpop.f32.mrb[0].mxu0
    %v269 = vadd.f32 0.0, %v268
    %v270 = vpop.f32.mrb[0].mxu0
    %271 = vmatprep.mubr.bf16.mxu0 0
    %272 = vmatmul.mubr.bf16.gmra.mrb[0].mxu0 %v191
    %v273 = vpop.f32.mrb[0].mxu0
    %v274 = vadd.f32 0.0, %v273
    %v275 = vpop.f32.mrb[0].mxu0
    %v276 = vpop.f32.mrb[0].mxu0
    %v277 = vadd.f32 0.0, %v276
    %v278 = vpop.f32.mrb[0].mxu0
    %279 = vmatprep.mubr.bf16.mxu0 0
    %280 = vmatmul.mubr.bf16.gmra.mrb[0].mxu0 %v194
    %v281 = vpop.f32.mrb[0].mxu0
    %v282 = vadd.f32 0.0, %v281
    %v283 = vpop.f32.mrb[0].mxu0
    %v284 = vpop.f32.mrb[0].mxu0
    %v285 = vadd.f32 0.0, %v284
    %v286 = vpop.f32.mrb[0].mxu0
    %287 = vmatprep.mubr.bf16.mxu0 0
    %288 = vmatmul.mubr.bf16.gmra.mrb[0].mxu0 %v197
    %v289 = vpop.f32.mrb[0].mxu0
    %v290 = vadd.f32 0.0, %v289
    %v291 = vpop.f32.mrb[0].mxu0
    %v292 = vpop.f32.mrb[0].mxu0
    %v293 = vadd.f32 0.0, %v292
    %v294 = vpop.f32.mrb[0].mxu0
    %295 = vdwg.mxu0
    %v296 = vsel %vm174, %v234, 0.0
    %v297 = vsel %vm174, %v237, 0.0
    %v298 = vadd.f32 %v296, %v297
    %v299 = vsel %vm174, %v242, 0.0
    %v300 = vadd.f32 %v298, %v299
    %v301 = vsel %vm174, %v245, 0.0
    %v302 = vadd.f32 %v300, %v301
    %v303 = vsel %vm174, %v250, 0.0
    %v304 = vadd.f32 %v302, %v303
    %v305 = vsel %vm174, %v253, 0.0
    %v306 = vadd.f32 %v304, %v305
    %v307 = vsel %vm174, %v258, 0.0
    %v308 = vadd.f32 %v306, %v307
    %v309 = vsel %vm174, %v261, 0.0
    %v310 = vadd.f32 %v308, %v309
    %v311 = vsel %vm174, %v266, 0.0
    %v312 = vadd.f32 %v310, %v311
    %v313 = vsel %vm174, %v269, 0.0
    %v314 = vadd.f32 %v312, %v313
    %v315 = vsel %vm174, %v274, 0.0
    %v316 = vadd.f32 %v314, %v315
    %v317 = vsel %vm174, %v277, 0.0
    %v318 = vadd.f32 %v316, %v317
    %v319 = vsel %vm174, %v282, 0.0
    %v320 = vadd.f32 %v318, %v319
    %v321 = vsel %vm174, %v285, 0.0
    %v322 = vadd.f32 %v320, %v321
    %v323 = vsel %vm174, %v290, 0.0
    %v324 = vadd.f32 %v322, %v323
    %v325 = vsel %vm174, %v293, 0.0
    %v326 = vadd.f32 %v324, %v325
    %v327 = vrot.slane %v326, 4
    %v328 = vadd.f32 %v326, %v327
    %v329 = vrot.slane %v328, 2
    %v330 = vadd.f32 %v328, %v329
    %v331 = vrot.slane %v330, 1
    %v332 = vadd.f32 %v330, %v331
    %v333 = vrcp.pop 128.0
    %v334 = vmul.f32 %v332, %v333
    %v335 = vsub.f32 %v234, %v334
    %v336 = vsub.f32 %v237, %v334
    %v337 = vsub.f32 %v242, %v334
    %v338 = vsub.f32 %v245, %v334
    %v339 = vsub.f32 %v250, %v334
    %v340 = vsub.f32 %v253, %v334
    %v341 = vsub.f32 %v258, %v334
    %v342 = vsub.f32 %v261, %v334
    %v343 = vsub.f32 %v266, %v334
    %v344 = vsub.f32 %v269, %v334
    %v345 = vsub.f32 %v274, %v334
    %v346 = vsub.f32 %v277, %v334
    %v347 = vsub.f32 %v282, %v334
    %v348 = vsub.f32 %v285, %v334
    %v349 = vsub.f32 %v290, %v334
    %v350 = vsub.f32 %v293, %v334
    %v351 = vmul.f32 %v335, %v335
    %v352 = vmul.f32 %v336, %v336
    %v353 = vmul.f32 %v337, %v337
    %v354 = vmul.f32 %v338, %v338
    %v355 = vmul.f32 %v339, %v339
    %v356 = vmul.f32 %v340, %v340
    %v357 = vmul.f32 %v341, %v341
    %v358 = vmul.f32 %v342, %v342
    %v359 = vmul.f32 %v343, %v343
    %v360 = vmul.f32 %v344, %v344
    %v361 = vmul.f32 %v345, %v345
    %v362 = vmul.f32 %v346, %v346
    %v363 = vmul.f32 %v347, %v347
    %v364 = vmul.f32 %v348, %v348
    %v365 = vmul.f32 %v349, %v349
    %v366 = vmul.f32 %v350, %v350
    %v367 = vsel %vm174, %v351, 0.0
    %v368 = vsel %vm174, %v352, 0.0
    %v369 = vadd.f32 %v367, %v368
    %v370 = vsel %vm174, %v353, 0.0
    %v371 = vadd.f32 %v369, %v370
    %v372 = vsel %vm174, %v354, 0.0
    %v373 = vadd.f32 %v371, %v372
    %v374 = vsel %vm174, %v355, 0.0
    %v375 = vadd.f32 %v373, %v374
    %v376 = vsel %vm174, %v356, 0.0
    %v377 = vadd.f32 %v375, %v376
    %v378 = vsel %vm174, %v357, 0.0
    %v379 = vadd.f32 %v377, %v378
    %v380 = vsel %vm174, %v358, 0.0
    %v381 = vadd.f32 %v379, %v380
    %v382 = vsel %vm174, %v359, 0.0
    %v383 = vadd.f32 %v381, %v382
    %v384 = vsel %vm174, %v360, 0.0
    %v385 = vadd.f32 %v383, %v384
    %v386 = vsel %vm174, %v361, 0.0
    %v387 = vadd.f32 %v385, %v386
    %v388 = vsel %vm174, %v362, 0.0
    %v389 = vadd.f32 %v387, %v388
    %v390 = vsel %vm174, %v363, 0.0
    %v391 = vadd.f32 %v389, %v390
    %v392 = vsel %vm174, %v364, 0.0
    %v393 = vadd.f32 %v391, %v392
    %v394 = vsel %vm174, %v365, 0.0
    %v395 = vadd.f32 %v393, %v394
    %v396 = vsel %vm174, %v366, 0.0
    %v397 = vadd.f32 %v395, %v396
    %v398 = vrot.slane %v397, 4
    %v399 = vadd.f32 %v397, %v398
    %v400 = vrot.slane %v399, 2
    %v401 = vadd.f32 %v399, %v400
    %v402 = vrot.slane %v401, 1
    %v403 = vadd.f32 %v401, %v402
    %v404 = vmul.f32 %v403, %v333
    %v405 = vadd.f32 %v404, 1e-05
    %v406 = vrsqrt.pop %v405
    %v407 = vmul.f32 %v335, %v406
    %v408 = vmul.f32 %v336, %v406
    %v409 = vmul.f32 %v337, %v406
    %v410 = vmul.f32 %v338, %v406
    %v411 = vmul.f32 %v339, %v406
    %v412 = vmul.f32 %v340, %v406
    %v413 = vmul.f32 %v341, %v406
    %v414 = vmul.f32 %v342, %v406
    %v415 = vmul.f32 %v343, %v406
    %v416 = vmul.f32 %v344, %v406
    %v417 = vmul.f32 %v345, %v406
    %v418 = vmul.f32 %v346, %v406
    %v419 = vmul.f32 %v347, %v406
    %v420 = vmul.f32 %v348, %v406
    %v421 = vmul.f32 %v349, %v406
    %v422 = vmul.f32 %v350, %v406
    %v423 = vld [vmem:[%s2] sm:$0x1]
    %v425 = vlaneseq
    %v426 = vshrl.u32 %v425, 7
    %v427 = vsub.s32 0, %v426
    %v428 = vrot.slane %v423, %v427
    %v430 = vmul.f32 %v407, %v428
    %v431 = vmul.f32 %v408, %v428
    %v432 = vmul.f32 %v409, %v428
    %v433 = vmul.f32 %v410, %v428
    %v434 = vmul.f32 %v411, %v428
    %v435 = vmul.f32 %v412, %v428
    %v436 = vmul.f32 %v413, %v428
    %v437 = vmul.f32 %v414, %v428
    %v438 = vmul.f32 %v415, %v428
    %v439 = vmul.f32 %v416, %v428
    %v440 = vmul.f32 %v417, %v428
    %v441 = vmul.f32 %v418, %v428
    %v442 = vmul.f32 %v419, %v428
    %v443 = vmul.f32 %v420, %v428
    %v444 = vmul.f32 %v421, %v428
    %v445 = vmul.f32 %v422, %v428
    %v446 = vld [vmem:[%s3] sm:$0x1]
    %v448 = vlaneseq
    %v449 = vshrl.u32 %v448, 7
    %v450 = vsub.s32 0, %v449
    %v451 = vrot.slane %v446, %v450
    %v453 = vadd.f32 %v430, %v451
    %v454 = vadd.f32 %v431, %v451
    %v455 = vadd.f32 %v432, %v451
    %v456 = vadd.f32 %v433, %v451
    %v457 = vadd.f32 %v434, %v451
    %v458 = vadd.f32 %v435, %v451
    %v459 = vadd.f32 %v436, %v451
    %v460 = vadd.f32 %v437, %v451
    %v461 = vadd.f32 %v438, %v451
    %v462 = vadd.f32 %v439, %v451
    %v463 = vadd.f32 %v440, %v451
    %v464 = vadd.f32 %v441, %v451
    %v465 = vadd.f32 %v442, %v451
    %v466 = vadd.f32 %v443, %v451
    %v467 = vadd.f32 %v444, %v451
    %v468 = vadd.f32 %v445, %v451
    %v469 = vmax.f32 %v453, 0.0
    %v470 = vmax.f32 %v454, 0.0
    %v471 = vmax.f32 %v455, 0.0
    %v472 = vmax.f32 %v456, 0.0
    %v473 = vmax.f32 %v457, 0.0
    %v474 = vmax.f32 %v458, 0.0
    %v475 = vmax.f32 %v459, 0.0
    %v476 = vmax.f32 %v460, 0.0
    %v477 = vmax.f32 %v461, 0.0
    %v478 = vmax.f32 %v462, 0.0
    %v479 = vmax.f32 %v463, 0.0
    %v480 = vmax.f32 %v464, 0.0
    %v481 = vmax.f32 %v465, 0.0
    %v482 = vmax.f32 %v466, 0.0
    %v483 = vmax.f32 %v467, 0.0
    %v484 = vmax.f32 %v468, 0.0
    %v485 = vld [vmem:[#allocation2] sm:$0xf]
    %v486 = vld [vmem:[#allocation2 + $0x4] sm:$0xf]
    %v487 = vld [vmem:[#allocation2 + $0x8] sm:$0xf]
    %v488 = vld [vmem:[#allocation2 + $0xc] sm:$0xf]
    %v489 = vld [vmem:[#allocation2 + $0x10] sm:$0xf]
    %v490 = vld [vmem:[#allocation2 + $0x14] sm:$0xf]
    %v491 = vld [vmem:[#allocation2 + $0x18] sm:$0xf]
    %v492 = vld [vmem:[#allocation2 + $0x1c] sm:$0xf]
    %v493 = vld [vmem:[#allocation2 + $0x20] sm:$0xf]
    %v494 = vld [vmem:[#allocation2 + $0x24] sm:$0xf]
    %v495 = vld [vmem:[#allocation2 + $0x28] sm:$0xf]
    %v496 = vld [vmem:[#allocation2 + $0x2c] sm:$0xf]
    %v497 = vld [vmem:[#allocation2 + $0x30] sm:$0xf]
    %v498 = vld [vmem:[#allocation2 + $0x34] sm:$0xf]
    %v499 = vld [vmem:[#allocation2 + $0x38] sm:$0xf]
    %v500 = vld [vmem:[#allocation2 + $0x3c] sm:$0xf]
    %v501 = vld [vmem:[#allocation2 + $0x40] sm:$0xf]
    %v502 = vld [vmem:[#allocation2 + $0x44] sm:$0xf]
    %v503 = vld [vmem:[#allocation2 + $0x48] sm:$0xf]
    %v504 = vld [vmem:[#allocation2 + $0x4c] sm:$0xf]
    %v505 = vld [vmem:[#allocation2 + $0x50] sm:$0xf]
    %v506 = vld [vmem:[#allocation2 + $0x54] sm:$0xf]
    %v507 = vld [vmem:[#allocation2 + $0x58] sm:$0xf]
    %v508 = vld [vmem:[#allocation2 + $0x5c] sm:$0xf]
    %v509 = vld [vmem:[#allocation2 + $0x60] sm:$0xf]
    %v510 = vld [vmem:[#allocation2 + $0x64] sm:$0xf]
    %v511 = vld [vmem:[#allocation2 + $0x68] sm:$0xf]
    %v512 = vld [vmem:[#allocation2 + $0x6c] sm:$0xf]
    %v513 = vld [vmem:[#allocation2 + $0x70] sm:$0xf]
    %v514 = vld [vmem:[#allocation2 + $0x74] sm:$0xf]
    %v515 = vld [vmem:[#allocation2 + $0x78] sm:$0xf]
    %v516 = vld [vmem:[#allocation2 + $0x7c] sm:$0xf]
    %v517 = vld [vmem:[#allocation2 + $0x80] sm:$0xf]
    %v518 = vld [vmem:[#allocation2 + $0x84] sm:$0xf]
    %v519 = vld [vmem:[#allocation2 + $0x88] sm:$0xf]
    %v520 = vld [vmem:[#allocation2 + $0x8c] sm:$0xf]
    %v521 = vld [vmem:[#allocation2 + $0x90] sm:$0xf]
    %v522 = vld [vmem:[#allocation2 + $0x94] sm:$0xf]
    %v523 = vld [vmem:[#allocation2 + $0x98] sm:$0xf]
    %v524 = vld [vmem:[#allocation2 + $0x9c] sm:$0xf]
    %v525 = vld [vmem:[#allocation2 + $0xa0] sm:$0xf]
    %v526 = vld [vmem:[#allocation2 + $0xa4] sm:$0xf]
    %v527 = vld [vmem:[#allocation2 + $0xa8] sm:$0xf]
    %v528 = vld [vmem:[#allocation2 + $0xac] sm:$0xf]
    %v529 = vld [vmem:[#allocation2 + $0xb0] sm:$0xf]
    %v530 = vld [vmem:[#allocation2 + $0xb4] sm:$0xf]
    %v531 = vld [vmem:[#allocation2 + $0xb8] sm:$0xf]
    %v532 = vld [vmem:[#allocation2 + $0xbc] sm:$0xf]
    %v533 = vld [vmem:[#allocation2 + $0xc0] sm:$0xf]
    %v534 = vld [vmem:[#allocation2 + $0xc4] sm:$0xf]
    %v535 = vld [vmem:[#allocation2 + $0xc8] sm:$0xf]
    %v536 = vld [vmem:[#allocation2 + $0xcc] sm:$0xf]
    %v537 = vld [vmem:[#allocation2 + $0xd0] sm:$0xf]
    %v538 = vld [vmem:[#allocation2 + $0xd4] sm:$0xf]
    %v539 = vld [vmem:[#allocation2 + $0xd8] sm:$0xf]
    %v540 = vld [vmem:[#allocation2 + $0xdc] sm:$0xf]
    %v541 = vld [vmem:[#allocation2 + $0xe0] sm:$0xf]
    %v542 = vld [vmem:[#allocation2 + $0xe4] sm:$0xf]
    %v543 = vld [vmem:[#allocation2 + $0xe8] sm:$0xf]
    %v544 = vld [vmem:[#allocation2 + $0xec] sm:$0xf]
    %v545 = vld [vmem:[#allocation2 + $0xf0] sm:$0xf]
    %v546 = vld [vmem:[#allocation2 + $0xf4] sm:$0xf]
    %v547 = vld [vmem:[#allocation2 + $0xf8] sm:$0xf]
    %v548 = vld [vmem:[#allocation2 + $0xfc] sm:$0xf]
    %v549 = vpack.c.bf16 %v470, %v469
    %v550 = vpack.c.bf16 %v472, %v471
    %v551 = vpack.c.bf16 %v474, %v473
    %v552 = vpack.c.bf16 %v476, %v475
    %v553 = vpack.c.bf16 %v478, %v477
    %v554 = vpack.c.bf16 %v480, %v479
    %v555 = vpack.c.bf16 %v482, %v481
    %v556 = vpack.c.bf16 %v484, %v483
    %v621 = vunpack.c.l.b16 %v485
    %v622 = vunpack.c.l.b16 %v486
    %v623 = vunpack.c.l.b16 %v487
    %v624 = vunpack.c.l.b16 %v488
    %v625 = vunpack.c.l.b16 %v489
    %v626 = vunpack.c.l.b16 %v490
    %v627 = vunpack.c.l.b16 %v491
    %v628 = vunpack.c.l.b16 %v492
    %v629 = vunpack.c.l.b16 %v493
    %v630 = vunpack.c.l.b16 %v494
    %v631 = vunpack.c.l.b16 %v495
    %v632 = vunpack.c.l.b16 %v496
    %v633 = vunpack.c.l.b16 %v497
    %v634 = vunpack.c.l.b16 %v498
    %v635 = vunpack.c.l.b16 %v499
    %v636 = vunpack.c.l.b16 %v500
    %v637 = vunpack.c.l.b16 %v501
    %v638 = vunpack.c.l.b16 %v502
    %v639 = vunpack.c.l.b16 %v503
    %v640 = vunpack.c.l.b16 %v504
    %v641 = vunpack.c.l.b16 %v505
    %v642 = vunpack.c.l.b16 %v506
    %v643 = vunpack.c.l.b16 %v507
    %v644 = vunpack.c.l.b16 %v508
    %v645 = vunpack.c.l.b16 %v509
    %v646 = vunpack.c.l.b16 %v510
    %v647 = vunpack.c.l.b16 %v511
    %v648 = vunpack.c.l.b16 %v512
    %v649 = vunpack.c.l.b16 %v513
    %v650 = vunpack.c.l.b16 %v514
    %v651 = vunpack.c.l.b16 %v515
    %v652 = vunpack.c.l.b16 %v516
    %v653 = vunpack.c.l.b16 %v517
    %v654 = vunpack.c.l.b16 %v518
    %v655 = vunpack.c.l.b16 %v519
    %v656 = vunpack.c.l.b16 %v520
    %v657 = vunpack.c.l.b16 %v521
    %v658 = vunpack.c.l.b16 %v522
    %v659 = vunpack.c.l.b16 %v523
    %v660 = vunpack.c.l.b16 %v524
    %v661 = vunpack.c.l.b16 %v525
    %v662 = vunpack.c.l.b16 %v526
    %v663 = vunpack.c.l.b16 %v527
    %v664 = vunpack.c.l.b16 %v528
    %v665 = vunpack.c.l.b16 %v529
    %v666 = vunpack.c.l.b16 %v530
    %v667 = vunpack.c.l.b16 %v531
    %v668 = vunpack.c.l.b16 %v532
    %v669 = vunpack.c.l.b16 %v533
    %v670 = vunpack.c.l.b16 %v534
    %v671 = vunpack.c.l.b16 %v535
    %v672 = vunpack.c.l.b16 %v536
    %v673 = vunpack.c.l.b16 %v537
    %v674 = vunpack.c.l.b16 %v538
    %v675 = vunpack.c.l.b16 %v539
    %v676 = vunpack.c.l.b16 %v540
    %v677 = vunpack.c.l.b16 %v541
    %v678 = vunpack.c.l.b16 %v542
    %v679 = vunpack.c.l.b16 %v543
    %v680 = vunpack.c.l.b16 %v544
    %v681 = vunpack.c.l.b16 %v545
    %v682 = vunpack.c.l.b16 %v546
    %v683 = vunpack.c.l.b16 %v547
    %v684 = vunpack.c.l.b16 %v548
    %v685 = vpack.c.b16 %v622, %v621
    %v686 = vpack.c.b16 %v624, %v623
    %v687 = vpack.c.b16 %v626, %v625
    %v688 = vpack.c.b16 %v628, %v627
    %v689 = vpack.c.b16 %v630, %v629
    %v690 = vpack.c.b16 %v632, %v631
    %v691 = vpack.c.b16 %v634, %v633
    %v692 = vpack.c.b16 %v636, %v635
    %v693 = vpack.c.b16 %v638, %v637
    %v694 = vpack.c.b16 %v640, %v639
    %v695 = vpack.c.b16 %v642, %v641
    %v696 = vpack.c.b16 %v644, %v643
    %v697 = vpack.c.b16 %v646, %v645
    %v698 = vpack.c.b16 %v648, %v647
    %v699 = vpack.c.b16 %v650, %v649
    %v700 = vpack.c.b16 %v652, %v651
    %v701 = vpack.c.b16 %v654, %v653
    %v702 = vpack.c.b16 %v656, %v655
    %v703 = vpack.c.b16 %v658, %v657
    %v704 = vpack.c.b16 %v660, %v659
    %v705 = vpack.c.b16 %v662, %v661
    %v706 = vpack.c.b16 %v664, %v663
    %v707 = vpack.c.b16 %v666, %v665
    %v708 = vpack.c.b16 %v668, %v667
    %v709 = vpack.c.b16 %v670, %v669
    %v710 = vpack.c.b16 %v672, %v671
    %v711 = vpack.c.b16 %v674, %v673
    %v712 = vpack.c.b16 %v676, %v675
    %v713 = vpack.c.b16 %v678, %v677
    %v714 = vpack.c.b16 %v680, %v679
    %v715 = vpack.c.b16 %v682, %v681
    %v716 = vpack.c.b16 %v684, %v683
    %749 = vmatprep.subr.bf16.mxu0 0
    %750 = vmatpush1.bf16.msra.mxu0 %v549
    %751 = vmatprep.subr.bf16.mxu0 0
    %752 = vmatpush1.bf16.msra.mxu0 %v550
    %753 = vmatprep.subr.bf16.mxu0 0
    %754 = vmatpush1.bf16.msra.mxu0 %v551
    %755 = vmatprep.subr.bf16.mxu0 0
    %756 = vmatpush1.bf16.msra.mxu0 %v552
    %757 = vmatprep.subr.bf16.mxu0 0
    %758 = vmatpush1.bf16.msra.mxu0 %v553
    %759 = vmatprep.subr.bf16.mxu0 0
    %760 = vmatpush1.bf16.msra.mxu0 %v554
    %761 = vmatprep.subr.bf16.mxu0 0
    %762 = vmatpush1.bf16.msra.mxu0 %v555
    %763 = vmatprep.subr.bf16.mxu0 0
    %764 = vmatpush1.bf16.msra.mxu0 %v556
    %765 = vmatprep.subr.bf16.mxu0 0
    %766 = vmatpush1.bf16.msra.mxu0 0
    %767 = vmatprep.subr.bf16.mxu0 0
    %768 = vmatpush1.bf16.msra.mxu0 0
    %769 = vmatprep.subr.bf16.mxu0 0
    %770 = vmatpush1.bf16.msra.mxu0 0
    %771 = vmatprep.subr.bf16.mxu0 0
    %772 = vmatpush1.bf16.msra.mxu0 0
    %773 = vmatprep.subr.bf16.mxu0 0
    %774 = vmatpush1.bf16.msra.mxu0 0
    %775 = vmatprep.subr.bf16.mxu0 0
    %776 = vmatpush1.bf16.msra.mxu0 0
    %777 = vmatprep.subr.bf16.mxu0 0
    %778 = vmatpush1.bf16.msra.mxu0 0
    %779 = vmatprep.subr.bf16.mxu0 0
    %780 = vmatpush1.bf16.msra.mxu0 0
    %781 = vmatprep.mubr.bf16.mxu0 0
    %782 = vmatmul.mubr.bf16.gmra.mrb[0].mxu0 %v685
    %v783 = vpop.f32.mrb[0].mxu0
    %v784 = vadd.f32 0.0, %v783
    %v785 = vpop.f32.mrb[0].mxu0
    %v786 = vpop.f32.mrb[0].mxu0
    %v787 = vadd.f32 0.0, %v786
    %v788 = vpop.f32.mrb[0].mxu0
    %789 = vmatprep.mubr.bf16.mxu0 0
    %790 = vmatmul.mubr.bf16.gmra.mrb[0].mxu0 %v686
    %v791 = vpop.f32.mrb[0].mxu0
    %v792 = vadd.f32 0.0, %v791
    %v793 = vpop.f32.mrb[0].mxu0
    %v794 = vpop.f32.mrb[0].mxu0
    %v795 = vadd.f32 0.0, %v794
    %v796 = vpop.f32.mrb[0].mxu0
    %797 = vmatprep.mubr.bf16.mxu0 0
    %798 = vmatmul.mubr.bf16.gmra.mrb[0].mxu0 %v687
    %v799 = vpop.f32.mrb[0].mxu0
    %v800 = vadd.f32 0.0, %v799
    %v801 = vpop.f32.mrb[0].mxu0
    %v802 = vpop.f32.mrb[0].mxu0
    %v803 = vadd.f32 0.0, %v802
    %v804 = vpop.f32.mrb[0].mxu0
    %805 = vmatprep.mubr.bf16.mxu0 0
    %806 = vmatmul.mubr.bf16.gmra.mrb[0].mxu0 %v688
    %v807 = vpop.f32.mrb[0].mxu0
    %v808 = vadd.f32 0.0, %v807
    %v809 = vpop.f32.mrb[0].mxu0
    %v810 = vpop.f32.mrb[0].mxu0
    %v811 = vadd.f32 0.0, %v810
    %v812 = vpop.f32.mrb[0].mxu0
    %813 = vmatprep.mubr.bf16.mxu0 0
    %814 = vmatmul.mubr.bf16.gmra.mrb[0].mxu0 %v689
    %v815 = vpop.f32.mrb[0].mxu0
    %v816 = vadd.f32 0.0, %v815
    %v817 = vpop.f32.mrb[0].mxu0
    %v818 = vpop.f32.mrb[0].mxu0
    %v819 = vadd.f32 0.0, %v818
    %v820 = vpop.f32.mrb[0].mxu0
    %821 = vmatprep.mubr.bf16.mxu0 0
    %822 = vmatmul.mubr.bf16.gmra.mrb[0].mxu0 %v690
    %v823 = vpop.f32.mrb[0].mxu0
    %v824 = vadd.f32 0.0, %v823
    %v825 = vpop.f32.mrb[0].mxu0
    %v826 = vpop.f32.mrb[0].mxu0
    %v827 = vadd.f32 0.0, %v826
    %v828 = vpop.f32.mrb[0].mxu0
    %829 = vmatprep.mubr.bf16.mxu0 0
    %830 = vmatmul.mubr.bf16.gmra.mrb[0].mxu0 %v691
    %v831 = vpop.f32.mrb[0].mxu0
    %v832 = vadd.f32 0.0, %v831
    %v833 = vpop.f32.mrb[0].mxu0
    %v834 = vpop.f32.mrb[0].mxu0
    %v835 = vadd.f32 0.0, %v834
    %v836 = vpop.f32.mrb[0].mxu0
    %837 = vmatprep.mubr.bf16.mxu0 0
    %838 = vmatmul.mubr.bf16.gmra.mrb[0].mxu0 %v692
    %v839 = vpop.f32.mrb[0].mxu0
    %v840 = vadd.f32 0.0, %v839
    %v841 = vpop.f32.mrb[0].mxu0
    %v842 = vpop.f32.mrb[0].mxu0
    %v843 = vadd.f32 0.0, %v842
    %v844 = vpop.f32.mrb[0].mxu0
    %845 = vmatprep.mubr.bf16.mxu0 0
    %846 = vmatmul.mubr.bf16.gmra.mrb[0].mxu0 %v693
    %v847 = vpop.f32.mrb[0].mxu0
    %v848 = vadd.f32 0.0, %v847
    %v849 = vpop.f32.mrb[0].mxu0
    %v850 = vpop.f32.mrb[0].mxu0
    %v851 = vadd.f32 0.0, %v850
    %v852 = vpop.f32.mrb[0].mxu0
    %853 = vmatprep.mubr.bf16.mxu0 0
    %854 = vmatmul.mubr.bf16.gmra.mrb[0].mxu0 %v694
    %v855 = vpop.f32.mrb[0].mxu0
    %v856 = vadd.f32 0.0, %v855
    %v857 = vpop.f32.mrb[0].mxu0
    %v858 = vpop.f32.mrb[0].mxu0
    %v859 = vadd.f32 0.0, %v858
    %v860 = vpop.f32.mrb[0].mxu0
    %861 = vmatprep.mubr.bf16.mxu0 0
    %862 = vmatmul.mubr.bf16.gmra.mrb[0].mxu0 %v695
    %v863 = vpop.f32.mrb[0].mxu0
    %v864 = vadd.f32 0.0, %v863
    %v865 = vpop.f32.mrb[0].mxu0
    %v866 = vpop.f32.mrb[0].mxu0
    %v867 = vadd.f32 0.0, %v866
    %v868 = vpop.f32.mrb[0].mxu0
    %869 = vmatprep.mubr.bf16.mxu0 0
    %870 = vmatmul.mubr.bf16.gmra.mrb[0].mxu0 %v696
    %v871 = vpop.f32.mrb[0].mxu0
    %v872 = vadd.f32 0.0, %v871
    %v873 = vpop.f32.mrb[0].mxu0
    %v874 = vpop.f32.mrb[0].mxu0
    %v875 = vadd.f32 0.0, %v874
    %v876 = vpop.f32.mrb[0].mxu0
    %877 = vmatprep.mubr.bf16.mxu0 0
    %878 = vmatmul.mubr.bf16.gmra.mrb[0].mxu0 %v697
    %v879 = vpop.f32.mrb[0].mxu0
    %v880 = vadd.f32 0.0, %v879
    %v881 = vpop.f32.mrb[0].mxu0
    %v882 = vpop.f32.mrb[0].mxu0
    %v883 = vadd.f32 0.0, %v882
    %v884 = vpop.f32.mrb[0].mxu0
    %885 = vmatprep.mubr.bf16.mxu0 0
    %886 = vmatmul.mubr.bf16.gmra.mrb[0].mxu0 %v698
    %v887 = vpop.f32.mrb[0].mxu0
    %v888 = vadd.f32 0.0, %v887
    %v889 = vpop.f32.mrb[0].mxu0
    %v890 = vpop.f32.mrb[0].mxu0
    %v891 = vadd.f32 0.0, %v890
    %v892 = vpop.f32.mrb[0].mxu0
    %893 = vmatprep.mubr.bf16.mxu0 0
    %894 = vmatmul.mubr.bf16.gmra.mrb[0].mxu0 %v699
    %v895 = vpop.f32.mrb[0].mxu0
    %v896 = vadd.f32 0.0, %v895
    %v897 = vpop.f32.mrb[0].mxu0
    %v898 = vpop.f32.mrb[0].mxu0
    %v899 = vadd.f32 0.0, %v898
    %v900 = vpop.f32.mrb[0].mxu0
    %901 = vmatprep.mubr.bf16.mxu0 0
    %902 = vmatmul.mubr.bf16.gmra.mrb[0].mxu0 %v700
    %v903 = vpop.f32.mrb[0].mxu0
    %v904 = vadd.f32 0.0, %v903
    %v905 = vpop.f32.mrb[0].mxu0
    %v906 = vpop.f32.mrb[0].mxu0
    %v907 = vadd.f32 0.0, %v906
    %v908 = vpop.f32.mrb[0].mxu0
    %909 = vmatprep.mubr.bf16.mxu0 0
    %910 = vmatmul.mubr.bf16.gmra.mrb[0].mxu0 %v701
    %v911 = vpop.f32.mrb[0].mxu0
    %v912 = vadd.f32 0.0, %v911
    %v913 = vpop.f32.mrb[0].mxu0
    %v914 = vpop.f32.mrb[0].mxu0
    %v915 = vadd.f32 0.0, %v914
    %v916 = vpop.f32.mrb[0].mxu0
    %917 = vmatprep.mubr.bf16.mxu0 0
    %918 = vmatmul.mubr.bf16.gmra.mrb[0].mxu0 %v702
    %v919 = vpop.f32.mrb[0].mxu0
    %v920 = vadd.f32 0.0, %v919
    %v921 = vpop.f32.mrb[0].mxu0
    %v922 = vpop.f32.mrb[0].mxu0
    %v923 = vadd.f32 0.0, %v922
    %v924 = vpop.f32.mrb[0].mxu0
    %925 = vmatprep.mubr.bf16.mxu0 0
    %926 = vmatmul.mubr.bf16.gmra.mrb[0].mxu0 %v703
    %v927 = vpop.f32.mrb[0].mxu0
    %v928 = vadd.f32 0.0, %v927
    %v929 = vpop.f32.mrb[0].mxu0
    %v930 = vpop.f32.mrb[0].mxu0
    %v931 = vadd.f32 0.0, %v930
    %v932 = vpop.f32.mrb[0].mxu0
    %933 = vmatprep.mubr.bf16.mxu0 0
    %934 = vmatmul.mubr.bf16.gmra.mrb[0].mxu0 %v704
    %v935 = vpop.f32.mrb[0].mxu0
    %v936 = vadd.f32 0.0, %v935
    %v937 = vpop.f32.mrb[0].mxu0
    %v938 = vpop.f32.mrb[0].mxu0
    %v939 = vadd.f32 0.0, %v938
    %v940 = vpop.f32.mrb[0].mxu0
    %941 = vmatprep.mubr.bf16.mxu0 0
    %942 = vmatmul.mubr.bf16.gmra.mrb[0].mxu0 %v705
    %v943 = vpop.f32.mrb[0].mxu0
    %v944 = vadd.f32 0.0, %v943
    %v945 = vpop.f32.mrb[0].mxu0
    %v946 = vpop.f32.mrb[0].mxu0
    %v947 = vadd.f32 0.0, %v946
    %v948 = vpop.f32.mrb[0].mxu0
    %949 = vmatprep.mubr.bf16.mxu0 0
    %950 = vmatmul.mubr.bf16.gmra.mrb[0].mxu0 %v706
    %v951 = vpop.f32.mrb[0].mxu0
    %v952 = vadd.f32 0.0, %v951
    %v953 = vpop.f32.mrb[0].mxu0
    %v954 = vpop.f32.mrb[0].mxu0
    %v955 = vadd.f32 0.0, %v954
    %v956 = vpop.f32.mrb[0].mxu0
    %957 = vmatprep.mubr.bf16.mxu0 0
    %958 = vmatmul.mubr.bf16.gmra.mrb[0].mxu0 %v707
    %v959 = vpop.f32.mrb[0].mxu0
    %v960 = vadd.f32 0.0, %v959
    %v961 = vpop.f32.mrb[0].mxu0
    %v962 = vpop.f32.mrb[0].mxu0
    %v963 = vadd.f32 0.0, %v962
    %v964 = vpop.f32.mrb[0].mxu0
    %965 = vmatprep.mubr.bf16.mxu0 0
    %966 = vmatmul.mubr.bf16.gmra.mrb[0].mxu0 %v708
    %v967 = vpop.f32.mrb[0].mxu0
    %v968 = vadd.f32 0.0, %v967
    %v969 = vpop.f32.mrb[0].mxu0
    %v970 = vpop.f32.mrb[0].mxu0
    %v971 = vadd.f32 0.0, %v970
    %v972 = vpop.f32.mrb[0].mxu0
    %973 = vmatprep.mubr.bf16.mxu0 0
    %974 = vmatmul.mubr.bf16.gmra.mrb[0].mxu0 %v709
    %v975 = vpop.f32.mrb[0].mxu0
    %v976 = vadd.f32 0.0, %v975
    %v977 = vpop.f32.mrb[0].mxu0
    %v978 = vpop.f32.mrb[0].mxu0
    %v979 = vadd.f32 0.0, %v978
    %v980 = vpop.f32.mrb[0].mxu0
    %981 = vmatprep.mubr.bf16.mxu0 0
    %982 = vmatmul.mubr.bf16.gmra.mrb[0].mxu0 %v710
    %v983 = vpop.f32.mrb[0].mxu0
    %v984 = vadd.f32 0.0, %v983
    %v985 = vpop.f32.mrb[0].mxu0
    %v986 = vpop.f32.mrb[0].mxu0
    %v987 = vadd.f32 0.0, %v986
    %v988 = vpop.f32.mrb[0].mxu0
    %989 = vmatprep.mubr.bf16.mxu0 0
    %990 = vmatmul.mubr.bf16.gmra.mrb[0].mxu0 %v711
    %v991 = vpop.f32.mrb[0].mxu0
    %v992 = vadd.f32 0.0, %v991
    %v993 = vpop.f32.mrb[0].mxu0
    %v994 = vpop.f32.mrb[0].mxu0
    %v995 = vadd.f32 0.0, %v994
    %v996 = vpop.f32.mrb[0].mxu0
    %997 = vmatprep.mubr.bf16.mxu0 0
    %998 = vmatmul.mubr.bf16.gmra.mrb[0].mxu0 %v712
    %v999 = vpop.f32.mrb[0].mxu0
    %v1000 = vadd.f32 0.0, %v999
    %v1001 = vpop.f32.mrb[0].mxu0
    %v1002 = vpop.f32.mrb[0].mxu0
    %v1003 = vadd.f32 0.0, %v1002
    %v1004 = vpop.f32.mrb[0].mxu0
    %1005 = vmatprep.mubr.bf16.mxu0 0
    %1006 = vmatmul.mubr.bf16.gmra.mrb[0].mxu0 %v713
    %v1007 = vpop.f32.mrb[0].mxu0
    %v1008 = vadd.f32 0.0, %v1007
    %v1009 = vpop.f32.mrb[0].mxu0
    %v1010 = vpop.f32.mrb[0].mxu0
    %v1011 = vadd.f32 0.0, %v1010
    %v1012 = vpop.f32.mrb[0].mxu0
    %1013 = vmatprep.mubr.bf16.mxu0 0
    %1014 = vmatmul.mubr.bf16.gmra.mrb[0].mxu0 %v714
    %v1015 = vpop.f32.mrb[0].mxu0
    %v1016 = vadd.f32 0.0, %v1015
    %v1017 = vpop.f32.mrb[0].mxu0
    %v1018 = vpop.f32.mrb[0].mxu0
    %v1019 = vadd.f32 0.0, %v1018
    %v1020 = vpop.f32.mrb[0].mxu0
    %1021 = vmatprep.mubr.bf16.mxu0 0
    %1022 = vmatmul.mubr.bf16.gmra.mrb[0].mxu0 %v715
    %v1023 = vpop.f32.mrb[0].mxu0
    %v1024 = vadd.f32 0.0, %v1023
    %v1025 = vpop.f32.mrb[0].mxu0
    %v1026 = vpop.f32.mrb[0].mxu0
    %v1027 = vadd.f32 0.0, %v1026
    %v1028 = vpop.f32.mrb[0].mxu0
    %1029 = vmatprep.mubr.bf16.mxu0 0
    %1030 = vmatmul.mubr.bf16.gmra.mrb[0].mxu0 %v716
    %v1031 = vpop.f32.mrb[0].mxu0
    %v1032 = vadd.f32 0.0, %v1031
    %v1033 = vpop.f32.mrb[0].mxu0
    %v1034 = vpop.f32.mrb[0].mxu0
    %v1035 = vadd.f32 0.0, %v1034
    %v1036 = vpop.f32.mrb[0].mxu0
    %1037 = vdwg.mxu0
    %v1038 = vpack.c.bf16 %v787, %v784
    %v1039 = vpack.c.bf16 %v795, %v792
    %v1040 = vpack.c.bf16 %v803, %v800
    %v1041 = vpack.c.bf16 %v811, %v808
    %v1042 = vpack.c.bf16 %v819, %v816
    %v1043 = vpack.c.bf16 %v827, %v824
    %v1044 = vpack.c.bf16 %v835, %v832
    %v1045 = vpack.c.bf16 %v843, %v840
    %v1046 = vpack.c.bf16 %v851, %v848
    %v1047 = vpack.c.bf16 %v859, %v856
    %v1048 = vpack.c.bf16 %v867, %v864
    %v1049 = vpack.c.bf16 %v875, %v872
    %v1050 = vpack.c.bf16 %v883, %v880
    %v1051 = vpack.c.bf16 %v891, %v888
    %v1052 = vpack.c.bf16 %v899, %v896
    %v1053 = vpack.c.bf16 %v907, %v904
    %v1054 = vpack.c.bf16 %v915, %v912
    %v1055 = vpack.c.bf16 %v923, %v920
    %v1056 = vpack.c.bf16 %v931, %v928
    %v1057 = vpack.c.bf16 %v939, %v936
    %v1058 = vpack.c.bf16 %v947, %v944
    %v1059 = vpack.c.bf16 %v955, %v952
    %v1060 = vpack.c.bf16 %v963, %v960
    %v1061 = vpack.c.bf16 %v971, %v968
    %v1062 = vpack.c.bf16 %v979, %v976
    %v1063 = vpack.c.bf16 %v987, %v984
    %v1064 = vpack.c.bf16 %v995, %v992
    %v1065 = vpack.c.bf16 %v1003, %v1000
    %v1066 = vpack.c.bf16 %v1011, %v1008
    %v1067 = vpack.c.bf16 %v1019, %v1016
    %v1068 = vpack.c.bf16 %v1027, %v1024
    %v1069 = vpack.c.bf16 %v1035, %v1032
    %v1070 = vld [vmem:[#allocation4] sm:$0xf]
    %v1071 = vld [vmem:[#allocation4 + $0x4] sm:$0xf]
    %v1072 = vld [vmem:[#allocation4 + $0x8] sm:$0xf]
    %v1073 = vld [vmem:[#allocation4 + $0xc] sm:$0xf]
    %v1074 = vld [vmem:[#allocation4 + $0x10] sm:$0xf]
    %v1075 = vld [vmem:[#allocation4 + $0x14] sm:$0xf]
    %v1076 = vld [vmem:[#allocation4 + $0x18] sm:$0xf]
    %v1077 = vld [vmem:[#allocation4 + $0x1c] sm:$0xf]
    %v1078 = vld [vmem:[#allocation4 + $0x20] sm:$0xf]
    %v1079 = vld [vmem:[#allocation4 + $0x24] sm:$0xf]
    %v1080 = vld [vmem:[#allocation4 + $0x28] sm:$0xf]
    %v1081 = vld [vmem:[#allocation4 + $0x2c] sm:$0xf]
    %v1082 = vld [vmem:[#allocation4 + $0x30] sm:$0xf]
    %v1083 = vld [vmem:[#allocation4 + $0x34] sm:$0xf]
    %v1084 = vld [vmem:[#allocation4 + $0x38] sm:$0xf]
    %v1085 = vld [vmem:[#allocation4 + $0x3c] sm:$0xf]
    %v1086 = vld [vmem:[#allocation4 + $0x40] sm:$0xf]
    %v1087 = vld [vmem:[#allocation4 + $0x44] sm:$0xf]
    %v1088 = vld [vmem:[#allocation4 + $0x48] sm:$0xf]
    %v1089 = vld [vmem:[#allocation4 + $0x4c] sm:$0xf]
    %v1090 = vld [vmem:[#allocation4 + $0x50] sm:$0xf]
    %v1091 = vld [vmem:[#allocation4 + $0x54] sm:$0xf]
    %v1092 = vld [vmem:[#allocation4 + $0x58] sm:$0xf]
    %v1093 = vld [vmem:[#allocation4 + $0x5c] sm:$0xf]
    %v1094 = vld [vmem:[#allocation4 + $0x60] sm:$0xf]
    %v1095 = vld [vmem:[#allocation4 + $0x64] sm:$0xf]
    %v1096 = vld [vmem:[#allocation4 + $0x68] sm:$0xf]
    %v1097 = vld [vmem:[#allocation4 + $0x6c] sm:$0xf]
    %v1098 = vld [vmem:[#allocation4 + $0x70] sm:$0xf]
    %v1099 = vld [vmem:[#allocation4 + $0x74] sm:$0xf]
    %v1100 = vld [vmem:[#allocation4 + $0x78] sm:$0xf]
    %v1101 = vld [vmem:[#allocation4 + $0x7c] sm:$0xf]
    %v1104 = vunpack.c.l.b16 %v1070
    %v1105 = vunpack.c.l.b16 %v1071
    %v1106 = vpack.c.b16 %v1105, %v1104
    %v1109 = vsel %vm174, %v1038, 0
    %v1112 = vsel %vm174, %v1039, 0
    %1114 = vmatprep.subr.bf16.mxu0 0
    %1115 = vmatpush1.bf16.msra.mxu0 %v1106
    %1116 = vmatprep.subr.bf16.mxu0 0
    %1117 = vmatpush1.bf16.msra.mxu0 0
    %1118 = vmatprep.subr.bf16.mxu0 0
    %1119 = vmatpush1.bf16.msra.mxu0 0
    %1120 = vmatprep.subr.bf16.mxu0 0
    %1121 = vmatpush1.bf16.msra.mxu0 0
    %1122 = vmatprep.subr.bf16.mxu0 0
    %1123 = vmatpush1.bf16.msra.mxu0 0
    %1124 = vmatprep.subr.bf16.mxu0 0
    %1125 = vmatpush1.bf16.msra.mxu0 0
    %1126 = vmatprep.subr.bf16.mxu0 0
    %1127 = vmatpush1.bf16.msra.mxu0 0
    %1128 = vmatprep.subr.bf16.mxu0 0
    %1129 = vmatpush1.bf16.msra.mxu0 0
    %1130 = vmatprep.subr.bf16.mxu0 0
    %1131 = vmatpush1.bf16.msra.mxu0 0
    %1132 = vmatprep.subr.bf16.mxu0 0
    %1133 = vmatpush1.bf16.msra.mxu0 0
    %1134 = vmatprep.subr.bf16.mxu0 0
    %1135 = vmatpush1.bf16.msra.mxu0 0
    %1136 = vmatprep.subr.bf16.mxu0 0
    %1137 = vmatpush1.bf16.msra.mxu0 0
    %1138 = vmatprep.subr.bf16.mxu0 0
    %1139 = vmatpush1.bf16.msra.mxu0 0
    %1140 = vmatprep.subr.bf16.mxu0 0
    %1141 = vmatpush1.bf16.msra.mxu0 0
    %1142 = vmatprep.subr.bf16.mxu0 0
    %1143 = vmatpush1.bf16.msra.mxu0 0
    %1144 = vmatprep.subr.bf16.mxu0 0
    %1145 = vmatpush1.bf16.msra.mxu0 0
    %1146 = vmatprep.mubr.bf16.mxu0 0
    %1147 = vmatmul.mubr.bf16.gmra.mrb[0].mxu0 %v1109
    %v1148 = vpop.f32.mrb[0].mxu0
    %v1149 = vadd.f32 0.0, %v1148
    %v1150 = vpop.f32.mrb[0].mxu0
    %v1151 = vpop.f32.mrb[0].mxu0
    %v1152 = vadd.f32 0.0, %v1151
    %v1153 = vpop.f32.mrb[0].mxu0
    %1154 = vmatprep.mubr.bf16.mxu0 0
    %1155 = vmatmul.mubr.bf16.gmra.mrb[0].mxu0 %v1112
    %v1156 = vpop.f32.mrb[0].mxu0
    %v1157 = vadd.f32 0.0, %v1156
    %v1158 = vpop.f32.mrb[0].mxu0
    %v1159 = vpop.f32.mrb[0].mxu0
    %v1160 = vadd.f32 0.0, %v1159
    %v1161 = vpop.f32.mrb[0].mxu0
    %1162 = vdwg.mxu0
    %v1165 = vunpack.c.l.b16 %v1072
    %v1166 = vunpack.c.l.b16 %v1073
    %v1167 = vpack.c.b16 %v1166, %v1165
    %v1170 = vsel %vm174, %v1040, 0
    %v1173 = vsel %vm174, %v1041, 0
    %1175 = vmatprep.subr.bf16.mxu0 0
    %1176 = vmatpush1.bf16.msra.mxu0 %v1167
    %1177 = vmatprep.subr.bf16.mxu0 0
    %1178 = vmatpush1.bf16.msra.mxu0 0
    %1179 = vmatprep.subr.bf16.mxu0 0
    %1180 = vmatpush1.bf16.msra.mxu0 0
    %1181 = vmatprep.subr.bf16.mxu0 0
    %1182 = vmatpush1.bf16.msra.mxu0 0
    %1183 = vmatprep.subr.bf16.mxu0 0
    %1184 = vmatpush1.bf16.msra.mxu0 0
    %1185 = vmatprep.subr.bf16.mxu0 0
    %1186 = vmatpush1.bf16.msra.mxu0 0
    %1187 = vmatprep.subr.bf16.mxu0 0
    %1188 = vmatpush1.bf16.msra.mxu0 0
    %1189 = vmatprep.subr.bf16.mxu0 0
    %1190 = vmatpush1.bf16.msra.mxu0 0
    %1191 = vmatprep.subr.bf16.mxu0 0
    %1192 = vmatpush1.bf16.msra.mxu0 0
    %1193 = vmatprep.subr.bf16.mxu0 0
    %1194 = vmatpush1.bf16.msra.mxu0 0
    %1195 = vmatprep.subr.bf16.mxu0 0
    %1196 = vmatpush1.bf16.msra.mxu0 0
    %1197 = vmatprep.subr.bf16.mxu0 0
    %1198 = vmatpush1.bf16.msra.mxu0 0
    %1199 = vmatprep.subr.bf16.mxu0 0
    %1200 = vmatpush1.bf16.msra.mxu0 0
    %1201 = vmatprep.subr.bf16.mxu0 0
    %1202 = vmatpush1.bf16.msra.mxu0 0
    %1203 = vmatprep.subr.bf16.mxu0 0
    %1204 = vmatpush1.bf16.msra.mxu0 0
    %1205 = vmatprep.subr.bf16.mxu0 0
    %1206 = vmatpush1.bf16.msra.mxu0 0
    %1207 = vmatprep.mubr.bf16.mxu0 0
    %1208 = vmatmul.mubr.bf16.gmra.mrb[0].mxu0 %v1170
    %v1209 = vpop.f32.mrb[0].mxu0
    %v1210 = vadd.f32 0.0, %v1209
    %v1211 = vpop.f32.mrb[0].mxu0
    %v1212 = vpop.f32.mrb[0].mxu0
    %v1213 = vadd.f32 0.0, %v1212
    %v1214 = vpop.f32.mrb[0].mxu0
    %1215 = vmatprep.mubr.bf16.mxu0 0
    %1216 = vmatmul.mubr.bf16.gmra.mrb[0].mxu0 %v1173
    %v1217 = vpop.f32.mrb[0].mxu0
    %v1218 = vadd.f32 0.0, %v1217
    %v1219 = vpop.f32.mrb[0].mxu0
    %v1220 = vpop.f32.mrb[0].mxu0
    %v1221 = vadd.f32 0.0, %v1220
    %v1222 = vpop.f32.mrb[0].mxu0
    %1223 = vdwg.mxu0
    %v1226 = vunpack.c.l.b16 %v1074
    %v1227 = vunpack.c.l.b16 %v1075
    %v1228 = vpack.c.b16 %v1227, %v1226
    %v1231 = vsel %vm174, %v1042, 0
    %v1234 = vsel %vm174, %v1043, 0
    %1236 = vmatprep.subr.bf16.mxu0 0
    %1237 = vmatpush1.bf16.msra.mxu0 %v1228
    %1238 = vmatprep.subr.bf16.mxu0 0
    %1239 = vmatpush1.bf16.msra.mxu0 0
    %1240 = vmatprep.subr.bf16.mxu0 0
    %1241 = vmatpush1.bf16.msra.mxu0 0
    %1242 = vmatprep.subr.bf16.mxu0 0
    %1243 = vmatpush1.bf16.msra.mxu0 0
    %1244 = vmatprep.subr.bf16.mxu0 0
    %1245 = vmatpush1.bf16.msra.mxu0 0
    %1246 = vmatprep.subr.bf16.mxu0 0
    %1247 = vmatpush1.bf16.msra.mxu0 0
    %1248 = vmatprep.subr.bf16.mxu0 0
    %1249 = vmatpush1.bf16.msra.mxu0 0
    %1250 = vmatprep.subr.bf16.mxu0 0
    %1251 = vmatpush1.bf16.msra.mxu0 0
    %1252 = vmatprep.subr.bf16.mxu0 0
    %1253 = vmatpush1.bf16.msra.mxu0 0
    %1254 = vmatprep.subr.bf16.mxu0 0
    %1255 = vmatpush1.bf16.msra.mxu0 0
    %1256 = vmatprep.subr.bf16.mxu0 0
    %1257 = vmatpush1.bf16.msra.mxu0 0
    %1258 = vmatprep.subr.bf16.mxu0 0
    %1259 = vmatpush1.bf16.msra.mxu0 0
    %1260 = vmatprep.subr.bf16.mxu0 0
    %1261 = vmatpush1.bf16.msra.mxu0 0
    %1262 = vmatprep.subr.bf16.mxu0 0
    %1263 = vmatpush1.bf16.msra.mxu0 0
    %1264 = vmatprep.subr.bf16.mxu0 0
    %1265 = vmatpush1.bf16.msra.mxu0 0
    %1266 = vmatprep.subr.bf16.mxu0 0
    %1267 = vmatpush1.bf16.msra.mxu0 0
    %1268 = vmatprep.mubr.bf16.mxu0 0
    %1269 = vmatmul.mubr.bf16.gmra.mrb[0].mxu0 %v1231
    %v1270 = vpop.f32.mrb[0].mxu0
    %v1271 = vadd.f32 0.0, %v1270
    %v1272 = vpop.f32.mrb[0].mxu0
    %v1273 = vpop.f32.mrb[0].mxu0
    %v1274 = vadd.f32 0.0, %v1273
    %v1275 = vpop.f32.mrb[0].mxu0
    %1276 = vmatprep.mubr.bf16.mxu0 0
    %1277 = vmatmul.mubr.bf16.gmra.mrb[0].mxu0 %v1234
    %v1278 = vpop.f32.mrb[0].mxu0
    %v1279 = vadd.f32 0.0, %v1278
    %v1280 = vpop.f32.mrb[0].mxu0
    %v1281 = vpop.f32.mrb[0].mxu0
    %v1282 = vadd.f32 0.0, %v1281
    %v1283 = vpop.f32.mrb[0].mxu0
    %1284 = vdwg.mxu0
    %v1287 = vunpack.c.l.b16 %v1076
    %v1288 = vunpack.c.l.b16 %v1077
    %v1289 = vpack.c.b16 %v1288, %v1287
    %v1292 = vsel %vm174, %v1044, 0
    %v1295 = vsel %vm174, %v1045, 0
    %1297 = vmatprep.subr.bf16.mxu0 0
    %1298 = vmatpush1.bf16.msra.mxu0 %v1289
    %1299 = vmatprep.subr.bf16.mxu0 0
    %1300 = vmatpush1.bf16.msra.mxu0 0
    %1301 = vmatprep.subr.bf16.mxu0 0
    %1302 = vmatpush1.bf16.msra.mxu0 0
    %1303 = vmatprep.subr.bf16.mxu0 0
    %1304 = vmatpush1.bf16.msra.mxu0 0
    %1305 = vmatprep.subr.bf16.mxu0 0
    %1306 = vmatpush1.bf16.msra.mxu0 0
    %1307 = vmatprep.subr.bf16.mxu0 0
    %1308 = vmatpush1.bf16.msra.mxu0 0
    %1309 = vmatprep.subr.bf16.mxu0 0
    %1310 = vmatpush1.bf16.msra.mxu0 0
    %1311 = vmatprep.subr.bf16.mxu0 0
    %1312 = vmatpush1.bf16.msra.mxu0 0
    %1313 = vmatprep.subr.bf16.mxu0 0
    %1314 = vmatpush1.bf16.msra.mxu0 0
    %1315 = vmatprep.subr.bf16.mxu0 0
    %1316 = vmatpush1.bf16.msra.mxu0 0
    %1317 = vmatprep.subr.bf16.mxu0 0
    %1318 = vmatpush1.bf16.msra.mxu0 0
    %1319 = vmatprep.subr.bf16.mxu0 0
    %1320 = vmatpush1.bf16.msra.mxu0 0
    %1321 = vmatprep.subr.bf16.mxu0 0
    %1322 = vmatpush1.bf16.msra.mxu0 0
    %1323 = vmatprep.subr.bf16.mxu0 0
    %1324 = vmatpush1.bf16.msra.mxu0 0
    %1325 = vmatprep.subr.bf16.mxu0 0
    %1326 = vmatpush1.bf16.msra.mxu0 0
    %1327 = vmatprep.subr.bf16.mxu0 0
    %1328 = vmatpush1.bf16.msra.mxu0 0
    %1329 = vmatprep.mubr.bf16.mxu0 0
    %1330 = vmatmul.mubr.bf16.gmra.mrb[0].mxu0 %v1292
    %v1331 = vpop.f32.mrb[0].mxu0
    %v1332 = vadd.f32 0.0, %v1331
    %v1333 = vpop.f32.mrb[0].mxu0
    %v1334 = vpop.f32.mrb[0].mxu0
    %v1335 = vadd.f32 0.0, %v1334
    %v1336 = vpop.f32.mrb[0].mxu0
    %1337 = vmatprep.mubr.bf16.mxu0 0
    %1338 = vmatmul.mubr.bf16.gmra.mrb[0].mxu0 %v1295
    %v1339 = vpop.f32.mrb[0].mxu0
    %v1340 = vadd.f32 0.0, %v1339
    %v1341 = vpop.f32.mrb[0].mxu0
    %v1342 = vpop.f32.mrb[0].mxu0
    %v1343 = vadd.f32 0.0, %v1342
    %v1344 = vpop.f32.mrb[0].mxu0
    %1345 = vdwg.mxu0
    %v1348 = vunpack.c.l.b16 %v1078
    %v1349 = vunpack.c.l.b16 %v1079
    %v1350 = vpack.c.b16 %v1349, %v1348
    %v1353 = vsel %vm174, %v1046, 0
    %v1356 = vsel %vm174, %v1047, 0
    %1358 = vmatprep.subr.bf16.mxu0 0
    %1359 = vmatpush1.bf16.msra.mxu0 %v1350
    %1360 = vmatprep.subr.bf16.mxu0 0
    %1361 = vmatpush1.bf16.msra.mxu0 0
    %1362 = vmatprep.subr.bf16.mxu0 0
    %1363 = vmatpush1.bf16.msra.mxu0 0
    %1364 = vmatprep.subr.bf16.mxu0 0
    %1365 = vmatpush1.bf16.msra.mxu0 0
    %1366 = vmatprep.subr.bf16.mxu0 0
    %1367 = vmatpush1.bf16.msra.mxu0 0
    %1368 = vmatprep.subr.bf16.mxu0 0
    %1369 = vmatpush1.bf16.msra.mxu0 0
    %1370 = vmatprep.subr.bf16.mxu0 0
    %1371 = vmatpush1.bf16.msra.mxu0 0
    %1372 = vmatprep.subr.bf16.mxu0 0
    %1373 = vmatpush1.bf16.msra.mxu0 0
    %1374 = vmatprep.subr.bf16.mxu0 0
    %1375 = vmatpush1.bf16.msra.mxu0 0
    %1376 = vmatprep.subr.bf16.mxu0 0
    %1377 = vmatpush1.bf16.msra.mxu0 0
    %1378 = vmatprep.subr.bf16.mxu0 0
    %1379 = vmatpush1.bf16.msra.mxu0 0
    %1380 = vmatprep.subr.bf16.mxu0 0
    %1381 = vmatpush1.bf16.msra.mxu0 0
    %1382 = vmatprep.subr.bf16.mxu0 0
    %1383 = vmatpush1.bf16.msra.mxu0 0
    %1384 = vmatprep.subr.bf16.mxu0 0
    %1385 = vmatpush1.bf16.msra.mxu0 0
    %1386 = vmatprep.subr.bf16.mxu0 0
    %1387 = vmatpush1.bf16.msra.mxu0 0
    %1388 = vmatprep.subr.bf16.mxu0 0
    %1389 = vmatpush1.bf16.msra.mxu0 0
    %1390 = vmatprep.mubr.bf16.mxu0 0
    %1391 = vmatmul.mubr.bf16.gmra.mrb[0].mxu0 %v1353
    %v1392 = vpop.f32.mrb[0].mxu0
    %v1393 = vadd.f32 0.0, %v1392
    %v1394 = vpop.f32.mrb[0].mxu0
    %v1395 = vpop.f32.mrb[0].mxu0
    %v1396 = vadd.f32 0.0, %v1395
    %v1397 = vpop.f32.mrb[0].mxu0
    %1398 = vmatprep.mubr.bf16.mxu0 0
    %1399 = vmatmul.mubr.bf16.gmra.mrb[0].mxu0 %v1356
    %v1400 = vpop.f32.mrb[0].mxu0
    %v1401 = vadd.f32 0.0, %v1400
    %v1402 = vpop.f32.mrb[0].mxu0
    %v1403 = vpop.f32.mrb[0].mxu0
    %v1404 = vadd.f32 0.0, %v1403
    %v1405 = vpop.f32.mrb[0].mxu0
    %1406 = vdwg.mxu0
    %v1409 = vunpack.c.l.b16 %v1080
    %v1410 = vunpack.c.l.b16 %v1081
    %v1411 = vpack.c.b16 %v1410, %v1409
    %v1414 = vsel %vm174, %v1048, 0
    %v1417 = vsel %vm174, %v1049, 0
    %1419 = vmatprep.subr.bf16.mxu0 0
    %1420 = vmatpush1.bf16.msra.mxu0 %v1411
    %1421 = vmatprep.subr.bf16.mxu0 0
    %1422 = vmatpush1.bf16.msra.mxu0 0
    %1423 = vmatprep.subr.bf16.mxu0 0
    %1424 = vmatpush1.bf16.msra.mxu0 0
    %1425 = vmatprep.subr.bf16.mxu0 0
    %1426 = vmatpush1.bf16.msra.mxu0 0
    %1427 = vmatprep.subr.bf16.mxu0 0
    %1428 = vmatpush1.bf16.msra.mxu0 0
    %1429 = vmatprep.subr.bf16.mxu0 0
    %1430 = vmatpush1.bf16.msra.mxu0 0
    %1431 = vmatprep.subr.bf16.mxu0 0
    %1432 = vmatpush1.bf16.msra.mxu0 0
    %1433 = vmatprep.subr.bf16.mxu0 0
    %1434 = vmatpush1.bf16.msra.mxu0 0
    %1435 = vmatprep.subr.bf16.mxu0 0
    %1436 = vmatpush1.bf16.msra.mxu0 0
    %1437 = vmatprep.subr.bf16.mxu0 0
    %1438 = vmatpush1.bf16.msra.mxu0 0
    %1439 = vmatprep.subr.bf16.mxu0 0
    %1440 = vmatpush1.bf16.msra.mxu0 0
    %1441 = vmatprep.subr.bf16.mxu0 0
    %1442 = vmatpush1.bf16.msra.mxu0 0
    %1443 = vmatprep.subr.bf16.mxu0 0
    %1444 = vmatpush1.bf16.msra.mxu0 0
    %1445 = vmatprep.subr.bf16.mxu0 0
    %1446 = vmatpush1.bf16.msra.mxu0 0
    %1447 = vmatprep.subr.bf16.mxu0 0
    %1448 = vmatpush1.bf16.msra.mxu0 0
    %1449 = vmatprep.subr.bf16.mxu0 0
    %1450 = vmatpush1.bf16.msra.mxu0 0
    %1451 = vmatprep.mubr.bf16.mxu0 0
    %1452 = vmatmul.mubr.bf16.gmra.mrb[0].mxu0 %v1414
    %v1453 = vpop.f32.mrb[0].mxu0
    %v1454 = vadd.f32 0.0, %v1453
    %v1455 = vpop.f32.mrb[0].mxu0
    %v1456 = vpop.f32.mrb[0].mxu0
    %v1457 = vadd.f32 0.0, %v1456
    %v1458 = vpop.f32.mrb[0].mxu0
    %1459 = vmatprep.mubr.bf16.mxu0 0
    %1460 = vmatmul.mubr.bf16.gmra.mrb[0].mxu0 %v1417
    %v1461 = vpop.f32.mrb[0].mxu0
    %v1462 = vadd.f32 0.0, %v1461
    %v1463 = vpop.f32.mrb[0].mxu0
    %v1464 = vpop.f32.mrb[0].mxu0
    %v1465 = vadd.f32 0.0, %v1464
    %v1466 = vpop.f32.mrb[0].mxu0
    %1467 = vdwg.mxu0
    %v1470 = vunpack.c.l.b16 %v1082
    %v1471 = vunpack.c.l.b16 %v1083
    %v1472 = vpack.c.b16 %v1471, %v1470
    %v1475 = vsel %vm174, %v1050, 0
    %v1478 = vsel %vm174, %v1051, 0
    %1480 = vmatprep.subr.bf16.mxu0 0
    %1481 = vmatpush1.bf16.msra.mxu0 %v1472
    %1482 = vmatprep.subr.bf16.mxu0 0
    %1483 = vmatpush1.bf16.msra.mxu0 0
    %1484 = vmatprep.subr.bf16.mxu0 0
    %1485 = vmatpush1.bf16.msra.mxu0 0
    %1486 = vmatprep.subr.bf16.mxu0 0
    %1487 = vmatpush1.bf16.msra.mxu0 0
    %1488 = vmatprep.subr.bf16.mxu0 0
    %1489 = vmatpush1.bf16.msra.mxu0 0
    %1490 = vmatprep.subr.bf16.mxu0 0
    %1491 = vmatpush1.bf16.msra.mxu0 0
    %1492 = vmatprep.subr.bf16.mxu0 0
    %1493 = vmatpush1.bf16.msra.mxu0 0
    %1494 = vmatprep.subr.bf16.mxu0 0
    %1495 = vmatpush1.bf16.msra.mxu0 0
    %1496 = vmatprep.subr.bf16.mxu0 0
    %1497 = vmatpush1.bf16.msra.mxu0 0
    %1498 = vmatprep.subr.bf16.mxu0 0
    %1499 = vmatpush1.bf16.msra.mxu0 0
    %1500 = vmatprep.subr.bf16.mxu0 0
    %1501 = vmatpush1.bf16.msra.mxu0 0
    %1502 = vmatprep.subr.bf16.mxu0 0
    %1503 = vmatpush1.bf16.msra.mxu0 0
    %1504 = vmatprep.subr.bf16.mxu0 0
    %1505 = vmatpush1.bf16.msra.mxu0 0
    %1506 = vmatprep.subr.bf16.mxu0 0
    %1507 = vmatpush1.bf16.msra.mxu0 0
    %1508 = vmatprep.subr.bf16.mxu0 0
    %1509 = vmatpush1.bf16.msra.mxu0 0
    %1510 = vmatprep.subr.bf16.mxu0 0
    %1511 = vmatpush1.bf16.msra.mxu0 0
    %1512 = vmatprep.mubr.bf16.mxu0 0
    %1513 = vmatmul.mubr.bf16.gmra.mrb[0].mxu0 %v1475
    %v1514 = vpop.f32.mrb[0].mxu0
    %v1515 = vadd.f32 0.0, %v1514
    %v1516 = vpop.f32.mrb[0].mxu0
    %v1517 = vpop.f32.mrb[0].mxu0
    %v1518 = vadd.f32 0.0, %v1517
    %v1519 = vpop.f32.mrb[0].mxu0
    %1520 = vmatprep.mubr.bf16.mxu0 0
    %1521 = vmatmul.mubr.bf16.gmra.mrb[0].mxu0 %v1478
    %v1522 = vpop.f32.mrb[0].mxu0
    %v1523 = vadd.f32 0.0, %v1522
    %v1524 = vpop.f32.mrb[0].mxu0
    %v1525 = vpop.f32.mrb[0].mxu0
    %v1526 = vadd.f32 0.0, %v1525
    %v1527 = vpop.f32.mrb[0].mxu0
    %1528 = vdwg.mxu0
    %v1531 = vunpack.c.l.b16 %v1084
    %v1532 = vunpack.c.l.b16 %v1085
    %v1533 = vpack.c.b16 %v1532, %v1531
    %v1536 = vsel %vm174, %v1052, 0
    %v1539 = vsel %vm174, %v1053, 0
    %1541 = vmatprep.subr.bf16.mxu0 0
    %1542 = vmatpush1.bf16.msra.mxu0 %v1533
    %1543 = vmatprep.subr.bf16.mxu0 0
    %1544 = vmatpush1.bf16.msra.mxu0 0
    %1545 = vmatprep.subr.bf16.mxu0 0
    %1546 = vmatpush1.bf16.msra.mxu0 0
    %1547 = vmatprep.subr.bf16.mxu0 0
    %1548 = vmatpush1.bf16.msra.mxu0 0
    %1549 = vmatprep.subr.bf16.mxu0 0
    %1550 = vmatpush1.bf16.msra.mxu0 0
    %1551 = vmatprep.subr.bf16.mxu0 0
    %1552 = vmatpush1.bf16.msra.mxu0 0
    %1553 = vmatprep.subr.bf16.mxu0 0
    %1554 = vmatpush1.bf16.msra.mxu0 0
    %1555 = vmatprep.subr.bf16.mxu0 0
    %1556 = vmatpush1.bf16.msra.mxu0 0
    %1557 = vmatprep.subr.bf16.mxu0 0
    %1558 = vmatpush1.bf16.msra.mxu0 0
    %1559 = vmatprep.subr.bf16.mxu0 0
    %1560 = vmatpush1.bf16.msra.mxu0 0
    %1561 = vmatprep.subr.bf16.mxu0 0
    %1562 = vmatpush1.bf16.msra.mxu0 0
    %1563 = vmatprep.subr.bf16.mxu0 0
    %1564 = vmatpush1.bf16.msra.mxu0 0
    %1565 = vmatprep.subr.bf16.mxu0 0
    %1566 = vmatpush1.bf16.msra.mxu0 0
    %1567 = vmatprep.subr.bf16.mxu0 0
    %1568 = vmatpush1.bf16.msra.mxu0 0
    %1569 = vmatprep.subr.bf16.mxu0 0
    %1570 = vmatpush1.bf16.msra.mxu0 0
    %1571 = vmatprep.subr.bf16.mxu0 0
    %1572 = vmatpush1.bf16.msra.mxu0 0
    %1573 = vmatprep.mubr.bf16.mxu0 0
    %1574 = vmatmul.mubr.bf16.gmra.mrb[0].mxu0 %v1536
    %v1575 = vpop.f32.mrb[0].mxu0
    %v1576 = vadd.f32 0.0, %v1575
    %v1577 = vpop.f32.mrb[0].mxu0
    %v1578 = vpop.f32.mrb[0].mxu0
    %v1579 = vadd.f32 0.0, %v1578
    %v1580 = vpop.f32.mrb[0].mxu0
    %1581 = vmatprep.mubr.bf16.mxu0 0
    %1582 = vmatmul.mubr.bf16.gmra.mrb[0].mxu0 %v1539
    %v1583 = vpop.f32.mrb[0].mxu0
    %v1584 = vadd.f32 0.0, %v1583
    %v1585 = vpop.f32.mrb[0].mxu0
    %v1586 = vpop.f32.mrb[0].mxu0
    %v1587 = vadd.f32 0.0, %v1586
    %v1588 = vpop.f32.mrb[0].mxu0
    %1589 = vdwg.mxu0
    %v1592 = vunpack.c.l.b16 %v1086
    %v1593 = vunpack.c.l.b16 %v1087
    %v1594 = vpack.c.b16 %v1593, %v1592
    %v1597 = vsel %vm174, %v1054, 0
    %v1600 = vsel %vm174, %v1055, 0
    %1602 = vmatprep.subr.bf16.mxu0 0
    %1603 = vmatpush1.bf16.msra.mxu0 %v1594
    %1604 = vmatprep.subr.bf16.mxu0 0
    %1605 = vmatpush1.bf16.msra.mxu0 0
    %1606 = vmatprep.subr.bf16.mxu0 0
    %1607 = vmatpush1.bf16.msra.mxu0 0
    %1608 = vmatprep.subr.bf16.mxu0 0
    %1609 = vmatpush1.bf16.msra.mxu0 0
    %1610 = vmatprep.subr.bf16.mxu0 0
    %1611 = vmatpush1.bf16.msra.mxu0 0
    %1612 = vmatprep.subr.bf16.mxu0 0
    %1613 = vmatpush1.bf16.msra.mxu0 0
    %1614 = vmatprep.subr.bf16.mxu0 0
    %1615 = vmatpush1.bf16.msra.mxu0 0
    %1616 = vmatprep.subr.bf16.mxu0 0
    %1617 = vmatpush1.bf16.msra.mxu0 0
    %1618 = vmatprep.subr.bf16.mxu0 0
    %1619 = vmatpush1.bf16.msra.mxu0 0
    %1620 = vmatprep.subr.bf16.mxu0 0
    %1621 = vmatpush1.bf16.msra.mxu0 0
    %1622 = vmatprep.subr.bf16.mxu0 0
    %1623 = vmatpush1.bf16.msra.mxu0 0
    %1624 = vmatprep.subr.bf16.mxu0 0
    %1625 = vmatpush1.bf16.msra.mxu0 0
    %1626 = vmatprep.subr.bf16.mxu0 0
    %1627 = vmatpush1.bf16.msra.mxu0 0
    %1628 = vmatprep.subr.bf16.mxu0 0
    %1629 = vmatpush1.bf16.msra.mxu0 0
    %1630 = vmatprep.subr.bf16.mxu0 0
    %1631 = vmatpush1.bf16.msra.mxu0 0
    %1632 = vmatprep.subr.bf16.mxu0 0
    %1633 = vmatpush1.bf16.msra.mxu0 0
    %1634 = vmatprep.mubr.bf16.mxu0 0
    %1635 = vmatmul.mubr.bf16.gmra.mrb[0].mxu0 %v1597
    %v1636 = vpop.f32.mrb[0].mxu0
    %v1637 = vadd.f32 0.0, %v1636
    %v1638 = vpop.f32.mrb[0].mxu0
    %v1639 = vpop.f32.mrb[0].mxu0
    %v1640 = vadd.f32 0.0, %v1639
    %v1641 = vpop.f32.mrb[0].mxu0
    %1642 = vmatprep.mubr.bf16.mxu0 0
    %1643 = vmatmul.mubr.bf16.gmra.mrb[0].mxu0 %v1600
    %v1644 = vpop.f32.mrb[0].mxu0
    %v1645 = vadd.f32 0.0, %v1644
    %v1646 = vpop.f32.mrb[0].mxu0
    %v1647 = vpop.f32.mrb[0].mxu0
    %v1648 = vadd.f32 0.0, %v1647
    %v1649 = vpop.f32.mrb[0].mxu0
    %1650 = vdwg.mxu0
    %v1653 = vunpack.c.l.b16 %v1088
    %v1654 = vunpack.c.l.b16 %v1089
    %v1655 = vpack.c.b16 %v1654, %v1653
    %v1658 = vsel %vm174, %v1056, 0
    %v1661 = vsel %vm174, %v1057, 0
    %1663 = vmatprep.subr.bf16.mxu0 0
    %1664 = vmatpush1.bf16.msra.mxu0 %v1655
    %1665 = vmatprep.subr.bf16.mxu0 0
    %1666 = vmatpush1.bf16.msra.mxu0 0
    %1667 = vmatprep.subr.bf16.mxu0 0
    %1668 = vmatpush1.bf16.msra.mxu0 0
    %1669 = vmatprep.subr.bf16.mxu0 0
    %1670 = vmatpush1.bf16.msra.mxu0 0
    %1671 = vmatprep.subr.bf16.mxu0 0
    %1672 = vmatpush1.bf16.msra.mxu0 0
    %1673 = vmatprep.subr.bf16.mxu0 0
    %1674 = vmatpush1.bf16.msra.mxu0 0
    %1675 = vmatprep.subr.bf16.mxu0 0
    %1676 = vmatpush1.bf16.msra.mxu0 0
    %1677 = vmatprep.subr.bf16.mxu0 0
    %1678 = vmatpush1.bf16.msra.mxu0 0
    %1679 = vmatprep.subr.bf16.mxu0 0
    %1680 = vmatpush1.bf16.msra.mxu0 0
    %1681 = vmatprep.subr.bf16.mxu0 0
    %1682 = vmatpush1.bf16.msra.mxu0 0
    %1683 = vmatprep.subr.bf16.mxu0 0
    %1684 = vmatpush1.bf16.msra.mxu0 0
    %1685 = vmatprep.subr.bf16.mxu0 0
    %1686 = vmatpush1.bf16.msra.mxu0 0
    %1687 = vmatprep.subr.bf16.mxu0 0
    %1688 = vmatpush1.bf16.msra.mxu0 0
    %1689 = vmatprep.subr.bf16.mxu0 0
    %1690 = vmatpush1.bf16.msra.mxu0 0
    %1691 = vmatprep.subr.bf16.mxu0 0
    %1692 = vmatpush1.bf16.msra.mxu0 0
    %1693 = vmatprep.subr.bf16.mxu0 0
    %1694 = vmatpush1.bf16.msra.mxu0 0
    %1695 = vmatprep.mubr.bf16.mxu0 0
    %1696 = vmatmul.mubr.bf16.gmra.mrb[0].mxu0 %v1658
    %v1697 = vpop.f32.mrb[0].mxu0
    %v1698 = vadd.f32 0.0, %v1697
    %v1699 = vpop.f32.mrb[0].mxu0
    %v1700 = vpop.f32.mrb[0].mxu0
    %v1701 = vadd.f32 0.0, %v1700
    %v1702 = vpop.f32.mrb[0].mxu0
    %1703 = vmatprep.mubr.bf16.mxu0 0
    %1704 = vmatmul.mubr.bf16.gmra.mrb[0].mxu0 %v1661
    %v1705 = vpop.f32.mrb[0].mxu0
    %v1706 = vadd.f32 0.0, %v1705
    %v1707 = vpop.f32.mrb[0].mxu0
    %v1708 = vpop.f32.mrb[0].mxu0
    %v1709 = vadd.f32 0.0, %v1708
    %v1710 = vpop.f32.mrb[0].mxu0
    %1711 = vdwg.mxu0
    %v1714 = vunpack.c.l.b16 %v1090
    %v1715 = vunpack.c.l.b16 %v1091
    %v1716 = vpack.c.b16 %v1715, %v1714
    %v1719 = vsel %vm174, %v1058, 0
    %v1722 = vsel %vm174, %v1059, 0
    %1724 = vmatprep.subr.bf16.mxu0 0
    %1725 = vmatpush1.bf16.msra.mxu0 %v1716
    %1726 = vmatprep.subr.bf16.mxu0 0
    %1727 = vmatpush1.bf16.msra.mxu0 0
    %1728 = vmatprep.subr.bf16.mxu0 0
    %1729 = vmatpush1.bf16.msra.mxu0 0
    %1730 = vmatprep.subr.bf16.mxu0 0
    %1731 = vmatpush1.bf16.msra.mxu0 0
    %1732 = vmatprep.subr.bf16.mxu0 0
    %1733 = vmatpush1.bf16.msra.mxu0 0
    %1734 = vmatprep.subr.bf16.mxu0 0
    %1735 = vmatpush1.bf16.msra.mxu0 0
    %1736 = vmatprep.subr.bf16.mxu0 0
    %1737 = vmatpush1.bf16.msra.mxu0 0
    %1738 = vmatprep.subr.bf16.mxu0 0
    %1739 = vmatpush1.bf16.msra.mxu0 0
    %1740 = vmatprep.subr.bf16.mxu0 0
    %1741 = vmatpush1.bf16.msra.mxu0 0
    %1742 = vmatprep.subr.bf16.mxu0 0
    %1743 = vmatpush1.bf16.msra.mxu0 0
    %1744 = vmatprep.subr.bf16.mxu0 0
    %1745 = vmatpush1.bf16.msra.mxu0 0
    %1746 = vmatprep.subr.bf16.mxu0 0
    %1747 = vmatpush1.bf16.msra.mxu0 0
    %1748 = vmatprep.subr.bf16.mxu0 0
    %1749 = vmatpush1.bf16.msra.mxu0 0
    %1750 = vmatprep.subr.bf16.mxu0 0
    %1751 = vmatpush1.bf16.msra.mxu0 0
    %1752 = vmatprep.subr.bf16.mxu0 0
    %1753 = vmatpush1.bf16.msra.mxu0 0
    %1754 = vmatprep.subr.bf16.mxu0 0
    %1755 = vmatpush1.bf16.msra.mxu0 0
    %1756 = vmatprep.mubr.bf16.mxu0 0
    %1757 = vmatmul.mubr.bf16.gmra.mrb[0].mxu0 %v1719
    %v1758 = vpop.f32.mrb[0].mxu0
    %v1759 = vadd.f32 0.0, %v1758
    %v1760 = vpop.f32.mrb[0].mxu0
    %v1761 = vpop.f32.mrb[0].mxu0
    %v1762 = vadd.f32 0.0, %v1761
    %v1763 = vpop.f32.mrb[0].mxu0
    %1764 = vmatprep.mubr.bf16.mxu0 0
    %1765 = vmatmul.mubr.bf16.gmra.mrb[0].mxu0 %v1722
    %v1766 = vpop.f32.mrb[0].mxu0
    %v1767 = vadd.f32 0.0, %v1766
    %v1768 = vpop.f32.mrb[0].mxu0
    %v1769 = vpop.f32.mrb[0].mxu0
    %v1770 = vadd.f32 0.0, %v1769
    %v1771 = vpop.f32.mrb[0].mxu0
    %1772 = vdwg.mxu0
    %v1775 = vunpack.c.l.b16 %v1092
    %v1776 = vunpack.c.l.b16 %v1093
    %v1777 = vpack.c.b16 %v1776, %v1775
    %v1780 = vsel %vm174, %v1060, 0
    %v1783 = vsel %vm174, %v1061, 0
    %1785 = vmatprep.subr.bf16.mxu0 0
    %1786 = vmatpush1.bf16.msra.mxu0 %v1777
    %1787 = vmatprep.subr.bf16.mxu0 0
    %1788 = vmatpush1.bf16.msra.mxu0 0
    %1789 = vmatprep.subr.bf16.mxu0 0
    %1790 = vmatpush1.bf16.msra.mxu0 0
    %1791 = vmatprep.subr.bf16.mxu0 0
    %1792 = vmatpush1.bf16.msra.mxu0 0
    %1793 = vmatprep.subr.bf16.mxu0 0
    %1794 = vmatpush1.bf16.msra.mxu0 0
    %1795 = vmatprep.subr.bf16.mxu0 0
    %1796 = vmatpush1.bf16.msra.mxu0 0
    %1797 = vmatprep.subr.bf16.mxu0 0
    %1798 = vmatpush1.bf16.msra.mxu0 0
    %1799 = vmatprep.subr.bf16.mxu0 0
    %1800 = vmatpush1.bf16.msra.mxu0 0
    %1801 = vmatprep.subr.bf16.mxu0 0
    %1802 = vmatpush1.bf16.msra.mxu0 0
    %1803 = vmatprep.subr.bf16.mxu0 0
    %1804 = vmatpush1.bf16.msra.mxu0 0
    %1805 = vmatprep.subr.bf16.mxu0 0
    %1806 = vmatpush1.bf16.msra.mxu0 0
    %1807 = vmatprep.subr.bf16.mxu0 0
    %1808 = vmatpush1.bf16.msra.mxu0 0
    %1809 = vmatprep.subr.bf16.mxu0 0
    %1810 = vmatpush1.bf16.msra.mxu0 0
    %1811 = vmatprep.subr.bf16.mxu0 0
    %1812 = vmatpush1.bf16.msra.mxu0 0
    %1813 = vmatprep.subr.bf16.mxu0 0
    %1814 = vmatpush1.bf16.msra.mxu0 0
    %1815 = vmatprep.subr.bf16.mxu0 0
    %1816 = vmatpush1.bf16.msra.mxu0 0
    %1817 = vmatprep.mubr.bf16.mxu0 0
    %1818 = vmatmul.mubr.bf16.gmra.mrb[0].mxu0 %v1780
    %v1819 = vpop.f32.mrb[0].mxu0
    %v1820 = vadd.f32 0.0, %v1819
    %v1821 = vpop.f32.mrb[0].mxu0
    %v1822 = vpop.f32.mrb[0].mxu0
    %v1823 = vadd.f32 0.0, %v1822
    %v1824 = vpop.f32.mrb[0].mxu0
    %1825 = vmatprep.mubr.bf16.mxu0 0
    %1826 = vmatmul.mubr.bf16.gmra.mrb[0].mxu0 %v1783
    %v1827 = vpop.f32.mrb[0].mxu0
    %v1828 = vadd.f32 0.0, %v1827
    %v1829 = vpop.f32.mrb[0].mxu0
    %v1830 = vpop.f32.mrb[0].mxu0
    %v1831 = vadd.f32 0.0, %v1830
    %v1832 = vpop.f32.mrb[0].mxu0
    %1833 = vdwg.mxu0
    %v1836 = vunpack.c.l.b16 %v1094
    %v1837 = vunpack.c.l.b16 %v1095
    %v1838 = vpack.c.b16 %v1837, %v1836
    %v1841 = vsel %vm174, %v1062, 0
    %v1844 = vsel %vm174, %v1063, 0
    %1846 = vmatprep.subr.bf16.mxu0 0
    %1847 = vmatpush1.bf16.msra.mxu0 %v1838
    %1848 = vmatprep.subr.bf16.mxu0 0
    %1849 = vmatpush1.bf16.msra.mxu0 0
    %1850 = vmatprep.subr.bf16.mxu0 0
    %1851 = vmatpush1.bf16.msra.mxu0 0
    %1852 = vmatprep.subr.bf16.mxu0 0
    %1853 = vmatpush1.bf16.msra.mxu0 0
    %1854 = vmatprep.subr.bf16.mxu0 0
    %1855 = vmatpush1.bf16.msra.mxu0 0
    %1856 = vmatprep.subr.bf16.mxu0 0
    %1857 = vmatpush1.bf16.msra.mxu0 0
    %1858 = vmatprep.subr.bf16.mxu0 0
    %1859 = vmatpush1.bf16.msra.mxu0 0
    %1860 = vmatprep.subr.bf16.mxu0 0
    %1861 = vmatpush1.bf16.msra.mxu0 0
    %1862 = vmatprep.subr.bf16.mxu0 0
    %1863 = vmatpush1.bf16.msra.mxu0 0
    %1864 = vmatprep.subr.bf16.mxu0 0
    %1865 = vmatpush1.bf16.msra.mxu0 0
    %1866 = vmatprep.subr.bf16.mxu0 0
    %1867 = vmatpush1.bf16.msra.mxu0 0
    %1868 = vmatprep.subr.bf16.mxu0 0
    %1869 = vmatpush1.bf16.msra.mxu0 0
    %1870 = vmatprep.subr.bf16.mxu0 0
    %1871 = vmatpush1.bf16.msra.mxu0 0
    %1872 = vmatprep.subr.bf16.mxu0 0
    %1873 = vmatpush1.bf16.msra.mxu0 0
    %1874 = vmatprep.subr.bf16.mxu0 0
    %1875 = vmatpush1.bf16.msra.mxu0 0
    %1876 = vmatprep.subr.bf16.mxu0 0
    %1877 = vmatpush1.bf16.msra.mxu0 0
    %1878 = vmatprep.mubr.bf16.mxu0 0
    %1879 = vmatmul.mubr.bf16.gmra.mrb[0].mxu0 %v1841
    %v1880 = vpop.f32.mrb[0].mxu0
    %v1881 = vadd.f32 0.0, %v1880
    %v1882 = vpop.f32.mrb[0].mxu0
    %v1883 = vpop.f32.mrb[0].mxu0
    %v1884 = vadd.f32 0.0, %v1883
    %v1885 = vpop.f32.mrb[0].mxu0
    %1886 = vmatprep.mubr.bf16.mxu0 0
    %1887 = vmatmul.mubr.bf16.gmra.mrb[0].mxu0 %v1844
    %v1888 = vpop.f32.mrb[0].mxu0
    %v1889 = vadd.f32 0.0, %v1888
    %v1890 = vpop.f32.mrb[0].mxu0
    %v1891 = vpop.f32.mrb[0].mxu0
    %v1892 = vadd.f32 0.0, %v1891
    %v1893 = vpop.f32.mrb[0].mxu0
    %1894 = vdwg.mxu0
    %v1897 = vunpack.c.l.b16 %v1096
    %v1898 = vunpack.c.l.b16 %v1097
    %v1899 = vpack.c.b16 %v1898, %v1897
    %v1902 = vsel %vm174, %v1064, 0
    %v1905 = vsel %vm174, %v1065, 0
    %1907 = vmatprep.subr.bf16.mxu0 0
    %1908 = vmatpush1.bf16.msra.mxu0 %v1899
    %1909 = vmatprep.subr.bf16.mxu0 0
    %1910 = vmatpush1.bf16.msra.mxu0 0
    %1911 = vmatprep.subr.bf16.mxu0 0
    %1912 = vmatpush1.bf16.msra.mxu0 0
    %1913 = vmatprep.subr.bf16.mxu0 0
    %1914 = vmatpush1.bf16.msra.mxu0 0
    %1915 = vmatprep.subr.bf16.mxu0 0
    %1916 = vmatpush1.bf16.msra.mxu0 0
    %1917 = vmatprep.subr.bf16.mxu0 0
    %1918 = vmatpush1.bf16.msra.mxu0 0
    %1919 = vmatprep.subr.bf16.mxu0 0
    %1920 = vmatpush1.bf16.msra.mxu0 0
    %1921 = vmatprep.subr.bf16.mxu0 0
    %1922 = vmatpush1.bf16.msra.mxu0 0
    %1923 = vmatprep.subr.bf16.mxu0 0
    %1924 = vmatpush1.bf16.msra.mxu0 0
    %1925 = vmatprep.subr.bf16.mxu0 0
    %1926 = vmatpush1.bf16.msra.mxu0 0
    %1927 = vmatprep.subr.bf16.mxu0 0
    %1928 = vmatpush1.bf16.msra.mxu0 0
    %1929 = vmatprep.subr.bf16.mxu0 0
    %1930 = vmatpush1.bf16.msra.mxu0 0
    %1931 = vmatprep.subr.bf16.mxu0 0
    %1932 = vmatpush1.bf16.msra.mxu0 0
    %1933 = vmatprep.subr.bf16.mxu0 0
    %1934 = vmatpush1.bf16.msra.mxu0 0
    %1935 = vmatprep.subr.bf16.mxu0 0
    %1936 = vmatpush1.bf16.msra.mxu0 0
    %1937 = vmatprep.subr.bf16.mxu0 0
    %1938 = vmatpush1.bf16.msra.mxu0 0
    %1939 = vmatprep.mubr.bf16.mxu0 0
    %1940 = vmatmul.mubr.bf16.gmra.mrb[0].mxu0 %v1902
    %v1941 = vpop.f32.mrb[0].mxu0
    %v1942 = vadd.f32 0.0, %v1941
    %v1943 = vpop.f32.mrb[0].mxu0
    %v1944 = vpop.f32.mrb[0].mxu0
    %v1945 = vadd.f32 0.0, %v1944
    %v1946 = vpop.f32.mrb[0].mxu0
    %1947 = vmatprep.mubr.bf16.mxu0 0
    %1948 = vmatmul.mubr.bf16.gmra.mrb[0].mxu0 %v1905
    %v1949 = vpop.f32.mrb[0].mxu0
    %v1950 = vadd.f32 0.0, %v1949
    %v1951 = vpop.f32.mrb[0].mxu0
    %v1952 = vpop.f32.mrb[0].mxu0
    %v1953 = vadd.f32 0.0, %v1952
    %v1954 = vpop.f32.mrb[0].mxu0
    %1955 = vdwg.mxu0
    %v1958 = vunpack.c.l.b16 %v1098
    %v1959 = vunpack.c.l.b16 %v1099
    %v1960 = vpack.c.b16 %v1959, %v1958
    %v1963 = vsel %vm174, %v1066, 0
    %v1966 = vsel %vm174, %v1067, 0
    %1968 = vmatprep.subr.bf16.mxu0 0
    %1969 = vmatpush1.bf16.msra.mxu0 %v1960
    %1970 = vmatprep.subr.bf16.mxu0 0
    %1971 = vmatpush1.bf16.msra.mxu0 0
    %1972 = vmatprep.subr.bf16.mxu0 0
    %1973 = vmatpush1.bf16.msra.mxu0 0
    %1974 = vmatprep.subr.bf16.mxu0 0
    %1975 = vmatpush1.bf16.msra.mxu0 0
    %1976 = vmatprep.subr.bf16.mxu0 0
    %1977 = vmatpush1.bf16.msra.mxu0 0
    %1978 = vmatprep.subr.bf16.mxu0 0
    %1979 = vmatpush1.bf16.msra.mxu0 0
    %1980 = vmatprep.subr.bf16.mxu0 0
    %1981 = vmatpush1.bf16.msra.mxu0 0
    %1982 = vmatprep.subr.bf16.mxu0 0
    %1983 = vmatpush1.bf16.msra.mxu0 0
    %1984 = vmatprep.subr.bf16.mxu0 0
    %1985 = vmatpush1.bf16.msra.mxu0 0
    %1986 = vmatprep.subr.bf16.mxu0 0
    %1987 = vmatpush1.bf16.msra.mxu0 0
    %1988 = vmatprep.subr.bf16.mxu0 0
    %1989 = vmatpush1.bf16.msra.mxu0 0
    %1990 = vmatprep.subr.bf16.mxu0 0
    %1991 = vmatpush1.bf16.msra.mxu0 0
    %1992 = vmatprep.subr.bf16.mxu0 0
    %1993 = vmatpush1.bf16.msra.mxu0 0
    %1994 = vmatprep.subr.bf16.mxu0 0
    %1995 = vmatpush1.bf16.msra.mxu0 0
    %1996 = vmatprep.subr.bf16.mxu0 0
    %1997 = vmatpush1.bf16.msra.mxu0 0
    %1998 = vmatprep.subr.bf16.mxu0 0
    %1999 = vmatpush1.bf16.msra.mxu0 0
    %2000 = vmatprep.mubr.bf16.mxu0 0
    %2001 = vmatmul.mubr.bf16.gmra.mrb[0].mxu0 %v1963
    %v2002 = vpop.f32.mrb[0].mxu0
    %v2003 = vadd.f32 0.0, %v2002
    %v2004 = vpop.f32.mrb[0].mxu0
    %v2005 = vpop.f32.mrb[0].mxu0
    %v2006 = vadd.f32 0.0, %v2005
    %v2007 = vpop.f32.mrb[0].mxu0
    %2008 = vmatprep.mubr.bf16.mxu0 0
    %2009 = vmatmul.mubr.bf16.gmra.mrb[0].mxu0 %v1966
    %v2010 = vpop.f32.mrb[0].mxu0
    %v2011 = vadd.f32 0.0, %v2010
    %v2012 = vpop.f32.mrb[0].mxu0
    %v2013 = vpop.f32.mrb[0].mxu0
    %v2014 = vadd.f32 0.0, %v2013
    %v2015 = vpop.f32.mrb[0].mxu0
    %2016 = vdwg.mxu0
    %v2019 = vunpack.c.l.b16 %v1100
    %v2020 = vunpack.c.l.b16 %v1101
    %v2021 = vpack.c.b16 %v2020, %v2019
    %v2024 = vsel %vm174, %v1068, 0
    %v2027 = vsel %vm174, %v1069, 0
    %2029 = vmatprep.subr.bf16.mxu0 0
    %2030 = vmatpush1.bf16.msra.mxu0 %v2021
    %2031 = vmatprep.subr.bf16.mxu0 0
    %2032 = vmatpush1.bf16.msra.mxu0 0
    %2033 = vmatprep.subr.bf16.mxu0 0
    %2034 = vmatpush1.bf16.msra.mxu0 0
    %2035 = vmatprep.subr.bf16.mxu0 0
    %2036 = vmatpush1.bf16.msra.mxu0 0
    %2037 = vmatprep.subr.bf16.mxu0 0
    %2038 = vmatpush1.bf16.msra.mxu0 0
    %2039 = vmatprep.subr.bf16.mxu0 0
    %2040 = vmatpush1.bf16.msra.mxu0 0
    %2041 = vmatprep.subr.bf16.mxu0 0
    %2042 = vmatpush1.bf16.msra.mxu0 0
    %2043 = vmatprep.subr.bf16.mxu0 0
    %2044 = vmatpush1.bf16.msra.mxu0 0
    %2045 = vmatprep.subr.bf16.mxu0 0
    %2046 = vmatpush1.bf16.msra.mxu0 0
    %2047 = vmatprep.subr.bf16.mxu0 0
    %2048 = vmatpush1.bf16.msra.mxu0 0
    %2049 = vmatprep.subr.bf16.mxu0 0
    %2050 = vmatpush1.bf16.msra.mxu0 0
    %2051 = vmatprep.subr.bf16.mxu0 0
    %2052 = vmatpush1.bf16.msra.mxu0 0
    %2053 = vmatprep.subr.bf16.mxu0 0
    %2054 = vmatpush1.bf16.msra.mxu0 0
    %2055 = vmatprep.subr.bf16.mxu0 0
    %2056 = vmatpush1.bf16.msra.mxu0 0
    %2057 = vmatprep.subr.bf16.mxu0 0
    %2058 = vmatpush1.bf16.msra.mxu0 0
    %2059 = vmatprep.subr.bf16.mxu0 0
    %2060 = vmatpush1.bf16.msra.mxu0 0
    %2061 = vmatprep.mubr.bf16.mxu0 0
    %2062 = vmatmul.mubr.bf16.gmra.mrb[0].mxu0 %v2024
    %v2063 = vpop.f32.mrb[0].mxu0
    %v2064 = vadd.f32 0.0, %v2063
    %v2065 = vpop.f32.mrb[0].mxu0
    %v2066 = vpop.f32.mrb[0].mxu0
    %v2067 = vadd.f32 0.0, %v2066
    %v2068 = vpop.f32.mrb[0].mxu0
    %2069 = vmatprep.mubr.bf16.mxu0 0
    %2070 = vmatmul.mubr.bf16.gmra.mrb[0].mxu0 %v2027
    %v2071 = vpop.f32.mrb[0].mxu0
    %v2072 = vadd.f32 0.0, %v2071
    %v2073 = vpop.f32.mrb[0].mxu0
    %v2074 = vpop.f32.mrb[0].mxu0
    %v2075 = vadd.f32 0.0, %v2074
    %v2076 = vpop.f32.mrb[0].mxu0
    %2077 = vdwg.mxu0
    %vm2078 = vcmask 261120
    %v2079 = vsel %vm2078, %v1149, 0.0
    %v2080 = vsel %vm2078, %v1210, 0.0
    %v2081 = vadd.f32 %v2079, %v2080
    %v2082 = vsel %vm2078, %v1271, 0.0
    %v2083 = vadd.f32 %v2081, %v2082
    %v2084 = vsel %vm2078, %v1332, 0.0
    %v2085 = vadd.f32 %v2083, %v2084
    %v2086 = vsel %vm2078, %v1393, 0.0
    %v2087 = vadd.f32 %v2085, %v2086
    %v2088 = vsel %vm2078, %v1454, 0.0
    %v2089 = vadd.f32 %v2087, %v2088
    %v2090 = vsel %vm2078, %v1515, 0.0
    %v2091 = vadd.f32 %v2089, %v2090
    %v2092 = vsel %vm2078, %v1576, 0.0
    %v2093 = vadd.f32 %v2091, %v2092
    %v2094 = vsel %vm2078, %v1637, 0.0
    %v2095 = vadd.f32 %v2093, %v2094
    %v2096 = vsel %vm2078, %v1698, 0.0
    %v2097 = vadd.f32 %v2095, %v2096
    %v2098 = vsel %vm2078, %v1759, 0.0
    %v2099 = vadd.f32 %v2097, %v2098
    %v2100 = vsel %vm2078, %v1820, 0.0
    %v2101 = vadd.f32 %v2099, %v2100
    %v2102 = vsel %vm2078, %v1881, 0.0
    %v2103 = vadd.f32 %v2101, %v2102
    %v2104 = vsel %vm2078, %v1942, 0.0
    %v2105 = vadd.f32 %v2103, %v2104
    %v2106 = vsel %vm2078, %v2003, 0.0
    %v2107 = vadd.f32 %v2105, %v2106
    %v2108 = vsel %vm2078, %v2064, 0.0
    %v2109 = vadd.f32 %v2107, %v2108
    %v2110 = vsel %vm2078, %v1152, 0.0
    %v2111 = vsel %vm2078, %v1213, 0.0
    %v2112 = vadd.f32 %v2110, %v2111
    %v2113 = vsel %vm2078, %v1274, 0.0
    %v2114 = vadd.f32 %v2112, %v2113
    %v2115 = vsel %vm2078, %v1335, 0.0
    %v2116 = vadd.f32 %v2114, %v2115
    %v2117 = vsel %vm2078, %v1396, 0.0
    %v2118 = vadd.f32 %v2116, %v2117
    %v2119 = vsel %vm2078, %v1457, 0.0
    %v2120 = vadd.f32 %v2118, %v2119
    %v2121 = vsel %vm2078, %v1518, 0.0
    %v2122 = vadd.f32 %v2120, %v2121
    %v2123 = vsel %vm2078, %v1579, 0.0
    %v2124 = vadd.f32 %v2122, %v2123
    %v2125 = vsel %vm2078, %v1640, 0.0
    %v2126 = vadd.f32 %v2124, %v2125
    %v2127 = vsel %vm2078, %v1701, 0.0
    %v2128 = vadd.f32 %v2126, %v2127
    %v2129 = vsel %vm2078, %v1762, 0.0
    %v2130 = vadd.f32 %v2128, %v2129
    %v2131 = vsel %vm2078, %v1823, 0.0
    %v2132 = vadd.f32 %v2130, %v2131
    %v2133 = vsel %vm2078, %v1884, 0.0
    %v2134 = vadd.f32 %v2132, %v2133
    %v2135 = vsel %vm2078, %v1945, 0.0
    %v2136 = vadd.f32 %v2134, %v2135
    %v2137 = vsel %vm2078, %v2006, 0.0
    %v2138 = vadd.f32 %v2136, %v2137
    %v2139 = vsel %vm2078, %v2067, 0.0
    %v2140 = vadd.f32 %v2138, %v2139
    %v2141 = vsel %vm2078, %v1157, 0.0
    %v2142 = vsel %vm2078, %v1218, 0.0
    %v2143 = vadd.f32 %v2141, %v2142
    %v2144 = vsel %vm2078, %v1279, 0.0
    %v2145 = vadd.f32 %v2143, %v2144
    %v2146 = vsel %vm2078, %v1340, 0.0
    %v2147 = vadd.f32 %v2145, %v2146
    %v2148 = vsel %vm2078, %v1401, 0.0
    %v2149 = vadd.f32 %v2147, %v2148
    %v2150 = vsel %vm2078, %v1462, 0.0
    %v2151 = vadd.f32 %v2149, %v2150
    %v2152 = vsel %vm2078, %v1523, 0.0
    %v2153 = vadd.f32 %v2151, %v2152
    %v2154 = vsel %vm2078, %v1584, 0.0
    %v2155 = vadd.f32 %v2153, %v2154
    %v2156 = vsel %vm2078, %v1645, 0.0
    %v2157 = vadd.f32 %v2155, %v2156
    %v2158 = vsel %vm2078, %v1706, 0.0
    %v2159 = vadd.f32 %v2157, %v2158
    %v2160 = vsel %vm2078, %v1767, 0.0
    %v2161 = vadd.f32 %v2159, %v2160
    %v2162 = vsel %vm2078, %v1828, 0.0
    %v2163 = vadd.f32 %v2161, %v2162
    %v2164 = vsel %vm2078, %v1889, 0.0
    %v2165 = vadd.f32 %v2163, %v2164
    %v2166 = vsel %vm2078, %v1950, 0.0
    %v2167 = vadd.f32 %v2165, %v2166
    %v2168 = vsel %vm2078, %v2011, 0.0
    %v2169 = vadd.f32 %v2167, %v2168
    %v2170 = vsel %vm2078, %v2072, 0.0
    %v2171 = vadd.f32 %v2169, %v2170
    %v2172 = vsel %vm2078, %v1160, 0.0
    %v2173 = vsel %vm2078, %v1221, 0.0
    %v2174 = vadd.f32 %v2172, %v2173
    %v2175 = vsel %vm2078, %v1282, 0.0
    %v2176 = vadd.f32 %v2174, %v2175
    %v2177 = vsel %vm2078, %v1343, 0.0
    %v2178 = vadd.f32 %v2176, %v2177
    %v2179 = vsel %vm2078, %v1404, 0.0
    %v2180 = vadd.f32 %v2178, %v2179
    %v2181 = vsel %vm2078, %v1465, 0.0
    %v2182 = vadd.f32 %v2180, %v2181
    %v2183 = vsel %vm2078, %v1526, 0.0
    %v2184 = vadd.f32 %v2182, %v2183
    %v2185 = vsel %vm2078, %v1587, 0.0
    %v2186 = vadd.f32 %v2184, %v2185
    %v2187 = vsel %vm2078, %v1648, 0.0
    %v2188 = vadd.f32 %v2186, %v2187
    %v2189 = vsel %vm2078, %v1709, 0.0
    %v2190 = vadd.f32 %v2188, %v2189
    %v2191 = vsel %vm2078, %v1770, 0.0
    %v2192 = vadd.f32 %v2190, %v2191
    %v2193 = vsel %vm2078, %v1831, 0.0
    %v2194 = vadd.f32 %v2192, %v2193
    %v2195 = vsel %vm2078, %v1892, 0.0
    %v2196 = vadd.f32 %v2194, %v2195
    %v2197 = vsel %vm2078, %v1953, 0.0
    %v2198 = vadd.f32 %v2196, %v2197
    %v2199 = vsel %vm2078, %v2014, 0.0
    %v2200 = vadd.f32 %v2198, %v2199
    %v2201 = vsel %vm2078, %v2075, 0.0
    %v2202 = vadd.f32 %v2200, %v2201
    %v2203 = vsel %vm2078, %v2109, 0.0
    %v2204 = vsel %vm2078, %v2140, 0.0
    %v2205 = vadd.f32 %v2203, %v2204
    %v2206 = vsel %vm2078, %v2171, 0.0
    %v2207 = vadd.f32 %v2205, %v2206
    %v2208 = vsel %vm2078, %v2202, 0.0
    %v2209 = vadd.f32 %v2207, %v2208
    %v2210 = vrot.slane %v2209, 4
    %v2211 = vadd.f32 %v2209, %v2210
    %v2212 = vrot.slane %v2211, 2
    %v2213 = vadd.f32 %v2211, %v2212
    %v2214 = vrot.slane %v2213, 1
    %v2215 = vadd.f32 %v2213, %v2214
    %v2216 = vrcp.pop 32.0
    %v2217 = vmul.f32 %v2215, %v2216
    %v2218 = vsub.f32 %v2109, %v2217
    %v2219 = vsub.f32 %v2140, %v2217
    %v2220 = vsub.f32 %v2171, %v2217
    %v2221 = vsub.f32 %v2202, %v2217
    %v2222 = vmul.f32 %v2218, %v2218
    %v2223 = vmul.f32 %v2219, %v2219
    %v2224 = vmul.f32 %v2220, %v2220
    %v2225 = vmul.f32 %v2221, %v2221
    %v2226 = vsel %vm2078, %v2222, 0.0
    %v2227 = vsel %vm2078, %v2223, 0.0
    %v2228 = vadd.f32 %v2226, %v2227
    %v2229 = vsel %vm2078, %v2224, 0.0
    %v2230 = vadd.f32 %v2228, %v2229
    %v2231 = vsel %vm2078, %v2225, 0.0
    %v2232 = vadd.f32 %v2230, %v2231
    %v2233 = vrot.slane %v2232, 4
    %v2234 = vadd.f32 %v2232, %v2233
    %v2235 = vrot.slane %v2234, 2
    %v2236 = vadd.f32 %v2234, %v2235
    %v2237 = vrot.slane %v2236, 1
    %v2238 = vadd.f32 %v2236, %v2237
    %v2239 = vmul.f32 %v2238, %v2216
    %v2240 = vadd.f32 %v2239, 1e-05
    %v2241 = vrsqrt.pop %v2240
    %v2242 = vmul.f32 %v2218, %v2241
    %v2243 = vmul.f32 %v2219, %v2241
    %v2244 = vmul.f32 %v2220, %v2241
    %v2245 = vmul.f32 %v2221, %v2241
    %v2246 = vld [vmem:[%s6] sm:$0x1]
    %v2248 = vlaneseq
    %v2249 = vshrl.u32 %v2248, 7
    %v2250 = vsub.s32 0, %v2249
    %v2251 = vrot.slane %v2246, %v2250
    %v2253 = vmul.f32 %v2242, %v2251
    %v2254 = vmul.f32 %v2243, %v2251
    %v2255 = vmul.f32 %v2244, %v2251
    %v2256 = vmul.f32 %v2245, %v2251
    %v2257 = vld [vmem:[%s7] sm:$0x1]
    %v2259 = vlaneseq
    %v2260 = vshrl.u32 %v2259, 7
    %v2261 = vsub.s32 0, %v2260
    %v2262 = vrot.slane %v2257, %v2261
    %v2264 = vadd.f32 %v2253, %v2262
    %v2265 = vadd.f32 %v2254, %v2262
    %v2266 = vadd.f32 %v2255, %v2262
    %v2267 = vadd.f32 %v2256, %v2262
    %v2268 = vmax.f32 %v2264, 0.0
    %v2269 = vmax.f32 %v2265, 0.0
    %v2270 = vmax.f32 %v2266, 0.0
    %v2271 = vmax.f32 %v2267, 0.0
    %v2272 = vld [vmem:[%s8] sm:$0xf]
    %v2273 = vld [vmem:[%s8 + $0x4] sm:$0xf]
    %v2274 = vld [vmem:[%s8 + $0x8] sm:$0xf]
    %v2275 = vld [vmem:[%s8 + $0xc] sm:$0xf]
    %v2276 = vld [vmem:[%s8 + $0x10] sm:$0xf]
    %v2277 = vld [vmem:[%s8 + $0x14] sm:$0xf]
    %v2278 = vld [vmem:[%s8 + $0x18] sm:$0xf]
    %v2279 = vld [vmem:[%s8 + $0x1c] sm:$0xf]
    %v2280 = vld [vmem:[%s8 + $0x20] sm:$0xf]
    %v2281 = vld [vmem:[%s8 + $0x24] sm:$0xf]
    %v2282 = vld [vmem:[%s8 + $0x28] sm:$0xf]
    %v2283 = vld [vmem:[%s8 + $0x2c] sm:$0xf]
    %v2284 = vld [vmem:[%s8 + $0x30] sm:$0xf]
    %v2285 = vld [vmem:[%s8 + $0x34] sm:$0xf]
    %v2286 = vld [vmem:[%s8 + $0x38] sm:$0xf]
    %v2287 = vld [vmem:[%s8 + $0x3c] sm:$0xf]
    %v2288 = vpack.c.bf16 %v2269, %v2268
    %v2289 = vpack.c.bf16 %v2271, %v2270
    %v2306 = vunpack.c.l.b16 %v2272
    %v2307 = vunpack.c.l.b16 %v2273
    %v2308 = vunpack.c.l.b16 %v2274
    %v2309 = vunpack.c.l.b16 %v2275
    %v2310 = vunpack.c.l.b16 %v2276
    %v2311 = vunpack.c.l.b16 %v2277
    %v2312 = vunpack.c.l.b16 %v2278
    %v2313 = vunpack.c.l.b16 %v2279
    %v2314 = vunpack.c.l.b16 %v2280
    %v2315 = vunpack.c.l.b16 %v2281
    %v2316 = vunpack.c.l.b16 %v2282
    %v2317 = vunpack.c.l.b16 %v2283
    %v2318 = vunpack.c.l.b16 %v2284
    %v2319 = vunpack.c.l.b16 %v2285
    %v2320 = vunpack.c.l.b16 %v2286
    %v2321 = vunpack.c.l.b16 %v2287
    %v2322 = vpack.c.b16 %v2307, %v2306
    %v2323 = vpack.c.b16 %v2309, %v2308
    %v2324 = vpack.c.b16 %v2311, %v2310
    %v2325 = vpack.c.b16 %v2313, %v2312
    %v2326 = vpack.c.b16 %v2315, %v2314
    %v2327 = vpack.c.b16 %v2317, %v2316
    %v2328 = vpack.c.b16 %v2319, %v2318
    %v2329 = vpack.c.b16 %v2321, %v2320
    %v2331 = vsel %vm2078, %v2322, 0
    %v2334 = vsel %vm2078, %v2323, 0
    %v2337 = vsel %vm2078, %v2324, 0
    %v2340 = vsel %vm2078, %v2325, 0
    %v2343 = vsel %vm2078, %v2326, 0
    %v2346 = vsel %vm2078, %v2327, 0
    %v2349 = vsel %vm2078, %v2328, 0
    %v2352 = vsel %vm2078, %v2329, 0
    %2354 = vmatprep.subr.bf16.mxu0 0
    %2355 = vmatpush1.bf16.msra.mxu0 %v2288
    %2356 = vmatprep.subr.bf16.mxu0 0
    %2357 = vmatpush1.bf16.msra.mxu0 %v2289
    %2358 = vmatprep.subr.bf16.mxu0 0
    %2359 = vmatpush1.bf16.msra.mxu0 0
    %2360 = vmatprep.subr.bf16.mxu0 0
    %2361 = vmatpush1.bf16.msra.mxu0 0
    %2362 = vmatprep.subr.bf16.mxu0 0
    %2363 = vmatpush1.bf16.msra.mxu0 0
    %2364 = vmatprep.subr.bf16.mxu0 0
    %2365 = vmatpush1.bf16.msra.mxu0 0
    %2366 = vmatprep.subr.bf16.mxu0 0
    %2367 = vmatpush1.bf16.msra.mxu0 0
    %2368 = vmatprep.subr.bf16.mxu0 0
    %2369 = vmatpush1.bf16.msra.mxu0 0
    %2370 = vmatprep.subr.bf16.mxu0 0
    %2371 = vmatpush1.bf16.msra.mxu0 0
    %2372 = vmatprep.subr.bf16.mxu0 0
    %2373 = vmatpush1.bf16.msra.mxu0 0
    %2374 = vmatprep.subr.bf16.mxu0 0
    %2375 = vmatpush1.bf16.msra.mxu0 0
    %2376 = vmatprep.subr.bf16.mxu0 0
    %2377 = vmatpush1.bf16.msra.mxu0 0
    %2378 = vmatprep.subr.bf16.mxu0 0
    %2379 = vmatpush1.bf16.msra.mxu0 0
    %2380 = vmatprep.subr.bf16.mxu0 0
    %2381 = vmatpush1.bf16.msra.mxu0 0
    %2382 = vmatprep.subr.bf16.mxu0 0
    %2383 = vmatpush1.bf16.msra.mxu0 0
    %2384 = vmatprep.subr.bf16.mxu0 0
    %2385 = vmatpush1.bf16.msra.mxu0 0
    %2386 = vmatprep.mubr.bf16.mxu0 0
    %2387 = vmatmul.mubr.bf16.gmra.mrb[0].mxu0 %v2331
    %v2388 = vpop.f32.mrb[0].mxu0
    %v2389 = vadd.f32 0.0, %v2388
    %v2390 = vpop.f32.mrb[0].mxu0
    %v2391 = vpop.f32.mrb[0].mxu0
    %v2392 = vadd.f32 0.0, %v2391
    %v2393 = vpop.f32.mrb[0].mxu0
    %2394 = vmatprep.mubr.bf16.mxu0 0
    %2395 = vmatmul.mubr.bf16.gmra.mrb[0].mxu0 %v2334
    %v2396 = vpop.f32.mrb[0].mxu0
    %v2397 = vadd.f32 0.0, %v2396
    %v2398 = vpop.f32.mrb[0].mxu0
    %v2399 = vpop.f32.mrb[0].mxu0
    %v2400 = vadd.f32 0.0, %v2399
    %v2401 = vpop.f32.mrb[0].mxu0
    %2402 = vmatprep.mubr.bf16.mxu0 0
    %2403 = vmatmul.mubr.bf16.gmra.mrb[0].mxu0 %v2337
    %v2404 = vpop.f32.mrb[0].mxu0
    %v2405 = vadd.f32 0.0, %v2404
    %v2406 = vpop.f32.mrb[0].mxu0
    %v2407 = vpop.f32.mrb[0].mxu0
    %v2408 = vadd.f32 0.0, %v2407
    %v2409 = vpop.f32.mrb[0].mxu0
    %2410 = vmatprep.mubr.bf16.mxu0 0
    %2411 = vmatmul.mubr.bf16.gmra.mrb[0].mxu0 %v2340
    %v2412 = vpop.f32.mrb[0].mxu0
    %v2413 = vadd.f32 0.0, %v2412
    %v2414 = vpop.f32.mrb[0].mxu0
    %v2415 = vpop.f32.mrb[0].mxu0
    %v2416 = vadd.f32 0.0, %v2415
    %v2417 = vpop.f32.mrb[0].mxu0
    %2418 = vmatprep.mubr.bf16.mxu0 0
    %2419 = vmatmul.mubr.bf16.gmra.mrb[0].mxu0 %v2343
    %v2420 = vpop.f32.mrb[0].mxu0
    %v2421 = vadd.f32 0.0, %v2420
    %v2422 = vpop.f32.mrb[0].mxu0
    %v2423 = vpop.f32.mrb[0].mxu0
    %v2424 = vadd.f32 0.0, %v2423
    %v2425 = vpop.f32.mrb[0].mxu0
    %2426 = vmatprep.mubr.bf16.mxu0 0
    %2427 = vmatmul.mubr.bf16.gmra.mrb[0].mxu0 %v2346
    %v2428 = vpop.f32.mrb[0].mxu0
    %v2429 = vadd.f32 0.0, %v2428
    %v2430 = vpop.f32.mrb[0].mxu0
    %v2431 = vpop.f32.mrb[0].mxu0
    %v2432 = vadd.f32 0.0, %v2431
    %v2433 = vpop.f32.mrb[0].mxu0
    %2434 = vmatprep.mubr.bf16.mxu0 0
    %2435 = vmatmul.mubr.bf16.gmra.mrb[0].mxu0 %v2349
    %v2436 = vpop.f32.mrb[0].mxu0
    %v2437 = vadd.f32 0.0, %v2436
    %v2438 = vpop.f32.mrb[0].mxu0
    %v2439 = vpop.f32.mrb[0].mxu0
    %v2440 = vadd.f32 0.0, %v2439
    %v2441 = vpop.f32.mrb[0].mxu0
    %2442 = vmatprep.mubr.bf16.mxu0 0
    %2443 = vmatmul.mubr.bf16.gmra.mrb[0].mxu0 %v2352
    %v2444 = vpop.f32.mrb[0].mxu0
    %v2445 = vadd.f32 0.0, %v2444
    %v2446 = vpop.f32.mrb[0].mxu0
    %v2447 = vpop.f32.mrb[0].mxu0
    %v2448 = vadd.f32 0.0, %v2447
    %v2449 = vpop.f32.mrb[0].mxu0
    %2450 = vdwg.mxu0
    %v2451 = vpack.c.bf16 %v2389, %v2389
    %v2452 = vpack.c.bf16 %v2392, %v2392
    %v2453 = vpack.c.bf16 %v2397, %v2397
    %v2454 = vpack.c.bf16 %v2400, %v2400
    %v2455 = vpack.c.bf16 %v2405, %v2405
    %v2456 = vpack.c.bf16 %v2408, %v2408
    %v2457 = vpack.c.bf16 %v2413, %v2413
    %v2458 = vpack.c.bf16 %v2416, %v2416
    %v2459 = vpack.c.bf16 %v2421, %v2421
    %v2460 = vpack.c.bf16 %v2424, %v2424
    %v2461 = vpack.c.bf16 %v2429, %v2429
    %v2462 = vpack.c.bf16 %v2432, %v2432
    %v2463 = vpack.c.bf16 %v2437, %v2437
    %v2464 = vpack.c.bf16 %v2440, %v2440
    %v2465 = vpack.c.bf16 %v2445, %v2445
    %v2466 = vpack.c.bf16 %v2448, %v2448
    %v2467 = vld [vmem:[%s9] sm:$0xf]
    %v2468 = vld [vmem:[%s9 + $0x4] sm:$0xf]
    %v2469 = vld [vmem:[%s9 + $0x8] sm:$0xf]
    %v2470 = vld [vmem:[%s9 + $0xc] sm:$0xf]
    %v2471 = vld [vmem:[%s9 + $0x10] sm:$0xf]
    %v2472 = vld [vmem:[%s9 + $0x14] sm:$0xf]
    %v2473 = vld [vmem:[%s9 + $0x18] sm:$0xf]
    %v2474 = vld [vmem:[%s9 + $0x1c] sm:$0xf]
    %v2475 = vld [vmem:[%s9 + $0x20] sm:$0xf]
    %v2476 = vld [vmem:[%s9 + $0x24] sm:$0xf]
    %v2477 = vld [vmem:[%s9 + $0x28] sm:$0xf]
    %v2478 = vld [vmem:[%s9 + $0x2c] sm:$0xf]
    %v2479 = vld [vmem:[%s9 + $0x30] sm:$0xf]
    %v2480 = vld [vmem:[%s9 + $0x34] sm:$0xf]
    %v2481 = vld [vmem:[%s9 + $0x38] sm:$0xf]
    %v2482 = vld [vmem:[%s9 + $0x3c] sm:$0xf]
    %v2483 = vld [vmem:[%s9 + $0x40] sm:$0xf]
    %v2484 = vld [vmem:[%s9 + $0x44] sm:$0xf]
    %v2485 = vld [vmem:[%s9 + $0x48] sm:$0xf]
    %v2486 = vld [vmem:[%s9 + $0x4c] sm:$0xf]
    %v2487 = vld [vmem:[%s9 + $0x50] sm:$0xf]
    %v2488 = vld [vmem:[%s9 + $0x54] sm:$0xf]
    %v2489 = vld [vmem:[%s9 + $0x58] sm:$0xf]
    %v2490 = vld [vmem:[%s9 + $0x5c] sm:$0xf]
    %v2491 = vld [vmem:[%s9 + $0x60] sm:$0xf]
    %v2492 = vld [vmem:[%s9 + $0x64] sm:$0xf]
    %v2493 = vld [vmem:[%s9 + $0x68] sm:$0xf]
    %v2494 = vld [vmem:[%s9 + $0x6c] sm:$0xf]
    %v2495 = vld [vmem:[%s9 + $0x70] sm:$0xf]
    %v2496 = vld [vmem:[%s9 + $0x74] sm:$0xf]
    %v2497 = vld [vmem:[%s9 + $0x78] sm:$0xf]
    %v2498 = vld [vmem:[%s9 + $0x7c] sm:$0xf]
    %v2499 = vld [vmem:[%s9 + $0x80] sm:$0xf]
    %v2500 = vld [vmem:[%s9 + $0x84] sm:$0xf]
    %v2501 = vld [vmem:[%s9 + $0x88] sm:$0xf]
    %v2502 = vld [vmem:[%s9 + $0x8c] sm:$0xf]
    %v2503 = vld [vmem:[%s9 + $0x90] sm:$0xf]
    %v2504 = vld [vmem:[%s9 + $0x94] sm:$0xf]
    %v2505 = vld [vmem:[%s9 + $0x98] sm:$0xf]
    %v2506 = vld [vmem:[%s9 + $0x9c] sm:$0xf]
    %v2507 = vld [vmem:[%s9 + $0xa0] sm:$0xf]
    %v2508 = vld [vmem:[%s9 + $0xa4] sm:$0xf]
    %v2509 = vld [vmem:[%s9 + $0xa8] sm:$0xf]
    %v2510 = vld [vmem:[%s9 + $0xac] sm:$0xf]
    %v2511 = vld [vmem:[%s9 + $0xb0] sm:$0xf]
    %v2512 = vld [vmem:[%s9 + $0xb4] sm:$0xf]
    %v2513 = vld [vmem:[%s9 + $0xb8] sm:$0xf]
    %v2514 = vld [vmem:[%s9 + $0xbc] sm:$0xf]
    %v2515 = vld [vmem:[%s9 + $0xc0] sm:$0xf]
    %v2516 = vld [vmem:[%s9 + $0xc4] sm:$0xf]
    %v2517 = vld [vmem:[%s9 + $0xc8] sm:$0xf]
    %v2518 = vld [vmem:[%s9 + $0xcc] sm:$0xf]
    %v2519 = vld [vmem:[%s9 + $0xd0] sm:$0xf]
    %v2520 = vld [vmem:[%s9 + $0xd4] sm:$0xf]
    %v2521 = vld [vmem:[%s9 + $0xd8] sm:$0xf]
    %v2522 = vld [vmem:[%s9 + $0xdc] sm:$0xf]
    %v2523 = vld [vmem:[%s9 + $0xe0] sm:$0xf]
    %v2524 = vld [vmem:[%s9 + $0xe4] sm:$0xf]
    %v2525 = vld [vmem:[%s9 + $0xe8] sm:$0xf]
    %v2526 = vld [vmem:[%s9 + $0xec] sm:$0xf]
    %v2527 = vld [vmem:[%s9 + $0xf0] sm:$0xf]
    %v2528 = vld [vmem:[%s9 + $0xf4] sm:$0xf]
    %v2529 = vld [vmem:[%s9 + $0xf8] sm:$0xf]
    %v2530 = vld [vmem:[%s9 + $0xfc] sm:$0xf]
    %v2535 = vunpack.c.l.b16 %v2467
    %v2536 = vunpack.c.l.b16 %v2468
    %v2537 = vunpack.c.l.b16 %v2469
    %v2538 = vunpack.c.l.b16 %v2470
    %v2539 = vpack.c.b16 %v2536, %v2535
    %v2540 = vpack.c.b16 %v2538, %v2537
    %v2544 = vsel %vm2078, %v2451, 0
    %2546 = vmatprep.subr.bf16.mxu0 0
    %2547 = vmatpush1.bf16.msra.mxu0 %v2539
    %2548 = vmatprep.subr.bf16.mxu0 0
    %2549 = vmatpush1.bf16.msra.mxu0 %v2540
    %2550 = vmatprep.subr.bf16.mxu0 0
    %2551 = vmatpush1.bf16.msra.mxu0 0
    %2552 = vmatprep.subr.bf16.mxu0 0
    %2553 = vmatpush1.bf16.msra.mxu0 0
    %2554 = vmatprep.subr.bf16.mxu0 0
    %2555 = vmatpush1.bf16.msra.mxu0 0
    %2556 = vmatprep.subr.bf16.mxu0 0
    %2557 = vmatpush1.bf16.msra.mxu0 0
    %2558 = vmatprep.subr.bf16.mxu0 0
    %2559 = vmatpush1.bf16.msra.mxu0 0
    %2560 = vmatprep.subr.bf16.mxu0 0
    %2561 = vmatpush1.bf16.msra.mxu0 0
    %2562 = vmatprep.subr.bf16.mxu0 0
    %2563 = vmatpush1.bf16.msra.mxu0 0
    %2564 = vmatprep.subr.bf16.mxu0 0
    %2565 = vmatpush1.bf16.msra.mxu0 0
    %2566 = vmatprep.subr.bf16.mxu0 0
    %2567 = vmatpush1.bf16.msra.mxu0 0
    %2568 = vmatprep.subr.bf16.mxu0 0
    %2569 = vmatpush1.bf16.msra.mxu0 0
    %2570 = vmatprep.subr.bf16.mxu0 0
    %2571 = vmatpush1.bf16.msra.mxu0 0
    %2572 = vmatprep.subr.bf16.mxu0 0
    %2573 = vmatpush1.bf16.msra.mxu0 0
    %2574 = vmatprep.subr.bf16.mxu0 0
    %2575 = vmatpush1.bf16.msra.mxu0 0
    %2576 = vmatprep.subr.bf16.mxu0 0
    %2577 = vmatpush1.bf16.msra.mxu0 0
    %2578 = vmatprep.mubr.bf16.mxu0 0
    %2579 = vmatmul.mubr.bf16.gmra.mrb[0].mxu0 %v2544
    %v2580 = vpop.f32.mrb[0].mxu0
    %v2581 = vadd.f32 0.0, %v2580
    %v2582 = vpop.f32.mrb[0].mxu0
    %v2583 = vpop.f32.mrb[0].mxu0
    %v2584 = vpop.f32.mrb[0].mxu0
    %2585 = vdwg.mxu0
    %v2590 = vunpack.c.l.b16 %v2471
    %v2591 = vunpack.c.l.b16 %v2472
    %v2592 = vunpack.c.l.b16 %v2473
    %v2593 = vunpack.c.l.b16 %v2474
    %v2594 = vpack.c.b16 %v2591, %v2590
    %v2595 = vpack.c.b16 %v2593, %v2592
    %v2599 = vsel %vm2078, %v2452, 0
    %2601 = vmatprep.subr.bf16.mxu0 0
    %2602 = vmatpush1.bf16.msra.mxu0 %v2594
    %2603 = vmatprep.subr.bf16.mxu0 0
    %2604 = vmatpush1.bf16.msra.mxu0 %v2595
    %2605 = vmatprep.subr.bf16.mxu0 0
    %2606 = vmatpush1.bf16.msra.mxu0 0
    %2607 = vmatprep.subr.bf16.mxu0 0
    %2608 = vmatpush1.bf16.msra.mxu0 0
    %2609 = vmatprep.subr.bf16.mxu0 0
    %2610 = vmatpush1.bf16.msra.mxu0 0
    %2611 = vmatprep.subr.bf16.mxu0 0
    %2612 = vmatpush1.bf16.msra.mxu0 0
    %2613 = vmatprep.subr.bf16.mxu0 0
    %2614 = vmatpush1.bf16.msra.mxu0 0
    %2615 = vmatprep.subr.bf16.mxu0 0
    %2616 = vmatpush1.bf16.msra.mxu0 0
    %2617 = vmatprep.subr.bf16.mxu0 0
    %2618 = vmatpush1.bf16.msra.mxu0 0
    %2619 = vmatprep.subr.bf16.mxu0 0
    %2620 = vmatpush1.bf16.msra.mxu0 0
    %2621 = vmatprep.subr.bf16.mxu0 0
    %2622 = vmatpush1.bf16.msra.mxu0 0
    %2623 = vmatprep.subr.bf16.mxu0 0
    %2624 = vmatpush1.bf16.msra.mxu0 0
    %2625 = vmatprep.subr.bf16.mxu0 0
    %2626 = vmatpush1.bf16.msra.mxu0 0
    %2627 = vmatprep.subr.bf16.mxu0 0
    %2628 = vmatpush1.bf16.msra.mxu0 0
    %2629 = vmatprep.subr.bf16.mxu0 0
    %2630 = vmatpush1.bf16.msra.mxu0 0
    %2631 = vmatprep.subr.bf16.mxu0 0
    %2632 = vmatpush1.bf16.msra.mxu0 0
    %2633 = vmatprep.mubr.bf16.mxu0 0
    %2634 = vmatmul.mubr.bf16.gmra.mrb[0].mxu0 %v2599
    %v2635 = vpop.f32.mrb[0].mxu0
    %v2636 = vadd.f32 0.0, %v2635
    %v2637 = vpop.f32.mrb[0].mxu0
    %v2638 = vpop.f32.mrb[0].mxu0
    %v2639 = vpop.f32.mrb[0].mxu0
    %2640 = vdwg.mxu0
    %v2645 = vunpack.c.l.b16 %v2475
    %v2646 = vunpack.c.l.b16 %v2476
    %v2647 = vunpack.c.l.b16 %v2477
    %v2648 = vunpack.c.l.b16 %v2478
    %v2649 = vpack.c.b16 %v2646, %v2645
    %v2650 = vpack.c.b16 %v2648, %v2647
    %v2654 = vsel %vm2078, %v2453, 0
    %2656 = vmatprep.subr.bf16.mxu0 0
    %2657 = vmatpush1.bf16.msra.mxu0 %v2649
    %2658 = vmatprep.subr.bf16.mxu0 0
    %2659 = vmatpush1.bf16.msra.mxu0 %v2650
    %2660 = vmatprep.subr.bf16.mxu0 0
    %2661 = vmatpush1.bf16.msra.mxu0 0
    %2662 = vmatprep.subr.bf16.mxu0 0
    %2663 = vmatpush1.bf16.msra.mxu0 0
    %2664 = vmatprep.subr.bf16.mxu0 0
    %2665 = vmatpush1.bf16.msra.mxu0 0
    %2666 = vmatprep.subr.bf16.mxu0 0
    %2667 = vmatpush1.bf16.msra.mxu0 0
    %2668 = vmatprep.subr.bf16.mxu0 0
    %2669 = vmatpush1.bf16.msra.mxu0 0
    %2670 = vmatprep.subr.bf16.mxu0 0
    %2671 = vmatpush1.bf16.msra.mxu0 0
    %2672 = vmatprep.subr.bf16.mxu0 0
    %2673 = vmatpush1.bf16.msra.mxu0 0
    %2674 = vmatprep.subr.bf16.mxu0 0
    %2675 = vmatpush1.bf16.msra.mxu0 0
    %2676 = vmatprep.subr.bf16.mxu0 0
    %2677 = vmatpush1.bf16.msra.mxu0 0
    %2678 = vmatprep.subr.bf16.mxu0 0
    %2679 = vmatpush1.bf16.msra.mxu0 0
    %2680 = vmatprep.subr.bf16.mxu0 0
    %2681 = vmatpush1.bf16.msra.mxu0 0
    %2682 = vmatprep.subr.bf16.mxu0 0
    %2683 = vmatpush1.bf16.msra.mxu0 0
    %2684 = vmatprep.subr.bf16.mxu0 0
    %2685 = vmatpush1.bf16.msra.mxu0 0
    %2686 = vmatprep.subr.bf16.mxu0 0
    %2687 = vmatpush1.bf16.msra.mxu0 0
    %2688 = vmatprep.mubr.bf16.mxu0 0
    %2689 = vmatmul.mubr.bf16.gmra.mrb[0].mxu0 %v2654
    %v2690 = vpop.f32.mrb[0].mxu0
    %v2691 = vadd.f32 0.0, %v2690
    %v2692 = vpop.f32.mrb[0].mxu0
    %v2693 = vpop.f32.mrb[0].mxu0
    %v2694 = vpop.f32.mrb[0].mxu0
    %2695 = vdwg.mxu0
    %v2700 = vunpack.c.l.b16 %v2479
    %v2701 = vunpack.c.l.b16 %v2480
    %v2702 = vunpack.c.l.b16 %v2481
    %v2703 = vunpack.c.l.b16 %v2482
    %v2704 = vpack.c.b16 %v2701, %v2700
    %v2705 = vpack.c.b16 %v2703, %v2702
    %v2709 = vsel %vm2078, %v2454, 0
    %2711 = vmatprep.subr.bf16.mxu0 0
    %2712 = vmatpush1.bf16.msra.mxu0 %v2704
    %2713 = vmatprep.subr.bf16.mxu0 0
    %2714 = vmatpush1.bf16.msra.mxu0 %v2705
    %2715 = vmatprep.subr.bf16.mxu0 0
    %2716 = vmatpush1.bf16.msra.mxu0 0
    %2717 = vmatprep.subr.bf16.mxu0 0
    %2718 = vmatpush1.bf16.msra.mxu0 0
    %2719 = vmatprep.subr.bf16.mxu0 0
    %2720 = vmatpush1.bf16.msra.mxu0 0
    %2721 = vmatprep.subr.bf16.mxu0 0
    %2722 = vmatpush1.bf16.msra.mxu0 0
    %2723 = vmatprep.subr.bf16.mxu0 0
    %2724 = vmatpush1.bf16.msra.mxu0 0
    %2725 = vmatprep.subr.bf16.mxu0 0
    %2726 = vmatpush1.bf16.msra.mxu0 0
    %2727 = vmatprep.subr.bf16.mxu0 0
    %2728 = vmatpush1.bf16.msra.mxu0 0
    %2729 = vmatprep.subr.bf16.mxu0 0
    %2730 = vmatpush1.bf16.msra.mxu0 0
    %2731 = vmatprep.subr.bf16.mxu0 0
    %2732 = vmatpush1.bf16.msra.mxu0 0
    %2733 = vmatprep.subr.bf16.mxu0 0
    %2734 = vmatpush1.bf16.msra.mxu0 0
    %2735 = vmatprep.subr.bf16.mxu0 0
    %2736 = vmatpush1.bf16.msra.mxu0 0
    %2737 = vmatprep.subr.bf16.mxu0 0
    %2738 = vmatpush1.bf16.msra.mxu0 0
    %2739 = vmatprep.subr.bf16.mxu0 0
    %2740 = vmatpush1.bf16.msra.mxu0 0
    %2741 = vmatprep.subr.bf16.mxu0 0
    %2742 = vmatpush1.bf16.msra.mxu0 0
    %2743 = vmatprep.mubr.bf16.mxu0 0
    %2744 = vmatmul.mubr.bf16.gmra.mrb[0].mxu0 %v2709
    %v2745 = vpop.f32.mrb[0].mxu0
    %v2746 = vadd.f32 0.0, %v2745
    %v2747 = vpop.f32.mrb[0].mxu0
    %v2748 = vpop.f32.mrb[0].mxu0
    %v2749 = vpop.f32.mrb[0].mxu0
    %2750 = vdwg.mxu0
    %v2755 = vunpack.c.l.b16 %v2483
    %v2756 = vunpack.c.l.b16 %v2484
    %v2757 = vunpack.c.l.b16 %v2485
    %v2758 = vunpack.c.l.b16 %v2486
    %v2759 = vpack.c.b16 %v2756, %v2755
    %v2760 = vpack.c.b16 %v2758, %v2757
    %v2764 = vsel %vm2078, %v2455, 0
    %2766 = vmatprep.subr.bf16.mxu0 0
    %2767 = vmatpush1.bf16.msra.mxu0 %v2759
    %2768 = vmatprep.subr.bf16.mxu0 0
    %2769 = vmatpush1.bf16.msra.mxu0 %v2760
    %2770 = vmatprep.subr.bf16.mxu0 0
    %2771 = vmatpush1.bf16.msra.mxu0 0
    %2772 = vmatprep.subr.bf16.mxu0 0
    %2773 = vmatpush1.bf16.msra.mxu0 0
    %2774 = vmatprep.subr.bf16.mxu0 0
    %2775 = vmatpush1.bf16.msra.mxu0 0
    %2776 = vmatprep.subr.bf16.mxu0 0
    %2777 = vmatpush1.bf16.msra.mxu0 0
    %2778 = vmatprep.subr.bf16.mxu0 0
    %2779 = vmatpush1.bf16.msra.mxu0 0
    %2780 = vmatprep.subr.bf16.mxu0 0
    %2781 = vmatpush1.bf16.msra.mxu0 0
    %2782 = vmatprep.subr.bf16.mxu0 0
    %2783 = vmatpush1.bf16.msra.mxu0 0
    %2784 = vmatprep.subr.bf16.mxu0 0
    %2785 = vmatpush1.bf16.msra.mxu0 0
    %2786 = vmatprep.subr.bf16.mxu0 0
    %2787 = vmatpush1.bf16.msra.mxu0 0
    %2788 = vmatprep.subr.bf16.mxu0 0
    %2789 = vmatpush1.bf16.msra.mxu0 0
    %2790 = vmatprep.subr.bf16.mxu0 0
    %2791 = vmatpush1.bf16.msra.mxu0 0
    %2792 = vmatprep.subr.bf16.mxu0 0
    %2793 = vmatpush1.bf16.msra.mxu0 0
    %2794 = vmatprep.subr.bf16.mxu0 0
    %2795 = vmatpush1.bf16.msra.mxu0 0
    %2796 = vmatprep.subr.bf16.mxu0 0
    %2797 = vmatpush1.bf16.msra.mxu0 0
    %2798 = vmatprep.mubr.bf16.mxu0 0
    %2799 = vmatmul.mubr.bf16.gmra.mrb[0].mxu0 %v2764
    %v2800 = vpop.f32.mrb[0].mxu0
    %v2801 = vadd.f32 0.0, %v2800
    %v2802 = vpop.f32.mrb[0].mxu0
    %v2803 = vpop.f32.mrb[0].mxu0
    %v2804 = vpop.f32.mrb[0].mxu0
    %2805 = vdwg.mxu0
    %v2810 = vunpack.c.l.b16 %v2487
    %v2811 = vunpack.c.l.b16 %v2488
    %v2812 = vunpack.c.l.b16 %v2489
    %v2813 = vunpack.c.l.b16 %v2490
    %v2814 = vpack.c.b16 %v2811, %v2810
    %v2815 = vpack.c.b16 %v2813, %v2812
    %v2819 = vsel %vm2078, %v2456, 0
    %2821 = vmatprep.subr.bf16.mxu0 0
    %2822 = vmatpush1.bf16.msra.mxu0 %v2814
    %2823 = vmatprep.subr.bf16.mxu0 0
    %2824 = vmatpush1.bf16.msra.mxu0 %v2815
    %2825 = vmatprep.subr.bf16.mxu0 0
    %2826 = vmatpush1.bf16.msra.mxu0 0
    %2827 = vmatprep.subr.bf16.mxu0 0
    %2828 = vmatpush1.bf16.msra.mxu0 0
    %2829 = vmatprep.subr.bf16.mxu0 0
    %2830 = vmatpush1.bf16.msra.mxu0 0
    %2831 = vmatprep.subr.bf16.mxu0 0
    %2832 = vmatpush1.bf16.msra.mxu0 0
    %2833 = vmatprep.subr.bf16.mxu0 0
    %2834 = vmatpush1.bf16.msra.mxu0 0
    %2835 = vmatprep.subr.bf16.mxu0 0
    %2836 = vmatpush1.bf16.msra.mxu0 0
    %2837 = vmatprep.subr.bf16.mxu0 0
    %2838 = vmatpush1.bf16.msra.mxu0 0
    %2839 = vmatprep.subr.bf16.mxu0 0
    %2840 = vmatpush1.bf16.msra.mxu0 0
    %2841 = vmatprep.subr.bf16.mxu0 0
    %2842 = vmatpush1.bf16.msra.mxu0 0
    %2843 = vmatprep.subr.bf16.mxu0 0
    %2844 = vmatpush1.bf16.msra.mxu0 0
    %2845 = vmatprep.subr.bf16.mxu0 0
    %2846 = vmatpush1.bf16.msra.mxu0 0
    %2847 = vmatprep.subr.bf16.mxu0 0
    %2848 = vmatpush1.bf16.msra.mxu0 0
    %2849 = vmatprep.subr.bf16.mxu0 0
    %2850 = vmatpush1.bf16.msra.mxu0 0
    %2851 = vmatprep.subr.bf16.mxu0 0
    %2852 = vmatpush1.bf16.msra.mxu0 0
    %2853 = vmatprep.mubr.bf16.mxu0 0
    %2854 = vmatmul.mubr.bf16.gmra.mrb[0].mxu0 %v2819
    %v2855 = vpop.f32.mrb[0].mxu0
    %v2856 = vadd.f32 0.0, %v2855
    %v2857 = vpop.f32.mrb[0].mxu0
    %v2858 = vpop.f32.mrb[0].mxu0
    %v2859 = vpop.f32.mrb[0].mxu0
    %2860 = vdwg.mxu0
    %v2865 = vunpack.c.l.b16 %v2491
    %v2866 = vunpack.c.l.b16 %v2492
    %v2867 = vunpack.c.l.b16 %v2493
    %v2868 = vunpack.c.l.b16 %v2494
    %v2869 = vpack.c.b16 %v2866, %v2865
    %v2870 = vpack.c.b16 %v2868, %v2867
    %v2874 = vsel %vm2078, %v2457, 0
    %2876 = vmatprep.subr.bf16.mxu0 0
    %2877 = vmatpush1.bf16.msra.mxu0 %v2869
    %2878 = vmatprep.subr.bf16.mxu0 0
    %2879 = vmatpush1.bf16.msra.mxu0 %v2870
    %2880 = vmatprep.subr.bf16.mxu0 0
    %2881 = vmatpush1.bf16.msra.mxu0 0
    %2882 = vmatprep.subr.bf16.mxu0 0
    %2883 = vmatpush1.bf16.msra.mxu0 0
    %2884 = vmatprep.subr.bf16.mxu0 0
    %2885 = vmatpush1.bf16.msra.mxu0 0
    %2886 = vmatprep.subr.bf16.mxu0 0
    %2887 = vmatpush1.bf16.msra.mxu0 0
    %2888 = vmatprep.subr.bf16.mxu0 0
    %2889 = vmatpush1.bf16.msra.mxu0 0
    %2890 = vmatprep.subr.bf16.mxu0 0
    %2891 = vmatpush1.bf16.msra.mxu0 0
    %2892 = vmatprep.subr.bf16.mxu0 0
    %2893 = vmatpush1.bf16.msra.mxu0 0
    %2894 = vmatprep.subr.bf16.mxu0 0
    %2895 = vmatpush1.bf16.msra.mxu0 0
    %2896 = vmatprep.subr.bf16.mxu0 0
    %2897 = vmatpush1.bf16.msra.mxu0 0
    %2898 = vmatprep.subr.bf16.mxu0 0
    %2899 = vmatpush1.bf16.msra.mxu0 0
    %2900 = vmatprep.subr.bf16.mxu0 0
    %2901 = vmatpush1.bf16.msra.mxu0 0
    %2902 = vmatprep.subr.bf16.mxu0 0
    %2903 = vmatpush1.bf16.msra.mxu0 0
    %2904 = vmatprep.subr.bf16.mxu0 0
    %2905 = vmatpush1.bf16.msra.mxu0 0
    %2906 = vmatprep.subr.bf16.mxu0 0
    %2907 = vmatpush1.bf16.msra.mxu0 0
    %2908 = vmatprep.mubr.bf16.mxu0 0
    %2909 = vmatmul.mubr.bf16.gmra.mrb[0].mxu0 %v2874
    %v2910 = vpop.f32.mrb[0].mxu0
    %v2911 = vadd.f32 0.0, %v2910
    %v2912 = vpop.f32.mrb[0].mxu0
    %v2913 = vpop.f32.mrb[0].mxu0
    %v2914 = vpop.f32.mrb[0].mxu0
    %2915 = vdwg.mxu0
    %v2920 = vunpack.c.l.b16 %v2495
    %v2921 = vunpack.c.l.b16 %v2496
    %v2922 = vunpack.c.l.b16 %v2497
    %v2923 = vunpack.c.l.b16 %v2498
    %v2924 = vpack.c.b16 %v2921, %v2920
    %v2925 = vpack.c.b16 %v2923, %v2922
    %v2929 = vsel %vm2078, %v2458, 0
    %2931 = vmatprep.subr.bf16.mxu0 0
    %2932 = vmatpush1.bf16.msra.mxu0 %v2924
    %2933 = vmatprep.subr.bf16.mxu0 0
    %2934 = vmatpush1.bf16.msra.mxu0 %v2925
    %2935 = vmatprep.subr.bf16.mxu0 0
    %2936 = vmatpush1.bf16.msra.mxu0 0
    %2937 = vmatprep.subr.bf16.mxu0 0
    %2938 = vmatpush1.bf16.msra.mxu0 0
    %2939 = vmatprep.subr.bf16.mxu0 0
    %2940 = vmatpush1.bf16.msra.mxu0 0
    %2941 = vmatprep.subr.bf16.mxu0 0
    %2942 = vmatpush1.bf16.msra.mxu0 0
    %2943 = vmatprep.subr.bf16.mxu0 0
    %2944 = vmatpush1.bf16.msra.mxu0 0
    %2945 = vmatprep.subr.bf16.mxu0 0
    %2946 = vmatpush1.bf16.msra.mxu0 0
    %2947 = vmatprep.subr.bf16.mxu0 0
    %2948 = vmatpush1.bf16.msra.mxu0 0
    %2949 = vmatprep.subr.bf16.mxu0 0
    %2950 = vmatpush1.bf16.msra.mxu0 0
    %2951 = vmatprep.subr.bf16.mxu0 0
    %2952 = vmatpush1.bf16.msra.mxu0 0
    %2953 = vmatprep.subr.bf16.mxu0 0
    %2954 = vmatpush1.bf16.msra.mxu0 0
    %2955 = vmatprep.subr.bf16.mxu0 0
    %2956 = vmatpush1.bf16.msra.mxu0 0
    %2957 = vmatprep.subr.bf16.mxu0 0
    %2958 = vmatpush1.bf16.msra.mxu0 0
    %2959 = vmatprep.subr.bf16.mxu0 0
    %2960 = vmatpush1.bf16.msra.mxu0 0
    %2961 = vmatprep.subr.bf16.mxu0 0
    %2962 = vmatpush1.bf16.msra.mxu0 0
    %2963 = vmatprep.mubr.bf16.mxu0 0
    %2964 = vmatmul.mubr.bf16.gmra.mrb[0].mxu0 %v2929
    %v2965 = vpop.f32.mrb[0].mxu0
    %v2966 = vadd.f32 0.0, %v2965
    %v2967 = vpop.f32.mrb[0].mxu0
    %v2968 = vpop.f32.mrb[0].mxu0
    %v2969 = vpop.f32.mrb[0].mxu0
    %2970 = vdwg.mxu0
    %v2975 = vunpack.c.l.b16 %v2499
    %v2976 = vunpack.c.l.b16 %v2500
    %v2977 = vunpack.c.l.b16 %v2501
    %v2978 = vunpack.c.l.b16 %v2502
    %v2979 = vpack.c.b16 %v2976, %v2975
    %v2980 = vpack.c.b16 %v2978, %v2977
    %v2984 = vsel %vm2078, %v2459, 0
    %2986 = vmatprep.subr.bf16.mxu0 0
    %2987 = vmatpush1.bf16.msra.mxu0 %v2979
    %2988 = vmatprep.subr.bf16.mxu0 0
    %2989 = vmatpush1.bf16.msra.mxu0 %v2980
    %2990 = vmatprep.subr.bf16.mxu0 0
    %2991 = vmatpush1.bf16.msra.mxu0 0
    %2992 = vmatprep.subr.bf16.mxu0 0
    %2993 = vmatpush1.bf16.msra.mxu0 0
    %2994 = vmatprep.subr.bf16.mxu0 0
    %2995 = vmatpush1.bf16.msra.mxu0 0
    %2996 = vmatprep.subr.bf16.mxu0 0
    %2997 = vmatpush1.bf16.msra.mxu0 0
    %2998 = vmatprep.subr.bf16.mxu0 0
    %2999 = vmatpush1.bf16.msra.mxu0 0
    %3000 = vmatprep.subr.bf16.mxu0 0
    %3001 = vmatpush1.bf16.msra.mxu0 0
    %3002 = vmatprep.subr.bf16.mxu0 0
    %3003 = vmatpush1.bf16.msra.mxu0 0
    %3004 = vmatprep.subr.bf16.mxu0 0
    %3005 = vmatpush1.bf16.msra.mxu0 0
    %3006 = vmatprep.subr.bf16.mxu0 0
    %3007 = vmatpush1.bf16.msra.mxu0 0
    %3008 = vmatprep.subr.bf16.mxu0 0
    %3009 = vmatpush1.bf16.msra.mxu0 0
    %3010 = vmatprep.subr.bf16.mxu0 0
    %3011 = vmatpush1.bf16.msra.mxu0 0
    %3012 = vmatprep.subr.bf16.mxu0 0
    %3013 = vmatpush1.bf16.msra.mxu0 0
    %3014 = vmatprep.subr.bf16.mxu0 0
    %3015 = vmatpush1.bf16.msra.mxu0 0
    %3016 = vmatprep.subr.bf16.mxu0 0
    %3017 = vmatpush1.bf16.msra.mxu0 0
    %3018 = vmatprep.mubr.bf16.mxu0 0
    %3019 = vmatmul.mubr.bf16.gmra.mrb[0].mxu0 %v2984
    %v3020 = vpop.f32.mrb[0].mxu0
    %v3021 = vadd.f32 0.0, %v3020
    %v3022 = vpop.f32.mrb[0].mxu0
    %v3023 = vpop.f32.mrb[0].mxu0
    %v3024 = vpop.f32.mrb[0].mxu0
    %3025 = vdwg.mxu0
    %v3030 = vunpack.c.l.b16 %v2503
    %v3031 = vunpack.c.l.b16 %v2504
    %v3032 = vunpack.c.l.b16 %v2505
    %v3033 = vunpack.c.l.b16 %v2506
    %v3034 = vpack.c.b16 %v3031, %v3030
    %v3035 = vpack.c.b16 %v3033, %v3032
    %v3039 = vsel %vm2078, %v2460, 0
    %3041 = vmatprep.subr.bf16.mxu0 0
    %3042 = vmatpush1.bf16.msra.mxu0 %v3034
    %3043 = vmatprep.subr.bf16.mxu0 0
    %3044 = vmatpush1.bf16.msra.mxu0 %v3035
    %3045 = vmatprep.subr.bf16.mxu0 0
    %3046 = vmatpush1.bf16.msra.mxu0 0
    %3047 = vmatprep.subr.bf16.mxu0 0
    %3048 = vmatpush1.bf16.msra.mxu0 0
    %3049 = vmatprep.subr.bf16.mxu0 0
    %3050 = vmatpush1.bf16.msra.mxu0 0
    %3051 = vmatprep.subr.bf16.mxu0 0
    %3052 = vmatpush1.bf16.msra.mxu0 0
    %3053 = vmatprep.subr.bf16.mxu0 0
    %3054 = vmatpush1.bf16.msra.mxu0 0
    %3055 = vmatprep.subr.bf16.mxu0 0
    %3056 = vmatpush1.bf16.msra.mxu0 0
    %3057 = vmatprep.subr.bf16.mxu0 0
    %3058 = vmatpush1.bf16.msra.mxu0 0
    %3059 = vmatprep.subr.bf16.mxu0 0
    %3060 = vmatpush1.bf16.msra.mxu0 0
    %3061 = vmatprep.subr.bf16.mxu0 0
    %3062 = vmatpush1.bf16.msra.mxu0 0
    %3063 = vmatprep.subr.bf16.mxu0 0
    %3064 = vmatpush1.bf16.msra.mxu0 0
    %3065 = vmatprep.subr.bf16.mxu0 0
    %3066 = vmatpush1.bf16.msra.mxu0 0
    %3067 = vmatprep.subr.bf16.mxu0 0
    %3068 = vmatpush1.bf16.msra.mxu0 0
    %3069 = vmatprep.subr.bf16.mxu0 0
    %3070 = vmatpush1.bf16.msra.mxu0 0
    %3071 = vmatprep.subr.bf16.mxu0 0
    %3072 = vmatpush1.bf16.msra.mxu0 0
    %3073 = vmatprep.mubr.bf16.mxu0 0
    %3074 = vmatmul.mubr.bf16.gmra.mrb[0].mxu0 %v3039
    %v3075 = vpop.f32.mrb[0].mxu0
    %v3076 = vadd.f32 0.0, %v3075
    %v3077 = vpop.f32.mrb[0].mxu0
    %v3078 = vpop.f32.mrb[0].mxu0
    %v3079 = vpop.f32.mrb[0].mxu0
    %3080 = vdwg.mxu0
    %v3085 = vunpack.c.l.b16 %v2507
    %v3086 = vunpack.c.l.b16 %v2508
    %v3087 = vunpack.c.l.b16 %v2509
    %v3088 = vunpack.c.l.b16 %v2510
    %v3089 = vpack.c.b16 %v3086, %v3085
    %v3090 = vpack.c.b16 %v3088, %v3087
    %v3094 = vsel %vm2078, %v2461, 0
    %3096 = vmatprep.subr.bf16.mxu0 0
    %3097 = vmatpush1.bf16.msra.mxu0 %v3089
    %3098 = vmatprep.subr.bf16.mxu0 0
    %3099 = vmatpush1.bf16.msra.mxu0 %v3090
    %3100 = vmatprep.subr.bf16.mxu0 0
    %3101 = vmatpush1.bf16.msra.mxu0 0
    %3102 = vmatprep.subr.bf16.mxu0 0
    %3103 = vmatpush1.bf16.msra.mxu0 0
    %3104 = vmatprep.subr.bf16.mxu0 0
    %3105 = vmatpush1.bf16.msra.mxu0 0
    %3106 = vmatprep.subr.bf16.mxu0 0
    %3107 = vmatpush1.bf16.msra.mxu0 0
    %3108 = vmatprep.subr.bf16.mxu0 0
    %3109 = vmatpush1.bf16.msra.mxu0 0
    %3110 = vmatprep.subr.bf16.mxu0 0
    %3111 = vmatpush1.bf16.msra.mxu0 0
    %3112 = vmatprep.subr.bf16.mxu0 0
    %3113 = vmatpush1.bf16.msra.mxu0 0
    %3114 = vmatprep.subr.bf16.mxu0 0
    %3115 = vmatpush1.bf16.msra.mxu0 0
    %3116 = vmatprep.subr.bf16.mxu0 0
    %3117 = vmatpush1.bf16.msra.mxu0 0
    %3118 = vmatprep.subr.bf16.mxu0 0
    %3119 = vmatpush1.bf16.msra.mxu0 0
    %3120 = vmatprep.subr.bf16.mxu0 0
    %3121 = vmatpush1.bf16.msra.mxu0 0
    %3122 = vmatprep.subr.bf16.mxu0 0
    %3123 = vmatpush1.bf16.msra.mxu0 0
    %3124 = vmatprep.subr.bf16.mxu0 0
    %3125 = vmatpush1.bf16.msra.mxu0 0
    %3126 = vmatprep.subr.bf16.mxu0 0
    %3127 = vmatpush1.bf16.msra.mxu0 0
    %3128 = vmatprep.mubr.bf16.mxu0 0
    %3129 = vmatmul.mubr.bf16.gmra.mrb[0].mxu0 %v3094
    %v3130 = vpop.f32.mrb[0].mxu0
    %v3131 = vadd.f32 0.0, %v3130
    %v3132 = vpop.f32.mrb[0].mxu0
    %v3133 = vpop.f32.mrb[0].mxu0
    %v3134 = vpop.f32.mrb[0].mxu0
    %3135 = vdwg.mxu0
    %v3140 = vunpack.c.l.b16 %v2511
    %v3141 = vunpack.c.l.b16 %v2512
    %v3142 = vunpack.c.l.b16 %v2513
    %v3143 = vunpack.c.l.b16 %v2514
    %v3144 = vpack.c.b16 %v3141, %v3140
    %v3145 = vpack.c.b16 %v3143, %v3142
    %v3149 = vsel %vm2078, %v2462, 0
    %3151 = vmatprep.subr.bf16.mxu0 0
    %3152 = vmatpush1.bf16.msra.mxu0 %v3144
    %3153 = vmatprep.subr.bf16.mxu0 0
    %3154 = vmatpush1.bf16.msra.mxu0 %v3145
    %3155 = vmatprep.subr.bf16.mxu0 0
    %3156 = vmatpush1.bf16.msra.mxu0 0
    %3157 = vmatprep.subr.bf16.mxu0 0
    %3158 = vmatpush1.bf16.msra.mxu0 0
    %3159 = vmatprep.subr.bf16.mxu0 0
    %3160 = vmatpush1.bf16.msra.mxu0 0
    %3161 = vmatprep.subr.bf16.mxu0 0
    %3162 = vmatpush1.bf16.msra.mxu0 0
    %3163 = vmatprep.subr.bf16.mxu0 0
    %3164 = vmatpush1.bf16.msra.mxu0 0
    %3165 = vmatprep.subr.bf16.mxu0 0
    %3166 = vmatpush1.bf16.msra.mxu0 0
    %3167 = vmatprep.subr.bf16.mxu0 0
    %3168 = vmatpush1.bf16.msra.mxu0 0
    %3169 = vmatprep.subr.bf16.mxu0 0
    %3170 = vmatpush1.bf16.msra.mxu0 0
    %3171 = vmatprep.subr.bf16.mxu0 0
    %3172 = vmatpush1.bf16.msra.mxu0 0
    %3173 = vmatprep.subr.bf16.mxu0 0
    %3174 = vmatpush1.bf16.msra.mxu0 0
    %3175 = vmatprep.subr.bf16.mxu0 0
    %3176 = vmatpush1.bf16.msra.mxu0 0
    %3177 = vmatprep.subr.bf16.mxu0 0
    %3178 = vmatpush1.bf16.msra.mxu0 0
    %3179 = vmatprep.subr.bf16.mxu0 0
    %3180 = vmatpush1.bf16.msra.mxu0 0
    %3181 = vmatprep.subr.bf16.mxu0 0
    %3182 = vmatpush1.bf16.msra.mxu0 0
    %3183 = vmatprep.mubr.bf16.mxu0 0
    %3184 = vmatmul.mubr.bf16.gmra.mrb[0].mxu0 %v3149
    %v3185 = vpop.f32.mrb[0].mxu0
    %v3186 = vadd.f32 0.0, %v3185
    %v3187 = vpop.f32.mrb[0].mxu0
    %v3188 = vpop.f32.mrb[0].mxu0
    %v3189 = vpop.f32.mrb[0].mxu0
    %3190 = vdwg.mxu0
    %v3195 = vunpack.c.l.b16 %v2515
    %v3196 = vunpack.c.l.b16 %v2516
    %v3197 = vunpack.c.l.b16 %v2517
    %v3198 = vunpack.c.l.b16 %v2518
    %v3199 = vpack.c.b16 %v3196, %v3195
    %v3200 = vpack.c.b16 %v3198, %v3197
    %v3204 = vsel %vm2078, %v2463, 0
    %3206 = vmatprep.subr.bf16.mxu0 0
    %3207 = vmatpush1.bf16.msra.mxu0 %v3199
    %3208 = vmatprep.subr.bf16.mxu0 0
    %3209 = vmatpush1.bf16.msra.mxu0 %v3200
    %3210 = vmatprep.subr.bf16.mxu0 0
    %3211 = vmatpush1.bf16.msra.mxu0 0
    %3212 = vmatprep.subr.bf16.mxu0 0
    %3213 = vmatpush1.bf16.msra.mxu0 0
    %3214 = vmatprep.subr.bf16.mxu0 0
    %3215 = vmatpush1.bf16.msra.mxu0 0
    %3216 = vmatprep.subr.bf16.mxu0 0
    %3217 = vmatpush1.bf16.msra.mxu0 0
    %3218 = vmatprep.subr.bf16.mxu0 0
    %3219 = vmatpush1.bf16.msra.mxu0 0
    %3220 = vmatprep.subr.bf16.mxu0 0
    %3221 = vmatpush1.bf16.msra.mxu0 0
    %3222 = vmatprep.subr.bf16.mxu0 0
    %3223 = vmatpush1.bf16.msra.mxu0 0
    %3224 = vmatprep.subr.bf16.mxu0 0
    %3225 = vmatpush1.bf16.msra.mxu0 0
    %3226 = vmatprep.subr.bf16.mxu0 0
    %3227 = vmatpush1.bf16.msra.mxu0 0
    %3228 = vmatprep.subr.bf16.mxu0 0
    %3229 = vmatpush1.bf16.msra.mxu0 0
    %3230 = vmatprep.subr.bf16.mxu0 0
    %3231 = vmatpush1.bf16.msra.mxu0 0
    %3232 = vmatprep.subr.bf16.mxu0 0
    %3233 = vmatpush1.bf16.msra.mxu0 0
    %3234 = vmatprep.subr.bf16.mxu0 0
    %3235 = vmatpush1.bf16.msra.mxu0 0
    %3236 = vmatprep.subr.bf16.mxu0 0
    %3237 = vmatpush1.bf16.msra.mxu0 0
    %3238 = vmatprep.mubr.bf16.mxu0 0
    %3239 = vmatmul.mubr.bf16.gmra.mrb[0].mxu0 %v3204
    %v3240 = vpop.f32.mrb[0].mxu0
    %v3241 = vadd.f32 0.0, %v3240
    %v3242 = vpop.f32.mrb[0].mxu0
    %v3243 = vpop.f32.mrb[0].mxu0
    %v3244 = vpop.f32.mrb[0].mxu0
    %3245 = vdwg.mxu0
    %v3250 = vunpack.c.l.b16 %v2519
    %v3251 = vunpack.c.l.b16 %v2520
    %v3252 = vunpack.c.l.b16 %v2521
    %v3253 = vunpack.c.l.b16 %v2522
    %v3254 = vpack.c.b16 %v3251, %v3250
    %v3255 = vpack.c.b16 %v3253, %v3252
    %v3259 = vsel %vm2078, %v2464, 0
    %3261 = vmatprep.subr.bf16.mxu0 0
    %3262 = vmatpush1.bf16.msra.mxu0 %v3254
    %3263 = vmatprep.subr.bf16.mxu0 0
    %3264 = vmatpush1.bf16.msra.mxu0 %v3255
    %3265 = vmatprep.subr.bf16.mxu0 0
    %3266 = vmatpush1.bf16.msra.mxu0 0
    %3267 = vmatprep.subr.bf16.mxu0 0
    %3268 = vmatpush1.bf16.msra.mxu0 0
    %3269 = vmatprep.subr.bf16.mxu0 0
    %3270 = vmatpush1.bf16.msra.mxu0 0
    %3271 = vmatprep.subr.bf16.mxu0 0
    %3272 = vmatpush1.bf16.msra.mxu0 0
    %3273 = vmatprep.subr.bf16.mxu0 0
    %3274 = vmatpush1.bf16.msra.mxu0 0
    %3275 = vmatprep.subr.bf16.mxu0 0
    %3276 = vmatpush1.bf16.msra.mxu0 0
    %3277 = vmatprep.subr.bf16.mxu0 0
    %3278 = vmatpush1.bf16.msra.mxu0 0
    %3279 = vmatprep.subr.bf16.mxu0 0
    %3280 = vmatpush1.bf16.msra.mxu0 0
    %3281 = vmatprep.subr.bf16.mxu0 0
    %3282 = vmatpush1.bf16.msra.mxu0 0
    %3283 = vmatprep.subr.bf16.mxu0 0
    %3284 = vmatpush1.bf16.msra.mxu0 0
    %3285 = vmatprep.subr.bf16.mxu0 0
    %3286 = vmatpush1.bf16.msra.mxu0 0
    %3287 = vmatprep.subr.bf16.mxu0 0
    %3288 = vmatpush1.bf16.msra.mxu0 0
    %3289 = vmatprep.subr.bf16.mxu0 0
    %3290 = vmatpush1.bf16.msra.mxu0 0
    %3291 = vmatprep.subr.bf16.mxu0 0
    %3292 = vmatpush1.bf16.msra.mxu0 0
    %3293 = vmatprep.mubr.bf16.mxu0 0
    %3294 = vmatmul.mubr.bf16.gmra.mrb[0].mxu0 %v3259
    %v3295 = vpop.f32.mrb[0].mxu0
    %v3296 = vadd.f32 0.0, %v3295
    %v3297 = vpop.f32.mrb[0].mxu0
    %v3298 = vpop.f32.mrb[0].mxu0
    %v3299 = vpop.f32.mrb[0].mxu0
    %3300 = vdwg.mxu0
    %v3305 = vunpack.c.l.b16 %v2523
    %v3306 = vunpack.c.l.b16 %v2524
    %v3307 = vunpack.c.l.b16 %v2525
    %v3308 = vunpack.c.l.b16 %v2526
    %v3309 = vpack.c.b16 %v3306, %v3305
    %v3310 = vpack.c.b16 %v3308, %v3307
    %v3314 = vsel %vm2078, %v2465, 0
    %3316 = vmatprep.subr.bf16.mxu0 0
    %3317 = vmatpush1.bf16.msra.mxu0 %v3309
    %3318 = vmatprep.subr.bf16.mxu0 0
    %3319 = vmatpush1.bf16.msra.mxu0 %v3310
    %3320 = vmatprep.subr.bf16.mxu0 0
    %3321 = vmatpush1.bf16.msra.mxu0 0
    %3322 = vmatprep.subr.bf16.mxu0 0
    %3323 = vmatpush1.bf16.msra.mxu0 0
    %3324 = vmatprep.subr.bf16.mxu0 0
    %3325 = vmatpush1.bf16.msra.mxu0 0
    %3326 = vmatprep.subr.bf16.mxu0 0
    %3327 = vmatpush1.bf16.msra.mxu0 0
    %3328 = vmatprep.subr.bf16.mxu0 0
    %3329 = vmatpush1.bf16.msra.mxu0 0
    %3330 = vmatprep.subr.bf16.mxu0 0
    %3331 = vmatpush1.bf16.msra.mxu0 0
    %3332 = vmatprep.subr.bf16.mxu0 0
    %3333 = vmatpush1.bf16.msra.mxu0 0
    %3334 = vmatprep.subr.bf16.mxu0 0
    %3335 = vmatpush1.bf16.msra.mxu0 0
    %3336 = vmatprep.subr.bf16.mxu0 0
    %3337 = vmatpush1.bf16.msra.mxu0 0
    %3338 = vmatprep.subr.bf16.mxu0 0
    %3339 = vmatpush1.bf16.msra.mxu0 0
    %3340 = vmatprep.subr.bf16.mxu0 0
    %3341 = vmatpush1.bf16.msra.mxu0 0
    %3342 = vmatprep.subr.bf16.mxu0 0
    %3343 = vmatpush1.bf16.msra.mxu0 0
    %3344 = vmatprep.subr.bf16.mxu0 0
    %3345 = vmatpush1.bf16.msra.mxu0 0
    %3346 = vmatprep.subr.bf16.mxu0 0
    %3347 = vmatpush1.bf16.msra.mxu0 0
    %3348 = vmatprep.mubr.bf16.mxu0 0
    %3349 = vmatmul.mubr.bf16.gmra.mrb[0].mxu0 %v3314
    %v3350 = vpop.f32.mrb[0].mxu0
    %v3351 = vadd.f32 0.0, %v3350
    %v3352 = vpop.f32.mrb[0].mxu0
    %v3353 = vpop.f32.mrb[0].mxu0
    %v3354 = vpop.f32.mrb[0].mxu0
    %3355 = vdwg.mxu0
    %v3360 = vunpack.c.l.b16 %v2527
    %v3361 = vunpack.c.l.b16 %v2528
    %v3362 = vunpack.c.l.b16 %v2529
    %v3363 = vunpack.c.l.b16 %v2530
    %v3364 = vpack.c.b16 %v3361, %v3360
    %v3365 = vpack.c.b16 %v3363, %v3362
    %v3369 = vsel %vm2078, %v2466, 0
    %3371 = vmatprep.subr.bf16.mxu0 0
    %3372 = vmatpush1.bf16.msra.mxu0 %v3364
    %3373 = vmatprep.subr.bf16.mxu0 0
    %3374 = vmatpush1.bf16.msra.mxu0 %v3365
    %3375 = vmatprep.subr.bf16.mxu0 0
    %3376 = vmatpush1.bf16.msra.mxu0 0
    %3377 = vmatprep.subr.bf16.mxu0 0
    %3378 = vmatpush1.bf16.msra.mxu0 0
    %3379 = vmatprep.subr.bf16.mxu0 0
    %3380 = vmatpush1.bf16.msra.mxu0 0
    %3381 = vmatprep.subr.bf16.mxu0 0
    %3382 = vmatpush1.bf16.msra.mxu0 0
    %3383 = vmatprep.subr.bf16.mxu0 0
    %3384 = vmatpush1.bf16.msra.mxu0 0
    %3385 = vmatprep.subr.bf16.mxu0 0
    %3386 = vmatpush1.bf16.msra.mxu0 0
    %3387 = vmatprep.subr.bf16.mxu0 0
    %3388 = vmatpush1.bf16.msra.mxu0 0
    %3389 = vmatprep.subr.bf16.mxu0 0
    %3390 = vmatpush1.bf16.msra.mxu0 0
    %3391 = vmatprep.subr.bf16.mxu0 0
    %3392 = vmatpush1.bf16.msra.mxu0 0
    %3393 = vmatprep.subr.bf16.mxu0 0
    %3394 = vmatpush1.bf16.msra.mxu0 0
    %3395 = vmatprep.subr.bf16.mxu0 0
    %3396 = vmatpush1.bf16.msra.mxu0 0
    %3397 = vmatprep.subr.bf16.mxu0 0
    %3398 = vmatpush1.bf16.msra.mxu0 0
    %3399 = vmatprep.subr.bf16.mxu0 0
    %3400 = vmatpush1.bf16.msra.mxu0 0
    %3401 = vmatprep.subr.bf16.mxu0 0
    %3402 = vmatpush1.bf16.msra.mxu0 0
    %3403 = vmatprep.mubr.bf16.mxu0 0
    %3404 = vmatmul.mubr.bf16.gmra.mrb[0].mxu0 %v3369
    %v3405 = vpop.f32.mrb[0].mxu0
    %v3406 = vadd.f32 0.0, %v3405
    %v3407 = vpop.f32.mrb[0].mxu0
    %v3408 = vpop.f32.mrb[0].mxu0
    %v3409 = vpop.f32.mrb[0].mxu0
    %3410 = vdwg.mxu0
    %vm3411 = vcmask 523264
    %v3412 = vsel %vm3411, %v2581, 0.0
    %v3413 = vsel %vm3411, %v2636, 0.0
    %v3414 = vadd.f32 %v3412, %v3413
    %v3415 = vsel %vm3411, %v2691, 0.0
    %v3416 = vadd.f32 %v3414, %v3415
    %v3417 = vsel %vm3411, %v2746, 0.0
    %v3418 = vadd.f32 %v3416, %v3417
    %v3419 = vsel %vm3411, %v2801, 0.0
    %v3420 = vadd.f32 %v3418, %v3419
    %v3421 = vsel %vm3411, %v2856, 0.0
    %v3422 = vadd.f32 %v3420, %v3421
    %v3423 = vsel %vm3411, %v2911, 0.0
    %v3424 = vadd.f32 %v3422, %v3423
    %v3425 = vsel %vm3411, %v2966, 0.0
    %v3426 = vadd.f32 %v3424, %v3425
    %v3427 = vsel %vm3411, %v3021, 0.0
    %v3428 = vadd.f32 %v3426, %v3427
    %v3429 = vsel %vm3411, %v3076, 0.0
    %v3430 = vadd.f32 %v3428, %v3429
    %v3431 = vsel %vm3411, %v3131, 0.0
    %v3432 = vadd.f32 %v3430, %v3431
    %v3433 = vsel %vm3411, %v3186, 0.0
    %v3434 = vadd.f32 %v3432, %v3433
    %v3435 = vsel %vm3411, %v3241, 0.0
    %v3436 = vadd.f32 %v3434, %v3435
    %v3437 = vsel %vm3411, %v3296, 0.0
    %v3438 = vadd.f32 %v3436, %v3437
    %v3439 = vsel %vm3411, %v3351, 0.0
    %v3440 = vadd.f32 %v3438, %v3439
    %v3441 = vsel %vm3411, %v3406, 0.0
    %v3442 = vadd.f32 %v3440, %v3441
    %v3443 = vsel %vm3411, %v3442, 0.0
    %v3444 = vrot.slane %v3443, 4
    %v3445 = vadd.f32 %v3443, %v3444
    %v3446 = vrot.slane %v3445, 2
    %v3447 = vadd.f32 %v3445, %v3446
    %v3448 = vrot.slane %v3447, 1
    %v3449 = vadd.f32 %v3447, %v3448
    %v3450 = vrcp.pop 8.0
    %v3451 = vmul.f32 %v3449, %v3450
    %v3452 = vsub.f32 %v3442, %v3451
    %v3453 = vmul.f32 %v3452, %v3452
    %v3454 = vsel %vm3411, %v3453, 0.0
    %v3455 = vrot.slane %v3454, 4
    %v3456 = vadd.f32 %v3454, %v3455
    %v3457 = vrot.slane %v3456, 2
    %v3458 = vadd.f32 %v3456, %v3457
    %v3459 = vrot.slane %v3458, 1
    %v3460 = vadd.f32 %v3458, %v3459
    %v3461 = vmul.f32 %v3460, %v3450
    %v3462 = vadd.f32 %v3461, 1e-05
    %v3463 = vrsqrt.pop %v3462
    %v3464 = vmul.f32 %v3452, %v3463
    %v3465 = vld [vmem:[%s10] sm:$0x1]
    %v3467 = vlaneseq
    %v3468 = vshrl.u32 %v3467, 7
    %v3469 = vsub.s32 0, %v3468
    %v3470 = vrot.slane %v3465, %v3469
    %v3472 = vmul.f32 %v3464, %v3470
    %v3473 = vld [vmem:[%s11] sm:$0x1]
    %v3475 = vlaneseq
    %v3476 = vshrl.u32 %v3475, 7
    %v3477 = vsub.s32 0, %v3476
    %v3478 = vrot.slane %v3473, %v3477
    %v3480 = vadd.f32 %v3472, %v3478
    %v3481 = vmax.f32 %v3480, 0.0
    %v3482 = vpack.c.bf16 %v3481, %v3481
    %v3483 = vld [vmem:[#allocation6] sm:$0xf]
    %v3484 = vld [vmem:[#allocation6 + $0x4] sm:$0xf]
    %v3485 = vld [vmem:[#allocation6 + $0x8] sm:$0xf]
    %v3486 = vld [vmem:[#allocation6 + $0xc] sm:$0xf]
    %v3487 = vld [vmem:[#allocation6 + $0x10] sm:$0xf]
    %v3488 = vld [vmem:[#allocation6 + $0x14] sm:$0xf]
    %v3489 = vld [vmem:[#allocation6 + $0x18] sm:$0xf]
    %v3490 = vld [vmem:[#allocation6 + $0x1c] sm:$0xf]
    %v3499 = vunpack.c.l.b16 %v3483
    %v3500 = vunpack.c.l.b16 %v3484
    %v3501 = vunpack.c.l.b16 %v3485
    %v3502 = vunpack.c.l.b16 %v3486
    %v3503 = vunpack.c.l.b16 %v3487
    %v3504 = vunpack.c.l.b16 %v3488
    %v3505 = vunpack.c.l.b16 %v3489
    %v3506 = vunpack.c.l.b16 %v3490
    %v3507 = vpack.c.b16 %v3500, %v3499
    %v3508 = vpack.c.b16 %v3502, %v3501
    %v3509 = vpack.c.b16 %v3504, %v3503
    %v3510 = vpack.c.b16 %v3506, %v3505
    %v3516 = vsel %vm3411, %v3482, 0
    %3518 = vmatprep.subr.bf16.mxu0 0
    %3519 = vmatpush1.bf16.msra.mxu0 %v3507
    %3520 = vmatprep.subr.bf16.mxu0 0
    %3521 = vmatpush1.bf16.msra.mxu0 %v3508
    %3522 = vmatprep.subr.bf16.mxu0 0
    %3523 = vmatpush1.bf16.msra.mxu0 %v3509
    %3524 = vmatprep.subr.bf16.mxu0 0
    %3525 = vmatpush1.bf16.msra.mxu0 %v3510
    %3526 = vmatprep.subr.bf16.mxu0 0
    %3527 = vmatpush1.bf16.msra.mxu0 0
    %3528 = vmatprep.subr.bf16.mxu0 0
    %3529 = vmatpush1.bf16.msra.mxu0 0
    %3530 = vmatprep.subr.bf16.mxu0 0
    %3531 = vmatpush1.bf16.msra.mxu0 0
    %3532 = vmatprep.subr.bf16.mxu0 0
    %3533 = vmatpush1.bf16.msra.mxu0 0
    %3534 = vmatprep.subr.bf16.mxu0 0
    %3535 = vmatpush1.bf16.msra.mxu0 0
    %3536 = vmatprep.subr.bf16.mxu0 0
    %3537 = vmatpush1.bf16.msra.mxu0 0
    %3538 = vmatprep.subr.bf16.mxu0 0
    %3539 = vmatpush1.bf16.msra.mxu0 0
    %3540 = vmatprep.subr.bf16.mxu0 0
    %3541 = vmatpush1.bf16.msra.mxu0 0
    %3542 = vmatprep.subr.bf16.mxu0 0
    %3543 = vmatpush1.bf16.msra.mxu0 0
    %3544 = vmatprep.subr.bf16.mxu0 0
    %3545 = vmatpush1.bf16.msra.mxu0 0
    %3546 = vmatprep.subr.bf16.mxu0 0
    %3547 = vmatpush1.bf16.msra.mxu0 0
    %3548 = vmatprep.subr.bf16.mxu0 0
    %3549 = vmatpush1.bf16.msra.mxu0 0
    %3550 = vmatprep.mubr.bf16.mxu0 0
    %3551 = vmatmul.mubr.bf16.gmra.mrb[0].mxu0 %v3516
    %v3552 = vpop.f32.mrb[0].mxu0
    %v3553 = vadd.f32 0.0, %v3552
    %v3554 = vpop.f32.mrb[0].mxu0
    %v3555 = vpop.f32.mrb[0].mxu0
    %v3556 = vpop.f32.mrb[0].mxu0
    %3557 = vdwg.mxu0
    %v3558 = vsel %vm2078, %v3553, 0.0
    %v3559 = vrot.slane %v3558, 4
    %v3560 = vadd.f32 %v3558, %v3559
    %v3561 = vrot.slane %v3560, 2
    %v3562 = vadd.f32 %v3560, %v3561
    %v3563 = vrot.slane %v3562, 1
    %v3564 = vadd.f32 %v3562, %v3563
    %v3565 = vmul.f32 %v3564, %v3450
    %v3566 = vsub.f32 %v3553, %v3565
    %v3567 = vmul.f32 %v3566, %v3566
    %v3568 = vsel %vm2078, %v3567, 0.0
    %v3569 = vrot.slane %v3568, 4
    %v3570 = vadd.f32 %v3568, %v3569
    %v3571 = vrot.slane %v3570, 2
    %v3572 = vadd.f32 %v3570, %v3571
    %v3573 = vrot.slane %v3572, 1
    %v3574 = vadd.f32 %v3572, %v3573
    %v3575 = vmul.f32 %v3574, %v3450
    %v3576 = vadd.f32 %v3575, 1e-05
    %v3577 = vrsqrt.pop %v3576
    %v3578 = vmul.f32 %v3566, %v3577
    %v3579 = vld [vmem:[%s13] sm:$0x1]
    %v3581 = vlaneseq
    %v3582 = vshrl.u32 %v3581, 7
    %v3583 = vsub.s32 0, %v3582
    %v3584 = vrot.slane %v3579, %v3583
    %v3586 = vmul.f32 %v3578, %v3584
    %v3587 = vld [vmem:[%s14] sm:$0x1]
    %v3589 = vlaneseq
    %v3590 = vshrl.u32 %v3589, 7
    %v3591 = vsub.s32 0, %v3590
    %v3592 = vrot.slane %v3587, %v3591
    %v3594 = vadd.f32 %v3586, %v3592
    %v3595 = vmul.f32 %v3594, %v3594
    %v3596 = vsel %vm2078, %v3595, 0.0
    %3597 = vadd.xlane.f32.xlu0 %v3596
    %v3598 = vpop.xlane.xlu0 %3597
    %v3599 = vld [vmem:[%s15] sm:$0xff]
    %v3600 = vld [vmem:[%s15 + $0x8] sm:$0xff]
    %v3601 = vld [vmem:[%s15 + $0x10] sm:$0xff]
    %v3602 = vld [vmem:[%s15 + $0x18] sm:$0xff]
    %v3603 = vld [vmem:[%s15 + $0x20] sm:$0xff]
    %v3604 = vld [vmem:[%s15 + $0x28] sm:$0xff]
    %v3605 = vld [vmem:[%s15 + $0x30] sm:$0xff]
    %v3606 = vld [vmem:[%s15 + $0x38] sm:$0xff]
    %v3607 = vld [vmem:[%s15 + $0x40] sm:$0xff]
    %v3608 = vld [vmem:[%s15 + $0x48] sm:$0xff]
    %v3609 = vld [vmem:[%s15 + $0x50] sm:$0xff]
    %v3610 = vld [vmem:[%s15 + $0x58] sm:$0xff]
    %v3611 = vld [vmem:[%s15 + $0x60] sm:$0xff]
    %v3612 = vld [vmem:[%s15 + $0x68] sm:$0xff]
    %v3613 = vld [vmem:[%s15 + $0x70] sm:$0xff]
    %v3614 = vld [vmem:[%s15 + $0x78] sm:$0xff]
    %v3615 = vld [vmem:[%s15 + $0x80] sm:$0xff]
    %v3616 = vld [vmem:[%s15 + $0x88] sm:$0xff]
    %v3617 = vld [vmem:[%s15 + $0x90] sm:$0xff]
    %v3618 = vld [vmem:[%s15 + $0x98] sm:$0xff]
    %v3619 = vld [vmem:[%s15 + $0xa0] sm:$0xff]
    %v3620 = vld [vmem:[%s15 + $0xa8] sm:$0xff]
    %v3621 = vld [vmem:[%s15 + $0xb0] sm:$0xff]
    %v3622 = vld [vmem:[%s15 + $0xb8] sm:$0xff]
    %v3623 = vld [vmem:[%s15 + $0xc0] sm:$0xff]
    %v3624 = vld [vmem:[%s15 + $0xc8] sm:$0xff]
    %v3625 = vld [vmem:[%s15 + $0xd0] sm:$0xff]
    %v3626 = vld [vmem:[%s15 + $0xd8] sm:$0xff]
    %v3627 = vld [vmem:[%s15 + $0xe0] sm:$0xff]
    %v3628 = vld [vmem:[%s15 + $0xe8] sm:$0xff]
    %v3629 = vld [vmem:[%s15 + $0xf0] sm:$0xff]
    %v3630 = vld [vmem:[%s15 + $0xf8] sm:$0xff]
    %v3631 = vld [vmem:[%s15 + $0x100] sm:$0xff]
    %v3632 = vld [vmem:[%s15 + $0x108] sm:$0xff]
    %v3633 = vld [vmem:[%s15 + $0x110] sm:$0xff]
    %v3634 = vld [vmem:[%s15 + $0x118] sm:$0xff]
    %v3635 = vld [vmem:[%s15 + $0x120] sm:$0xff]
    %v3636 = vld [vmem:[%s15 + $0x128] sm:$0xff]
    %v3637 = vld [vmem:[%s15 + $0x130] sm:$0xff]
    %v3638 = vld [vmem:[%s15 + $0x138] sm:$0xff]
    %v3639 = vld [vmem:[%s15 + $0x140] sm:$0xff]
    %v3640 = vld [vmem:[%s15 + $0x148] sm:$0xff]
    %v3641 = vld [vmem:[%s15 + $0x150] sm:$0xff]
    %v3642 = vld [vmem:[%s15 + $0x158] sm:$0xff]
    %v3643 = vld [vmem:[%s15 + $0x160] sm:$0xff]
    %v3644 = vld [vmem:[%s15 + $0x168] sm:$0xff]
    %v3645 = vld [vmem:[%s15 + $0x170] sm:$0xff]
    %v3646 = vld [vmem:[%s15 + $0x178] sm:$0xff]
    %v3647 = vld [vmem:[%s15 + $0x180] sm:$0xff]
    %v3648 = vld [vmem:[%s15 + $0x188] sm:$0xff]
    %v3649 = vld [vmem:[%s15 + $0x190] sm:$0xff]
    %v3650 = vld [vmem:[%s15 + $0x198] sm:$0xff]
    %v3651 = vld [vmem:[%s15 + $0x1a0] sm:$0xff]
    %v3652 = vld [vmem:[%s15 + $0x1a8] sm:$0xff]
    %v3653 = vld [vmem:[%s15 + $0x1b0] sm:$0xff]
    %v3654 = vld [vmem:[%s15 + $0x1b8] sm:$0xff]
    %v3655 = vld [vmem:[%s15 + $0x1c0] sm:$0xff]
    %v3656 = vld [vmem:[%s15 + $0x1c8] sm:$0xff]
    %v3657 = vld [vmem:[%s15 + $0x1d0] sm:$0xff]
    %v3658 = vld [vmem:[%s15 + $0x1d8] sm:$0xff]
    %v3659 = vld [vmem:[%s15 + $0x1e0] sm:$0xff]
    %v3660 = vld [vmem:[%s15 + $0x1e8] sm:$0xff]
    %v3661 = vld [vmem:[%s15 + $0x1f0] sm:$0xff]
    %v3662 = vld [vmem:[%s15 + $0x1f8] sm:$0xff]
    %v3664 = vsel %vm2078, %v3594, 0
    %v3667 = vsel %vm2078, %v3599, 0
    %v3670 = vsel %vm2078, %v3600, 0
    %v3673 = vsel %vm2078, %v3601, 0
    %v3676 = vsel %vm2078, %v3602, 0
    %v3679 = vsel %vm2078, %v3603, 0
    %v3682 = vsel %vm2078, %v3604, 0
    %v3685 = vsel %vm2078, %v3605, 0
    %v3688 = vsel %vm2078, %v3606, 0
    %v3691 = vsel %vm2078, %v3607, 0
    %v3694 = vsel %vm2078, %v3608, 0
    %v3697 = vsel %vm2078, %v3609, 0
    %v3700 = vsel %vm2078, %v3610, 0
    %v3703 = vsel %vm2078, %v3611, 0
    %v3706 = vsel %vm2078, %v3612, 0
    %v3709 = vsel %vm2078, %v3613, 0
    %v3712 = vsel %vm2078, %v3614, 0
    %v3715 = vsel %vm2078, %v3615, 0
    %v3718 = vsel %vm2078, %v3616, 0
    %v3721 = vsel %vm2078, %v3617, 0
    %v3724 = vsel %vm2078, %v3618, 0
    %v3727 = vsel %vm2078, %v3619, 0
    %v3730 = vsel %vm2078, %v3620, 0
    %v3733 = vsel %vm2078, %v3621, 0
    %v3736 = vsel %vm2078, %v3622, 0
    %v3739 = vsel %vm2078, %v3623, 0
    %v3742 = vsel %vm2078, %v3624, 0
    %v3745 = vsel %vm2078, %v3625, 0
    %v3748 = vsel %vm2078, %v3626, 0
    %v3751 = vsel %vm2078, %v3627, 0
    %v3754 = vsel %vm2078, %v3628, 0
    %v3757 = vsel %vm2078, %v3629, 0
    %v3760 = vsel %vm2078, %v3630, 0
    %v3763 = vsel %vm2078, %v3631, 0
    %v3766 = vsel %vm2078, %v3632, 0
    %v3769 = vsel %vm2078, %v3633, 0
    %v3772 = vsel %vm2078, %v3634, 0
    %v3775 = vsel %vm2078, %v3635, 0
    %v3778 = vsel %vm2078, %v3636, 0
    %v3781 = vsel %vm2078, %v3637, 0
    %v3784 = vsel %vm2078, %v3638, 0
    %v3787 = vsel %vm2078, %v3639, 0
    %v3790 = vsel %vm2078, %v3640, 0
    %v3793 = vsel %vm2078, %v3641, 0
    %v3796 = vsel %vm2078, %v3642, 0
    %v3799 = vsel %vm2078, %v3643, 0
    %v3802 = vsel %vm2078, %v3644, 0
    %v3805 = vsel %vm2078, %v3645, 0
    %v3808 = vsel %vm2078, %v3646, 0
    %v3811 = vsel %vm2078, %v3647, 0
    %v3814 = vsel %vm2078, %v3648, 0
    %v3817 = vsel %vm2078, %v3649, 0
    %v3820 = vsel %vm2078, %v3650, 0
    %v3823 = vsel %vm2078, %v3651, 0
    %v3826 = vsel %vm2078, %v3652, 0
    %v3829 = vsel %vm2078, %v3653, 0
    %v3832 = vsel %vm2078, %v3654, 0
    %v3835 = vsel %vm2078, %v3655, 0
    %v3838 = vsel %vm2078, %v3656, 0
    %v3841 = vsel %vm2078, %v3657, 0
    %v3844 = vsel %vm2078, %v3658, 0
    %v3847 = vsel %vm2078, %v3659, 0
    %v3850 = vsel %vm2078, %v3660, 0
    %v3853 = vsel %vm2078, %v3661, 0
    %v3856 = vsel %vm2078, %v3662, 0
    %3858 = vmatprep.subr.mxu0 0.0
    %3859 = vmatpush1.xpose.msra.mxu0 %v3667
    %3860 = vmatprep.subr.mxu0 0.0
    %3861 = vmatpush1.xpose.msra.mxu0 %v3670
    %3862 = vmatprep.subr.mxu0 0.0
    %3863 = vmatpush1.xpose.msra.mxu0 %v3673
    %3864 = vmatprep.subr.mxu0 0.0
    %3865 = vmatpush1.xpose.msra.mxu0 %v3676
    %3866 = vmatprep.subr.mxu0 0.0
    %3867 = vmatpush1.xpose.msra.mxu0 %v3679
    %3868 = vmatprep.subr.mxu0 0.0
    %3869 = vmatpush1.xpose.msra.mxu0 %v3682
    %3870 = vmatprep.subr.mxu0 0.0
    %3871 = vmatpush1.xpose.msra.mxu0 %v3685
    %3872 = vmatprep.subr.mxu0 0.0
    %3873 = vmatpush1.xpose.msra.mxu0 %v3688
    %3874 = vmatprep.subr.mxu0 0.0
    %3875 = vmatpush1.xpose.msra.mxu0 %v3691
    %3876 = vmatprep.subr.mxu0 0.0
    %3877 = vmatpush1.xpose.msra.mxu0 %v3694
    %3878 = vmatprep.subr.mxu0 0.0
    %3879 = vmatpush1.xpose.msra.mxu0 %v3697
    %3880 = vmatprep.subr.mxu0 0.0
    %3881 = vmatpush1.xpose.msra.mxu0 %v3700
    %3882 = vmatprep.subr.mxu0 0.0
    %3883 = vmatpush1.xpose.msra.mxu0 %v3703
    %3884 = vmatprep.subr.mxu0 0.0
    %3885 = vmatpush1.xpose.msra.mxu0 %v3706
    %3886 = vmatprep.subr.mxu0 0.0
    %3887 = vmatpush1.xpose.msra.mxu0 %v3709
    %3888 = vmatprep.subr.mxu0 0.0
    %3889 = vmatpush1.xpose.msra.mxu0 %v3712
    %3890 = vmatprep.subr.mxu0 0.0
    %3891 = vmatpush1.xpose.msra.mxu0 %v3715
    %3892 = vmatprep.subr.mxu0 0.0
    %3893 = vmatpush1.xpose.msra.mxu0 %v3718
    %3894 = vmatprep.subr.mxu0 0.0
    %3895 = vmatpush1.xpose.msra.mxu0 %v3721
    %3896 = vmatprep.subr.mxu0 0.0
    %3897 = vmatpush1.xpose.msra.mxu0 %v3724
    %3898 = vmatprep.subr.mxu0 0.0
    %3899 = vmatpush1.xpose.msra.mxu0 %v3727
    %3900 = vmatprep.subr.mxu0 0.0
    %3901 = vmatpush1.xpose.msra.mxu0 %v3730
    %3902 = vmatprep.subr.mxu0 0.0
    %3903 = vmatpush1.xpose.msra.mxu0 %v3733
    %3904 = vmatprep.subr.mxu0 0.0
    %3905 = vmatpush1.xpose.msra.mxu0 %v3736
    %3906 = vmatprep.subr.mxu0 0.0
    %3907 = vmatpush1.xpose.msra.mxu0 %v3739
    %3908 = vmatprep.subr.mxu0 0.0
    %3909 = vmatpush1.xpose.msra.mxu0 %v3742
    %3910 = vmatprep.subr.mxu0 0.0
    %3911 = vmatpush1.xpose.msra.mxu0 %v3745
    %3912 = vmatprep.subr.mxu0 0.0
    %3913 = vmatpush1.xpose.msra.mxu0 %v3748
    %3914 = vmatprep.subr.mxu0 0.0
    %3915 = vmatpush1.xpose.msra.mxu0 %v3751
    %3916 = vmatprep.subr.mxu0 0.0
    %3917 = vmatpush1.xpose.msra.mxu0 %v3754
    %3918 = vmatprep.subr.mxu0 0.0
    %3919 = vmatpush1.xpose.msra.mxu0 %v3757
    %3920 = vmatprep.subr.mxu0 0.0
    %3921 = vmatpush1.xpose.msra.mxu0 %v3760
    %3922 = vmatprep.mubr.f32.mxu0 0.0
    %3923 = vmatmul.mubr.f32.gmra.mrb[0].mxu0 %v3664
    %v3924 = vpop.f32.mrb[0].mxu0
    %v3925 = vadd.f32 0.0, %v3924
    %v3926 = vpop.f32.mrb[0].mxu0
    %v3927 = vadd.f32 0.0, %v3926
    %3928 = vdwg.mxu0
    %3929 = vmatprep.subr.mxu0 0.0
    %3930 = vmatpush1.xpose.msra.mxu0 %v3763
    %3931 = vmatprep.subr.mxu0 0.0
    %3932 = vmatpush1.xpose.msra.mxu0 %v3766
    %3933 = vmatprep.subr.mxu0 0.0
    %3934 = vmatpush1.xpose.msra.mxu0 %v3769
    %3935 = vmatprep.subr.mxu0 0.0
    %3936 = vmatpush1.xpose.msra.mxu0 %v3772
    %3937 = vmatprep.subr.mxu0 0.0
    %3938 = vmatpush1.xpose.msra.mxu0 %v3775
    %3939 = vmatprep.subr.mxu0 0.0
    %3940 = vmatpush1.xpose.msra.mxu0 %v3778
    %3941 = vmatprep.subr.mxu0 0.0
    %3942 = vmatpush1.xpose.msra.mxu0 %v3781
    %3943 = vmatprep.subr.mxu0 0.0
    %3944 = vmatpush1.xpose.msra.mxu0 %v3784
    %3945 = vmatprep.subr.mxu0 0.0
    %3946 = vmatpush1.xpose.msra.mxu0 %v3787
    %3947 = vmatprep.subr.mxu0 0.0
    %3948 = vmatpush1.xpose.msra.mxu0 %v3790
    %3949 = vmatprep.subr.mxu0 0.0
    %3950 = vmatpush1.xpose.msra.mxu0 %v3793
    %3951 = vmatprep.subr.mxu0 0.0
    %3952 = vmatpush1.xpose.msra.mxu0 %v3796
    %3953 = vmatprep.subr.mxu0 0.0
    %3954 = vmatpush1.xpose.msra.mxu0 %v3799
    %3955 = vmatprep.subr.mxu0 0.0
    %3956 = vmatpush1.xpose.msra.mxu0 %v3802
    %3957 = vmatprep.subr.mxu0 0.0
    %3958 = vmatpush1.xpose.msra.mxu0 %v3805
    %3959 = vmatprep.subr.mxu0 0.0
    %3960 = vmatpush1.xpose.msra.mxu0 %v3808
    %3961 = vmatprep.subr.mxu0 0.0
    %3962 = vmatpush1.xpose.msra.mxu0 %v3811
    %3963 = vmatprep.subr.mxu0 0.0
    %3964 = vmatpush1.xpose.msra.mxu0 %v3814
    %3965 = vmatprep.subr.mxu0 0.0
    %3966 = vmatpush1.xpose.msra.mxu0 %v3817
    %3967 = vmatprep.subr.mxu0 0.0
    %3968 = vmatpush1.xpose.msra.mxu0 %v3820
    %3969 = vmatprep.subr.mxu0 0.0
    %3970 = vmatpush1.xpose.msra.mxu0 %v3823
    %3971 = vmatprep.subr.mxu0 0.0
    %3972 = vmatpush1.xpose.msra.mxu0 %v3826
    %3973 = vmatprep.subr.mxu0 0.0
    %3974 = vmatpush1.xpose.msra.mxu0 %v3829
    %3975 = vmatprep.subr.mxu0 0.0
    %3976 = vmatpush1.xpose.msra.mxu0 %v3832
    %3977 = vmatprep.subr.mxu0 0.0
    %3978 = vmatpush1.xpose.msra.mxu0 %v3835
    %3979 = vmatprep.subr.mxu0 0.0
    %3980 = vmatpush1.xpose.msra.mxu0 %v3838
    %3981 = vmatprep.subr.mxu0 0.0
    %3982 = vmatpush1.xpose.msra.mxu0 %v3841
    %3983 = vmatprep.subr.mxu0 0.0
    %3984 = vmatpush1.xpose.msra.mxu0 %v3844
    %3985 = vmatprep.subr.mxu0 0.0
    %3986 = vmatpush1.xpose.msra.mxu0 %v3847
    %3987 = vmatprep.subr.mxu0 0.0
    %3988 = vmatpush1.xpose.msra.mxu0 %v3850
    %3989 = vmatprep.subr.mxu0 0.0
    %3990 = vmatpush1.xpose.msra.mxu0 %v3853
    %3991 = vmatprep.subr.mxu0 0.0
    %3992 = vmatpush1.xpose.msra.mxu0 %v3856
    %3993 = vmatprep.mubr.f32.mxu0 0.0
    %3994 = vmatmul.mubr.f32.gmra.mrb[0].mxu0 %v3664
    %v3995 = vpop.f32.mrb[0].mxu0
    %v3996 = vadd.f32 0.0, %v3995
    %v3997 = vpop.f32.mrb[0].mxu0
    %v3998 = vadd.f32 0.0, %v3997
    %3999 = vdwg.mxu0
    %v4000 = vmul.f32 %v3925, 2.0
    %v4001 = vmul.f32 %v3927, 2.0
    %v4002 = vmul.f32 %v3996, 2.0
    %v4003 = vmul.f32 %v3998, 2.0
    %v4004 = vsub.f32 %v3598, %v4000
    %v4005 = vsub.f32 %v3598, %v4001
    %v4006 = vsub.f32 %v3598, %v4002
    %v4007 = vsub.f32 %v3598, %v4003
    %v4008 = vld [vmem:[#allocation7] sm:$0xf]
    %v4010 = vlaneseq
    %v4011 = vshrl.u32 %v4010, 7
    %v4012 = vsub.s32 0, %v4011
    %v4013 = vrot.slane %v4008, %v4012
    %v4014 = vlaneseq
    %v4015 = vshrl.u32 %v4014, 7
    %v4016 = vsub.s32 1, %v4015
    %v4017 = vrot.slane %v4008, %v4016
    %v4018 = vlaneseq
    %v4019 = vshrl.u32 %v4018, 7
    %v4020 = vsub.s32 2, %v4019
    %v4021 = vrot.slane %v4008, %v4020
    %v4022 = vlaneseq
    %v4023 = vshrl.u32 %v4022, 7
    %v4024 = vsub.s32 3, %v4023
    %v4025 = vrot.slane %v4008, %v4024
    %v4030 = vadd.f32 %v4004, %v4013
    %v4031 = vadd.f32 %v4005, %v4017
    %v4032 = vadd.f32 %v4006, %v4021
    %v4033 = vadd.f32 %v4007, %v4025
    %v4034 = vmin.f32 %v4030, %v4031
    %v4035 = vmin.f32 %v4032, %v4033
    %v4036 = vmin.f32 %v4034, %v4035
    %4037 = vmin.xlane.f32.xlu0 %v4036
    %v4038 = vpop.xlane.xlu0 %4037
    %v4039 = vlaneseq
    %v4040 = vand.u32 %v4039, 127
    %v4041 = vadd.s32 %v4040, 128
    %v4042 = vadd.s32 %v4040, 256
    %v4043 = vadd.s32 %v4040, 384
    %vm4044 = vcmp.eq.f32.partialorder %v4030, %v4038
    %vm4045 = vcmp.eq.f32.partialorder %v4031, %v4038
    %vm4046 = vcmp.eq.f32.partialorder %v4032, %v4038
    %vm4047 = vcmp.eq.f32.partialorder %v4033, %v4038
    %v4048 = vsel %vm4044, %v4040, 512
    %v4049 = vsel %vm4045, %v4041, 512
    %v4050 = vsel %vm4046, %v4042, 512
    %v4051 = vsel %vm4047, %v4043, 512
    %vm4052 = vcmp.lt.s32.totalorder %v4048, %v4049
    %v4053 = vsel %vm4052, %v4048, %v4049
    %vm4054 = vcmp.lt.s32.totalorder %v4050, %v4051
    %v4055 = vsel %vm4054, %v4050, %v4051
    %vm4056 = vcmp.lt.s32.totalorder %v4053, %v4055
    %v4057 = vsel %vm4056, %v4053, %v4055
    %v4058 = vand.u32 %v4057, 65535
    %v4059 = vshra.s32 %v4057, 16
    %v4060 = vcvt.s32.f32 %v4058
    %v4061 = vcvt.s32.f32 %v4059
    %4062 = vmin.xlane.f32.xlu0 %v4061
    %v4063 = vpop.xlane.xlu0 %4062
    %vm4064 = vcmp.eq.f32.partialorder %v4061, %v4063
    %v4065 = vsel %vm4064, %v4060, inf
    %4066 = vmin.xlane.f32.xlu0 %v4065
    %v4067 = vpop.xlane.xlu0 %4066
    %v4068 = vcvt.f32.s32 %v4067
    %v4069 = vcvt.f32.s32 %v4063
    %v4070 = vshll.u32 %v4069, 16
    %v4071 = vadd.s32 %v4070, %v4068
    %vm4072 = vcmp.eq.s32.totalorder %v4040, %v4071
    %vm4073 = vcmp.eq.s32.totalorder %v4041, %v4071
    %vm4074 = vcmp.eq.s32.totalorder %v4042, %v4071
    %vm4075 = vcmp.eq.s32.totalorder %v4043, %v4071
    %v4076 = vsel %vm4072, 1, 0
    %v4077 = vsel %vm4073, 1, 0
    %v4078 = vsel %vm4074, 1, 0
    %v4079 = vsel %vm4075, 1, 0
    %v4080 = vcvt.s32.f32 %v4076
    %v4081 = vcvt.s32.f32 %v4077
    %v4082 = vcvt.s32.f32 %v4078
    %v4083 = vcvt.s32.f32 %v4079
    %4084 = vmatprep.subr.mxu0 0.0
    %4085 = vmatpush1.msra.mxu0 %v3599
    %4086 = vmatprep.subr.mxu0 0.0
    %4087 = vmatpush1.msra.mxu0 %v3600
    %4088 = vmatprep.subr.mxu0 0.0
    %4089 = vmatpush1.msra.mxu0 %v3601
    %4090 = vmatprep.subr.mxu0 0.0
    %4091 = vmatpush1.msra.mxu0 %v3602
    %4092 = vmatprep.subr.mxu0 0.0
    %4093 = vmatpush1.msra.mxu0 %v3603
    %4094 = vmatprep.subr.mxu0 0.0
    %4095 = vmatpush1.msra.mxu0 %v3604
    %4096 = vmatprep.subr.mxu0 0.0
    %4097 = vmatpush1.msra.mxu0 %v3605
    %4098 = vmatprep.subr.mxu0 0.0
    %4099 = vmatpush1.msra.mxu0 %v3606
    %4100 = vmatprep.subr.mxu0 0.0
    %4101 = vmatpush1.msra.mxu0 %v3607
    %4102 = vmatprep.subr.mxu0 0.0
    %4103 = vmatpush1.msra.mxu0 %v3608
    %4104 = vmatprep.subr.mxu0 0.0
    %4105 = vmatpush1.msra.mxu0 %v3609
    %4106 = vmatprep.subr.mxu0 0.0
    %4107 = vmatpush1.msra.mxu0 %v3610
    %4108 = vmatprep.subr.mxu0 0.0
    %4109 = vmatpush1.msra.mxu0 %v3611
    %4110 = vmatprep.subr.mxu0 0.0
    %4111 = vmatpush1.msra.mxu0 %v3612
    %4112 = vmatprep.subr.mxu0 0.0
    %4113 = vmatpush1.msra.mxu0 %v3613
    %4114 = vmatprep.subr.mxu0 0.0
    %4115 = vmatpush1.msra.mxu0 %v3614
    %4116 = vmatprep.subr.mxu0 0.0
    %4117 = vmatpush1.msra.mxu0 %v3615
    %4118 = vmatprep.subr.mxu0 0.0
    %4119 = vmatpush1.msra.mxu0 %v3616
    %4120 = vmatprep.subr.mxu0 0.0
    %4121 = vmatpush1.msra.mxu0 %v3617
    %4122 = vmatprep.subr.mxu0 0.0
    %4123 = vmatpush1.msra.mxu0 %v3618
    %4124 = vmatprep.subr.mxu0 0.0
    %4125 = vmatpush1.msra.mxu0 %v3619
    %4126 = vmatprep.subr.mxu0 0.0
    %4127 = vmatpush1.msra.mxu0 %v3620
    %4128 = vmatprep.subr.mxu0 0.0
    %4129 = vmatpush1.msra.mxu0 %v3621
    %4130 = vmatprep.subr.mxu0 0.0
    %4131 = vmatpush1.msra.mxu0 %v3622
    %4132 = vmatprep.subr.mxu0 0.0
    %4133 = vmatpush1.msra.mxu0 %v3623
    %4134 = vmatprep.subr.mxu0 0.0
    %4135 = vmatpush1.msra.mxu0 %v3624
    %4136 = vmatprep.subr.mxu0 0.0
    %4137 = vmatpush1.msra.mxu0 %v3625
    %4138 = vmatprep.subr.mxu0 0.0
    %4139 = vmatpush1.msra.mxu0 %v3626
    %4140 = vmatprep.subr.mxu0 0.0
    %4141 = vmatpush1.msra.mxu0 %v3627
    %4142 = vmatprep.subr.mxu0 0.0
    %4143 = vmatpush1.msra.mxu0 %v3628
    %4144 = vmatprep.subr.mxu0 0.0
    %4145 = vmatpush1.msra.mxu0 %v3629
    %4146 = vmatprep.subr.mxu0 0.0
    %4147 = vmatpush1.msra.mxu0 %v3630
    %4148 = vmatprep.mubr.f32.mxu0 %v4081
    %4149 = vmatmul.mubr.f32.gmra.mrb[0].mxu0 %v4080
    %v4150 = vpop.f32.mrb[0].mxu0
    %v4151 = vadd.f32 0.0, %v4150
    %v4152 = vpop.f32.mrb[0].mxu0
    %4153 = vdwg.mxu0
    %4154 = vmatprep.subr.mxu0 0.0
    %4155 = vmatpush1.msra.mxu0 %v3631
    %4156 = vmatprep.subr.mxu0 0.0
    %4157 = vmatpush1.msra.mxu0 %v3632
    %4158 = vmatprep.subr.mxu0 0.0
    %4159 = vmatpush1.msra.mxu0 %v3633
    %4160 = vmatprep.subr.mxu0 0.0
    %4161 = vmatpush1.msra.mxu0 %v3634
    %4162 = vmatprep.subr.mxu0 0.0
    %4163 = vmatpush1.msra.mxu0 %v3635
    %4164 = vmatprep.subr.mxu0 0.0
    %4165 = vmatpush1.msra.mxu0 %v3636
    %4166 = vmatprep.subr.mxu0 0.0
    %4167 = vmatpush1.msra.mxu0 %v3637
    %4168 = vmatprep.subr.mxu0 0.0
    %4169 = vmatpush1.msra.mxu0 %v3638
    %4170 = vmatprep.subr.mxu0 0.0
    %4171 = vmatpush1.msra.mxu0 %v3639
    %4172 = vmatprep.subr.mxu0 0.0
    %4173 = vmatpush1.msra.mxu0 %v3640
    %4174 = vmatprep.subr.mxu0 0.0
    %4175 = vmatpush1.msra.mxu0 %v3641
    %4176 = vmatprep.subr.mxu0 0.0
    %4177 = vmatpush1.msra.mxu0 %v3642
    %4178 = vmatprep.subr.mxu0 0.0
    %4179 = vmatpush1.msra.mxu0 %v3643
    %4180 = vmatprep.subr.mxu0 0.0
    %4181 = vmatpush1.msra.mxu0 %v3644
    %4182 = vmatprep.subr.mxu0 0.0
    %4183 = vmatpush1.msra.mxu0 %v3645
    %4184 = vmatprep.subr.mxu0 0.0
    %4185 = vmatpush1.msra.mxu0 %v3646
    %4186 = vmatprep.subr.mxu0 0.0
    %4187 = vmatpush1.msra.mxu0 %v3647
    %4188 = vmatprep.subr.mxu0 0.0
    %4189 = vmatpush1.msra.mxu0 %v3648
    %4190 = vmatprep.subr.mxu0 0.0
    %4191 = vmatpush1.msra.mxu0 %v3649
    %4192 = vmatprep.subr.mxu0 0.0
    %4193 = vmatpush1.msra.mxu0 %v3650
    %4194 = vmatprep.subr.mxu0 0.0
    %4195 = vmatpush1.msra.mxu0 %v3651
    %4196 = vmatprep.subr.mxu0 0.0
    %4197 = vmatpush1.msra.mxu0 %v3652
    %4198 = vmatprep.subr.mxu0 0.0
    %4199 = vmatpush1.msra.mxu0 %v3653
    %4200 = vmatprep.subr.mxu0 0.0
    %4201 = vmatpush1.msra.mxu0 %v3654
    %4202 = vmatprep.subr.mxu0 0.0
    %4203 = vmatpush1.msra.mxu0 %v3655
    %4204 = vmatprep.subr.mxu0 0.0
    %4205 = vmatpush1.msra.mxu0 %v3656
    %4206 = vmatprep.subr.mxu0 0.0
    %4207 = vmatpush1.msra.mxu0 %v3657
    %4208 = vmatprep.subr.mxu0 0.0
    %4209 = vmatpush1.msra.mxu0 %v3658
    %4210 = vmatprep.subr.mxu0 0.0
    %4211 = vmatpush1.msra.mxu0 %v3659
    %4212 = vmatprep.subr.mxu0 0.0
    %4213 = vmatpush1.msra.mxu0 %v3660
    %4214 = vmatprep.subr.mxu0 0.0
    %4215 = vmatpush1.msra.mxu0 %v3661
    %4216 = vmatprep.subr.mxu0 0.0
    %4217 = vmatpush1.msra.mxu0 %v3662
    %4218 = vmatprep.mubr.f32.mxu0 %v4083
    %4219 = vmatmul.mubr.f32.gmra.mrb[0].mxu0 %v4082
    %v4220 = vpop.f32.mrb[0].mxu0
    %v4221 = vadd.f32 %v4151, %v4220
    %v4222 = vpop.f32.mrb[0].mxu0
    %4223 = vdwg.mxu0
    %4224 = vst.msk [vmem:[%s17] sm:$0xff] %vm2078, %v3594
    %4226 = vrot.lane.b32.xlu0 %v4221, 32
    %v4227 = vpop.permute.xlu0 %4226
    %vm4229 = vcmask 523520
    %4230 = vst.msk [vmem:[%s17] sm:$0xff] %vm4229, %v4227
    %v4231 = vcvt.s32.f32 %v4071
    %vm4232 = vcmask 1048064
    %4233 = vst.msk [vmem:[%s17] sm:$0xff] %vm4232, %v4231
    // Predicated region
    $region86: #{vqvae_encoder_forward.1} parent=1 // pred_check
      _
    $region87: #{vqvae_encoder_forward.1} parent=1 // pred_check_branch
      %4235 = sbr.rel (0) target = $region89
    $region88: #{vqvae_encoder_forward.1} parent=1 // pred_region
      _
    $region89: #{vqvae_encoder_forward.1} parent=1 // pred_fallthru
      _
    // Predicated region
    $region90: #{vqvae_encoder_forward.1} parent=1 // pred_check
      _
    $region91: #{vqvae_encoder_forward.1} parent=1 // pred_check_branch
      %4237 = sbr.rel (0) target = $region93
    $region92: #{vqvae_encoder_forward.1} parent=1 // pred_region
      _
    $region93: #{vqvae_encoder_forward.1} parent=1 // pred_fallthru
      _
    %4238 = vsyncpa [#allocation3], 1
    %4239 = vsyncpa [#allocation5], 1
    %4240 = vsyncpa [#allocation8], 1

</llo_original>
